<compile_context>
chip_gen: v7x
topology: tpu7x:2x2x1
jax: 0.10.0
libtpu: 0.0.40
codegen_flags: <defaults>
</compile_context>

<pallas_src>
import jax
import jax.numpy as jnp
from jax import lax
from jax.experimental import pallas as pl
from jax.experimental.pallas import tpu as pltpu

N_FEATS = 32       # n_feats (must be >= 16 so channel // 16 >= 1)
REDUCTION = 16
KSIZE = 3          # default_conv -> padding = kernel_size // 2
RES_SCALE = 1.0    # module default

_WL = 8            # left column pad of scratch: interior stores sublane-aligned
_WR = 8            # right column pad (>= K//2; kept 8 so the zero slab is aligned)


def _make_res_attn_kernel(nb, H, W, C, K, res_scale, compute_dtype):
    p = K // 2
    Hp = H + 2 * p
    WT = _WL + W + _WR
    HW = H * W
    M = nb * HW

    def conv_same(pad_ref, w_ref, b_ref):
        # 3 dx column slabs (only dx != p needs a sublane shift), concatenated
        # once on the lane axis; dy taps are free leading-axis slices; one MXU
        # dot per dy with contraction dim K*C (= 96 for C=32), summed on VPU.
        cols = [pad_ref[:, :, _WL - p + dx:_WL - p + dx + W, :]
                for dx in range(K)]
        slab = jnp.concatenate(cols, axis=-1)              # (nb, Hp, W, K*C)
        acc = None
        for dy in range(K):
            m = slab[:, dy:dy + H].reshape(M, K * C).astype(compute_dtype)
            part = jnp.dot(m, w_ref[dy],                   # (K*C, C) per-dy slice
                           preferred_element_type=jnp.float32)
            acc = part if acc is None else acc + part
        return acc + b_ref[...]

    def kernel(x_ref, w1_ref, b1_ref, w2_ref, b2_ref,
               wd1t_ref, bd1t_ref, wd2_ref, bd2_ref, o_ref, pad_ref):
        # ---- zero only the halo border (sublane-aligned slabs); interior is
        #      always overwritten.  Re-zeroed every grid step: megacore-safe.
        pad_ref[:, 0:p, :, :] = jnp.zeros((nb, p, WT, C), jnp.float32)
        pad_ref[:, p + H:Hp, :, :] = jnp.zeros((nb, p, WT, C), jnp.float32)
        pad_ref[:, :, 0:_WL, :] = jnp.zeros((nb, Hp, _WL, C), jnp.float32)
        pad_ref[:, :, _WL + W:WT, :] = jnp.zeros((nb, Hp, _WR, C), jnp.float32)

        xv = x_ref[...]                                    # (nb, H, W, C)
        pad_ref[:, p:p + H, _WL:_WL + W, :] = xv.astype(jnp.float32)

        # ---- conv1 (3x3 SAME) + bias + ReLU ----
        h1 = jnp.maximum(conv_same(pad_ref, w1_ref, b1_ref), 0.0)   # (M, C)

        # ---- conv2 (3x3 SAME) + bias, reusing the same padded scratch ----
        pad_ref[:, p:p + H, _WL:_WL + W, :] = h1.reshape(nb, H, W, C)
        h2 = conv_same(pad_ref, w2_ref, b2_ref)                     # (M, C)

        # ---- CALayer (per image) + res_scale + residual ----
        h2b = h2.reshape(nb, HW, C)
        xb = xv.reshape(nb, HW, C).astype(jnp.float32)
        wd1t = wd1t_ref[...]      # (Cr, C)
        bd1t = bd1t_ref[...]      # (Cr, 1)
        wd2 = wd2_ref[...]        # (Cr, C)
        bd2 = bd2_ref[...]        # (1, C)
        for n in range(nb):       # nb is a small static int -> unrolled
            yn = jnp.mean(h2b[n], axis=0, keepdims=True)             # (1, C)
            # 1x1 convs as VPU broadcast-mul + XLU reduce (no tiny MXU dots)
            zn = jnp.maximum(
                jnp.sum(yn * wd1t, axis=1, keepdims=True) + bd1t, 0.0)   # (Cr, 1)
            sn = jax.nn.sigmoid(
                jnp.sum(zn * wd2, axis=0, keepdims=True) + bd2)          # (1, C)
            resn = h2b[n] * sn
            if res_scale != 1.0:
                resn = resn * res_scale
            resn = resn + xb[n]
            o_ref[n] = resn.reshape(H, W, C).astype(o_ref.dtype)

    return kernel


def _default_batch_block(n_batch):
    # Fold the whole batch into one grid step on single-TensorCore chips
    # (v5e / v6e); keep one image per ("parallel") grid step elsewhere so
    # multi-TC chips (v7x, v4) keep both cores busy.
    try:
        kind = jax.devices()[0].device_kind.lower()
    except Exception:
        kind = ""
    single_tc = any(t in kind for t in ("v5e", "v5 lite", "v6e", "v6 lite"))
    return n_batch if single_tc else 1


def res_attention_block(x_nchw, params, *, ksize=KSIZE, res_scale=RES_SCALE,
                        mxu_bf16=False, batch_block=None):
    """x_nchw: (N, C, H, W) float32 (PyTorch layout). Returns (N, C, H, W)."""
    w1, b1, w2, b2, wd1, bd1, wd2, bd2 = params
    x = jnp.transpose(x_nchw, (0, 2, 3, 1))     # -> NHWC (C on lanes)
    N, H, W, C = x.shape
    K = ksize
    p = K // 2
    Hp = H + 2 * p
    WT = _WL + W + _WR
    Cr = wd1.shape[1]

    nb = batch_block if batch_block is not None else _default_batch_block(N)
    nb = max(1, min(nb, N))
    while N % nb != 0:
        nb -= 1

    # bf16 MXU operands fail the 1e-4 check vs. the f32 reference -> default off.
    compute_dtype = jnp.bfloat16 if mxu_bf16 else jnp.float32

    # Conv weights pre-split per dy tap: (K, K*C, C); rows within a dy slice are
    # (dx-major, c_in-minor) which matches the lane order of the dx-slab concat.
    w1f = w1.reshape(K, K * C, C).astype(compute_dtype)
    w2f = w2.reshape(K, K * C, C).astype(compute_dtype)
    wd1t = jnp.transpose(wd1)            # (Cr, C) for broadcast-mul + lane reduce
    bd1t = bd1.reshape(Cr, 1)

    kernel = _make_res_attn_kernel(nb, H, W, C, K, res_scale, compute_dtype)

    out_nhwc = pl.pallas_call(
        kernel,
        out_shape=jax.ShapeDtypeStruct((N, H, W, C), x.dtype),
        grid_spec=pltpu.PrefetchScalarGridSpec(
            num_scalar_prefetch=0,
            grid=(N // nb,),
            in_specs=[
                pl.BlockSpec((nb, H, W, C), lambda i: (i, 0, 0, 0)),
                pl.BlockSpec((K, K * C, C), lambda i: (0, 0, 0)),
                pl.BlockSpec((1, C), lambda i: (0, 0)),
                pl.BlockSpec((K, K * C, C), lambda i: (0, 0, 0)),
                pl.BlockSpec((1, C), lambda i: (0, 0)),
                pl.BlockSpec((Cr, C), lambda i: (0, 0)),
                pl.BlockSpec((Cr, 1), lambda i: (0, 0)),
                pl.BlockSpec((Cr, C), lambda i: (0, 0)),
                pl.BlockSpec((1, C), lambda i: (0, 0)),
            ],
            out_specs=pl.BlockSpec((nb, H, W, C), lambda i: (i, 0, 0, 0)),
            scratch_shapes=[pltpu.VMEM((nb, Hp, WT, C), jnp.float32)],
        ),
        compiler_params=pltpu.CompilerParams(
            dimension_semantics=("parallel",)),
    )(x, w1f, b1, w2f, b2, wd1t, bd1t, wd2, bd2)

    return jnp.transpose(out_nhwc, (0, 3, 1, 2))  # back to NCHW


def _reference(x_nchw, params):
    """Pure-JAX reference matching the PyTorch forward semantics."""
    w1, b1, w2, b2, wd1, bd1, wd2, bd2 = params
    x = jnp.transpose(x_nchw, (0, 2, 3, 1))
    dn = lax.conv_dimension_numbers(x.shape, w1.shape, ('NHWC', 'HWIO', 'NHWC'))
    h = lax.conv_general_dilated(x, w1, (1, 1), 'SAME',
                                 dimension_numbers=dn) + b1.reshape(1, 1, 1, -1)
    h = jnp.maximum(h, 0.0)
    h = lax.conv_general_dilated(h, w2, (1, 1), 'SAME',
                                 dimension_numbers=dn) + b2.reshape(1, 1, 1, -1)
    y = jnp.mean(h, axis=(1, 2), keepdims=True)
    z = jnp.maximum(jnp.einsum('nijc,cr->nijr', y, wd1) + bd1.reshape(1, 1, 1, -1), 0.0)
    s = jax.nn.sigmoid(jnp.einsum('nijr,rc->nijc', z, wd2) + bd2.reshape(1, 1, 1, -1))
    res = h * s * RES_SCALE + x
    return jnp.transpose(res, (0, 3, 1, 2))


def _init_params(key, n_feats=N_FEATS, reduction=REDUCTION, ksize=KSIZE):
    C, Cr = n_feats, n_feats // reduction
    ks = jax.random.split(key, 8)
    scale = 0.1
    w1 = scale * jax.random.normal(ks[0], (ksize, ksize, C, C), jnp.float32)
    b1 = scale * jax.random.normal(ks[1], (1, C), jnp.float32)
    w2 = scale * jax.random.normal(ks[2], (ksize, ksize, C, C), jnp.float32)
    b2 = scale * jax.random.normal(ks[3], (1, C), jnp.float32)
    wd1 = scale * jax.random.normal(ks[4], (C, Cr), jnp.float32)
    bd1 = scale * jax.random.normal(ks[5], (1, Cr), jnp.float32)
    wd2 = scale * jax.random.normal(ks[6], (Cr, C), jnp.float32)
    bd2 = scale * jax.random.normal(ks[7], (1, C), jnp.float32)
    return (w1, b1, w2, b2, wd1, bd1, wd2, bd2)


if __name__ == "__main__":
    key = jax.random.PRNGKey(0)
    k_x, k_p = jax.random.split(key)
    N, H, W = 2, 16, 16
    x = jax.random.normal(k_x, (N, N_FEATS, H, W), jnp.float32)   # NCHW like PyTorch
    params = _init_params(k_p)

    out = jax.block_until_ready(res_attention_block(x, params))
    ref = jax.block_until_ready(_reference(x, params))

    assert out.shape == x.shape
    assert jnp.allclose(out, ref, rtol=1e-4, atol=1e-4), \
        f"max err {jnp.max(jnp.abs(out - ref))}"
    print("KERNEL_OK")
</pallas_src>

<mosaic_0001>
module attributes {stable_mosaic.version = 11 : i64} {
  func.func @kernel(%arg0: i32, %arg1: memref<1x16x16x32xf32, #tpu.memory_space<vmem>>, %arg2: memref<3x96x32xf32, #tpu.memory_space<vmem>>, %arg3: memref<1x32xf32, #tpu.memory_space<vmem>>, %arg4: memref<3x96x32xf32, #tpu.memory_space<vmem>>, %arg5: memref<1x32xf32, #tpu.memory_space<vmem>>, %arg6: memref<2x32xf32, #tpu.memory_space<vmem>>, %arg7: memref<2x1xf32, #tpu.memory_space<vmem>>, %arg8: memref<2x32xf32, #tpu.memory_space<vmem>>, %arg9: memref<1x32xf32, #tpu.memory_space<vmem>>, %arg10: memref<1x16x16x32xf32, #tpu.memory_space<vmem>>, %arg11: memref<1x18x32x32xf32, #tpu.memory_space<vmem>>) attributes {dimension_semantics = [#tpu.dimension_semantics<parallel>], iteration_bounds = array<i64: 2>, scalar_prefetch = 0 : i64, scratch_operands = 1 : i64, tpu.core_type = #tpu.core_type<tc>, window_params = [{transform_indices = @transform_0, window_bounds = array<i64: 1, 16, 16, 32>}, {pipeline_mode = #tpu.pipeline_mode<synchronous>, transform_indices = @transform_1, window_bounds = array<i64: 3, 96, 32>}, {pipeline_mode = #tpu.pipeline_mode<synchronous>, transform_indices = @transform_2, window_bounds = array<i64: 1, 32>}, {pipeline_mode = #tpu.pipeline_mode<synchronous>, transform_indices = @transform_3, window_bounds = array<i64: 3, 96, 32>}, {pipeline_mode = #tpu.pipeline_mode<synchronous>, transform_indices = @transform_4, window_bounds = array<i64: 1, 32>}, {pipeline_mode = #tpu.pipeline_mode<synchronous>, transform_indices = @transform_5, window_bounds = array<i64: 2, 32>}, {pipeline_mode = #tpu.pipeline_mode<synchronous>, transform_indices = @transform_6, window_bounds = array<i64: 2, 1>}, {pipeline_mode = #tpu.pipeline_mode<synchronous>, transform_indices = @transform_7, window_bounds = array<i64: 2, 32>}, {pipeline_mode = #tpu.pipeline_mode<synchronous>, transform_indices = @transform_8, window_bounds = array<i64: 1, 32>}, {transform_indices = @transform_9, window_bounds = array<i64: 1, 16, 16, 32>}]} {
    %cst = arith.constant 0.000000e+00 : f32
    %0 = vector.broadcast %cst : f32 to vector<1x1x32x32xf32>
    %c0 = arith.constant 0 : index
    %c0_0 = arith.constant 0 : index
    %c0_1 = arith.constant 0 : index
    %c0_2 = arith.constant 0 : index
    %1 = vector.load %arg11[%c0, %c0_0, %c0_1, %c0_2] : memref<1x18x32x32xf32, #tpu.memory_space<vmem>>, vector<1x1x32x32xf32>
    tpu.vector_store %arg11[%c0, %c0_0, %c0_1, %c0_2], %0 {strides = array<i32>} : memref<1x18x32x32xf32, #tpu.memory_space<vmem>>, vector<1x1x32x32xf32>,
    %cst_3 = arith.constant 0.000000e+00 : f32
    %2 = vector.broadcast %cst_3 : f32 to vector<1x1x32x32xf32>
    %c0_4 = arith.constant 0 : index
    %c17 = arith.constant 17 : index
    %c0_5 = arith.constant 0 : index
    %c0_6 = arith.constant 0 : index
    %3 = vector.load %arg11[%c0_4, %c17, %c0_5, %c0_6] : memref<1x18x32x32xf32, #tpu.memory_space<vmem>>, vector<1x1x32x32xf32>
    tpu.vector_store %arg11[%c0_4, %c17, %c0_5, %c0_6], %2 {strides = array<i32>} : memref<1x18x32x32xf32, #tpu.memory_space<vmem>>, vector<1x1x32x32xf32>,
    %cst_7 = arith.constant 0.000000e+00 : f32
    %4 = vector.broadcast %cst_7 : f32 to vector<1x18x8x32xf32>
    %c0_8 = arith.constant 0 : index
    %c0_9 = arith.constant 0 : index
    %c0_10 = arith.constant 0 : index
    %c0_11 = arith.constant 0 : index
    %5 = vector.load %arg11[%c0_8, %c0_9, %c0_10, %c0_11] : memref<1x18x32x32xf32, #tpu.memory_space<vmem>>, vector<1x18x8x32xf32>
    tpu.vector_store %arg11[%c0_8, %c0_9, %c0_10, %c0_11], %4 {strides = array<i32>} : memref<1x18x32x32xf32, #tpu.memory_space<vmem>>, vector<1x18x8x32xf32>,
    %cst_12 = arith.constant 0.000000e+00 : f32
    %6 = vector.broadcast %cst_12 : f32 to vector<1x18x8x32xf32>
    %c0_13 = arith.constant 0 : index
    %c0_14 = arith.constant 0 : index
    %c24 = arith.constant 24 : index
    %c0_15 = arith.constant 0 : index
    %7 = vector.load %arg11[%c0_13, %c0_14, %c24, %c0_15] : memref<1x18x32x32xf32, #tpu.memory_space<vmem>>, vector<1x18x8x32xf32>
    tpu.vector_store %arg11[%c0_13, %c0_14, %c24, %c0_15], %6 {strides = array<i32>} : memref<1x18x32x32xf32, #tpu.memory_space<vmem>>, vector<1x18x8x32xf32>,
    %c0_16 = arith.constant 0 : index
    %c0_17 = arith.constant 0 : index
    %c0_18 = arith.constant 0 : index
    %c0_19 = arith.constant 0 : index
    %8 = vector.load %arg1[%c0_16, %c0_17, %c0_18, %c0_19] : memref<1x16x16x32xf32, #tpu.memory_space<vmem>>, vector<1x16x16x32xf32>
    %c0_20 = arith.constant 0 : index
    %c1 = arith.constant 1 : index
    %c8 = arith.constant 8 : index
    %c0_21 = arith.constant 0 : index
    %9 = vector.load %arg11[%c0_20, %c1, %c8, %c0_21] : memref<1x18x32x32xf32, #tpu.memory_space<vmem>>, vector<1x16x16x32xf32>
    tpu.vector_store %arg11[%c0_20, %c1, %c8, %c0_21], %8 {strides = array<i32>} : memref<1x18x32x32xf32, #tpu.memory_space<vmem>>, vector<1x16x16x32xf32>,
    %c0_22 = arith.constant 0 : index
    %c0_23 = arith.constant 0 : index
    %c7 = arith.constant 7 : index
    %c0_24 = arith.constant 0 : index
    %10 = vector.load %arg11[%c0_22, %c0_23, %c7, %c0_24] : memref<1x18x32x32xf32, #tpu.memory_space<vmem>>, vector<1x18x16x32xf32>
    %c0_25 = arith.constant 0 : index
    %c0_26 = arith.constant 0 : index
    %c8_27 = arith.constant 8 : index
    %c0_28 = arith.constant 0 : index
    %11 = vector.load %arg11[%c0_25, %c0_26, %c8_27, %c0_28] : memref<1x18x32x32xf32, #tpu.memory_space<vmem>>, vector<1x18x16x32xf32>
    %c0_29 = arith.constant 0 : index
    %c0_30 = arith.constant 0 : index
    %c9 = arith.constant 9 : index
    %c0_31 = arith.constant 0 : index
    %12 = vector.load %arg11[%c0_29, %c0_30, %c9, %c0_31] : memref<1x18x32x32xf32, #tpu.memory_space<vmem>>, vector<1x18x16x32xf32>
    %13 = tpu.concatenate %10, %11, %12 in 3 : vector<1x18x16x32xf32>, vector<1x18x16x32xf32>, vector<1x18x16x32xf32> -> vector<1x18x16x96xf32>
    %14 = vector.extract_strided_slice %13 {offsets = [0, 0, 0, 0], sizes = [1, 16, 16, 96], strides = [1, 1, 1, 1]} : vector<1x18x16x96xf32> to vector<1x16x16x96xf32>
    %15 = vector.shape_cast %14 : vector<1x16x16x96xf32> to vector<256x96xf32>
    %c0_32 = arith.constant 0 : index
    %c0_33 = arith.constant 0 : index
    %c0_34 = arith.constant 0 : index
    %16 = vector.load %arg2[%c0_32, %c0_33, %c0_34] : memref<3x96x32xf32, #tpu.memory_space<vmem>>, vector<1x96x32xf32>
    %17 = vector.shape_cast %16 : vector<1x96x32xf32> to vector<96x32xf32>
    %cst_35 = arith.constant dense<0.000000e+00> : vector<256x32xf32>
    %18 = tpu.matmul %15, %17, %cst_35 {dimension_numbers = #tpu.dot_dimension_numbers<[1], [0], [0], [1], [0, 0, 1, 1], [], []>} : vector<256x96xf32>, vector<96x32xf32>, vector<256x32xf32> -> vector<256x32xf32>
    %19 = vector.extract_strided_slice %13 {offsets = [0, 1, 0, 0], sizes = [1, 16, 16, 96], strides = [1, 1, 1, 1]} : vector<1x18x16x96xf32> to vector<1x16x16x96xf32>
    %20 = vector.shape_cast %19 : vector<1x16x16x96xf32> to vector<256x96xf32>
    %c1_36 = arith.constant 1 : index
    %c0_37 = arith.constant 0 : index
    %c0_38 = arith.constant 0 : index
    %21 = vector.load %arg2[%c1_36, %c0_37, %c0_38] : memref<3x96x32xf32, #tpu.memory_space<vmem>>, vector<1x96x32xf32>
    %22 = vector.shape_cast %21 : vector<1x96x32xf32> to vector<96x32xf32>
    %cst_39 = arith.constant dense<0.000000e+00> : vector<256x32xf32>
    %23 = tpu.matmul %20, %22, %cst_39 {dimension_numbers = #tpu.dot_dimension_numbers<[1], [0], [0], [1], [0, 0, 1, 1], [], []>} : vector<256x96xf32>, vector<96x32xf32>, vector<256x32xf32> -> vector<256x32xf32>
    %24 = arith.addf %18, %23 : vector<256x32xf32>
    %25 = vector.extract_strided_slice %13 {offsets = [0, 2, 0, 0], sizes = [1, 16, 16, 96], strides = [1, 1, 1, 1]} : vector<1x18x16x96xf32> to vector<1x16x16x96xf32>
    %26 = vector.shape_cast %25 : vector<1x16x16x96xf32> to vector<256x96xf32>
    %c2 = arith.constant 2 : index
    %c0_40 = arith.constant 0 : index
    %c0_41 = arith.constant 0 : index
    %27 = vector.load %arg2[%c2, %c0_40, %c0_41] : memref<3x96x32xf32, #tpu.memory_space<vmem>>, vector<1x96x32xf32>
    %28 = vector.shape_cast %27 : vector<1x96x32xf32> to vector<96x32xf32>
    %cst_42 = arith.constant dense<0.000000e+00> : vector<256x32xf32>
    %29 = tpu.matmul %26, %28, %cst_42 {dimension_numbers = #tpu.dot_dimension_numbers<[1], [0], [0], [1], [0, 0, 1, 1], [], []>} : vector<256x96xf32>, vector<96x32xf32>, vector<256x32xf32> -> vector<256x32xf32>
    %30 = arith.addf %24, %29 : vector<256x32xf32>
    %c0_43 = arith.constant 0 : index
    %c0_44 = arith.constant 0 : index
    %31 = vector.load %arg3[%c0_43, %c0_44] : memref<1x32xf32, #tpu.memory_space<vmem>>, vector<1x32xf32>
    %32 = vector.broadcast %31 : vector<1x32xf32> to vector<256x32xf32>
    %33 = arith.addf %30, %32 : vector<256x32xf32>
    %cst_45 = arith.constant 0.000000e+00 : f32
    %34 = vector.broadcast %cst_45 : f32 to vector<256x32xf32>
    %35 = arith.maximumf %33, %34 : vector<256x32xf32>
    %36 = vector.shape_cast %35 : vector<256x32xf32> to vector<1x16x16x32xf32>
    %c0_46 = arith.constant 0 : index
    %c1_47 = arith.constant 1 : index
    %c8_48 = arith.constant 8 : index
    %c0_49 = arith.constant 0 : index
    %37 = vector.load %arg11[%c0_46, %c1_47, %c8_48, %c0_49] : memref<1x18x32x32xf32, #tpu.memory_space<vmem>>, vector<1x16x16x32xf32>
    tpu.vector_store %arg11[%c0_46, %c1_47, %c8_48, %c0_49], %36 {strides = array<i32>} : memref<1x18x32x32xf32, #tpu.memory_space<vmem>>, vector<1x16x16x32xf32>,
    %c0_50 = arith.constant 0 : index
    %c0_51 = arith.constant 0 : index
    %c7_52 = arith.constant 7 : index
    %c0_53 = arith.constant 0 : index
    %38 = vector.load %arg11[%c0_50, %c0_51, %c7_52, %c0_53] : memref<1x18x32x32xf32, #tpu.memory_space<vmem>>, vector<1x18x16x32xf32>
    %c0_54 = arith.constant 0 : index
    %c0_55 = arith.constant 0 : index
    %c8_56 = arith.constant 8 : index
    %c0_57 = arith.constant 0 : index
    %39 = vector.load %arg11[%c0_54, %c0_55, %c8_56, %c0_57] : memref<1x18x32x32xf32, #tpu.memory_space<vmem>>, vector<1x18x16x32xf32>
    %c0_58 = arith.constant 0 : index
    %c0_59 = arith.constant 0 : index
    %c9_60 = arith.constant 9 : index
    %c0_61 = arith.constant 0 : index
    %40 = vector.load %arg11[%c0_58, %c0_59, %c9_60, %c0_61] : memref<1x18x32x32xf32, #tpu.memory_space<vmem>>, vector<1x18x16x32xf32>
    %41 = tpu.concatenate %38, %39, %40 in 3 : vector<1x18x16x32xf32>, vector<1x18x16x32xf32>, vector<1x18x16x32xf32> -> vector<1x18x16x96xf32>
    %42 = vector.extract_strided_slice %41 {offsets = [0, 0, 0, 0], sizes = [1, 16, 16, 96], strides = [1, 1, 1, 1]} : vector<1x18x16x96xf32> to vector<1x16x16x96xf32>
    %43 = vector.shape_cast %42 : vector<1x16x16x96xf32> to vector<256x96xf32>
    %c0_62 = arith.constant 0 : index
    %c0_63 = arith.constant 0 : index
    %c0_64 = arith.constant 0 : index
    %44 = vector.load %arg4[%c0_62, %c0_63, %c0_64] : memref<3x96x32xf32, #tpu.memory_space<vmem>>, vector<1x96x32xf32>
    %45 = vector.shape_cast %44 : vector<1x96x32xf32> to vector<96x32xf32>
    %cst_65 = arith.constant dense<0.000000e+00> : vector<256x32xf32>
    %46 = tpu.matmul %43, %45, %cst_65 {dimension_numbers = #tpu.dot_dimension_numbers<[1], [0], [0], [1], [0, 0, 1, 1], [], []>} : vector<256x96xf32>, vector<96x32xf32>, vector<256x32xf32> -> vector<256x32xf32>
    %47 = vector.extract_strided_slice %41 {offsets = [0, 1, 0, 0], sizes = [1, 16, 16, 96], strides = [1, 1, 1, 1]} : vector<1x18x16x96xf32> to vector<1x16x16x96xf32>
    %48 = vector.shape_cast %47 : vector<1x16x16x96xf32> to vector<256x96xf32>
    %c1_66 = arith.constant 1 : index
    %c0_67 = arith.constant 0 : index
    %c0_68 = arith.constant 0 : index
    %49 = vector.load %arg4[%c1_66, %c0_67, %c0_68] : memref<3x96x32xf32, #tpu.memory_space<vmem>>, vector<1x96x32xf32>
    %50 = vector.shape_cast %49 : vector<1x96x32xf32> to vector<96x32xf32>
    %cst_69 = arith.constant dense<0.000000e+00> : vector<256x32xf32>
    %51 = tpu.matmul %48, %50, %cst_69 {dimension_numbers = #tpu.dot_dimension_numbers<[1], [0], [0], [1], [0, 0, 1, 1], [], []>} : vector<256x96xf32>, vector<96x32xf32>, vector<256x32xf32> -> vector<256x32xf32>
    %52 = arith.addf %46, %51 : vector<256x32xf32>
    %53 = vector.extract_strided_slice %41 {offsets = [0, 2, 0, 0], sizes = [1, 16, 16, 96], strides = [1, 1, 1, 1]} : vector<1x18x16x96xf32> to vector<1x16x16x96xf32>
    %54 = vector.shape_cast %53 : vector<1x16x16x96xf32> to vector<256x96xf32>
    %c2_70 = arith.constant 2 : index
    %c0_71 = arith.constant 0 : index
    %c0_72 = arith.constant 0 : index
    %55 = vector.load %arg4[%c2_70, %c0_71, %c0_72] : memref<3x96x32xf32, #tpu.memory_space<vmem>>, vector<1x96x32xf32>
    %56 = vector.shape_cast %55 : vector<1x96x32xf32> to vector<96x32xf32>
    %cst_73 = arith.constant dense<0.000000e+00> : vector<256x32xf32>
    %57 = tpu.matmul %54, %56, %cst_73 {dimension_numbers = #tpu.dot_dimension_numbers<[1], [0], [0], [1], [0, 0, 1, 1], [], []>} : vector<256x96xf32>, vector<96x32xf32>, vector<256x32xf32> -> vector<256x32xf32>
    %58 = arith.addf %52, %57 : vector<256x32xf32>
    %c0_74 = arith.constant 0 : index
    %c0_75 = arith.constant 0 : index
    %59 = vector.load %arg5[%c0_74, %c0_75] : memref<1x32xf32, #tpu.memory_space<vmem>>, vector<1x32xf32>
    %60 = vector.broadcast %59 : vector<1x32xf32> to vector<256x32xf32>
    %61 = arith.addf %58, %60 : vector<256x32xf32>
    %62 = vector.shape_cast %61 : vector<256x32xf32> to vector<1x256x32xf32>
    %63 = vector.shape_cast %8 : vector<1x16x16x32xf32> to vector<1x256x32xf32>
    %c0_76 = arith.constant 0 : index
    %c0_77 = arith.constant 0 : index
    %64 = vector.load %arg6[%c0_76, %c0_77] : memref<2x32xf32, #tpu.memory_space<vmem>>, vector<2x32xf32>
    %c0_78 = arith.constant 0 : index
    %c0_79 = arith.constant 0 : index
    %65 = vector.load %arg7[%c0_78, %c0_79] : memref<2x1xf32, #tpu.memory_space<vmem>>, vector<2x1xf32>
    %c0_80 = arith.constant 0 : index
    %c0_81 = arith.constant 0 : index
    %66 = vector.load %arg8[%c0_80, %c0_81] : memref<2x32xf32, #tpu.memory_space<vmem>>, vector<2x32xf32>
    %c0_82 = arith.constant 0 : index
    %c0_83 = arith.constant 0 : index
    %67 = vector.load %arg9[%c0_82, %c0_83] : memref<1x32xf32, #tpu.memory_space<vmem>>, vector<1x32xf32>
    %68 = vector.shape_cast %62 : vector<1x256x32xf32> to vector<256x32xf32>
    %cst_84 = arith.constant dense<0.000000e+00> : vector<32xf32>
    %69 = vector.multi_reduction <add>, %68, %cst_84 [0] : vector<256x32xf32> to vector<32xf32>
    %70 = vector.shape_cast %69 : vector<32xf32> to vector<1x32xf32>
    %cst_85 = arith.constant 2.560000e+02 : f32
    %71 = vector.broadcast %cst_85 : f32 to vector<1x32xf32>
    %72 = arith.divf %70, %71 : vector<1x32xf32>
    %73 = vector.broadcast %72 : vector<1x32xf32> to vector<2x32xf32>
    %74 = arith.mulf %73, %64 : vector<2x32xf32>
    %cst_86 = arith.constant dense<0.000000e+00> : vector<2xf32>
    %75 = vector.multi_reduction <add>, %74, %cst_86 [1] : vector<2x32xf32> to vector<2xf32>
    %76 = vector.shape_cast %75 : vector<2xf32> to vector<2x1xf32>
    %77 = arith.addf %76, %65 : vector<2x1xf32>
    %cst_87 = arith.constant 0.000000e+00 : f32
    %78 = vector.broadcast %cst_87 : f32 to vector<2x1xf32>
    %79 = arith.maximumf %77, %78 : vector<2x1xf32>
    %80 = vector.broadcast %79 : vector<2x1xf32> to vector<2x32xf32>
    %81 = arith.mulf %80, %66 : vector<2x32xf32>
    %cst_88 = arith.constant dense<0.000000e+00> : vector<32xf32>
    %82 = vector.multi_reduction <add>, %81, %cst_88 [0] : vector<2x32xf32> to vector<32xf32>
    %83 = vector.shape_cast %82 : vector<32xf32> to vector<1x32xf32>
    %84 = arith.addf %83, %67 : vector<1x32xf32>
    %85 = arith.negf %84 : vector<1x32xf32>
    %86 = math.exp %85 : vector<1x32xf32>
    %cst_89 = arith.constant 1.000000e+00 : f32
    %87 = vector.broadcast %cst_89 : f32 to vector<1x32xf32>
    %88 = arith.addf %87, %86 : vector<1x32xf32>
    %89 = arith.divf %87, %88 : vector<1x32xf32>
    %90 = vector.shape_cast %62 : vector<1x256x32xf32> to vector<256x32xf32>
    %91 = vector.broadcast %89 : vector<1x32xf32> to vector<256x32xf32>
    %92 = arith.mulf %90, %91 : vector<256x32xf32>
    %93 = vector.shape_cast %63 : vector<1x256x32xf32> to vector<256x32xf32>
    %94 = arith.addf %92, %93 : vector<256x32xf32>
    %95 = vector.shape_cast %94 : vector<256x32xf32> to vector<16x16x32xf32>
    %c0_90 = arith.constant 0 : index
    %c0_91 = arith.constant 0 : index
    %c0_92 = arith.constant 0 : index
    %c0_93 = arith.constant 0 : index
    %96 = vector.load %arg10[%c0_90, %c0_91, %c0_92, %c0_93] : memref<1x16x16x32xf32, #tpu.memory_space<vmem>>, vector<1x16x16x32xf32>
    %97 = vector.shape_cast %96 : vector<1x16x16x32xf32> to vector<16x16x32xf32>
    %98 = vector.shape_cast %95 : vector<16x16x32xf32> to vector<1x16x16x32xf32>
    tpu.vector_store %arg10[%c0_90, %c0_91, %c0_92, %c0_93], %98 {strides = array<i32>} : memref<1x16x16x32xf32, #tpu.memory_space<vmem>>, vector<1x16x16x32xf32>,
    return
  }
  func.func @transform_0(%arg0: i32) -> (i32, i32, i32, i32) {
    %c0_i32 = arith.constant 0 : i32
    %c0_i32_0 = arith.constant 0 : i32
    %c0_i32_1 = arith.constant 0 : i32
    %c0_i32_2 = arith.constant 0 : i32
    return %arg0, %c0_i32, %c0_i32_0, %c0_i32_1 : i32, i32, i32, i32
  }
  func.func @transform_1(%arg0: i32) -> (i32, i32, i32) {
    %c0_i32 = arith.constant 0 : i32
    %c0_i32_0 = arith.constant 0 : i32
    %c0_i32_1 = arith.constant 0 : i32
    %c0_i32_2 = arith.constant 0 : i32
    return %c0_i32, %c0_i32_0, %c0_i32_1 : i32, i32, i32
  }
  func.func @transform_2(%arg0: i32) -> (i32, i32) {
    %c0_i32 = arith.constant 0 : i32
    %c0_i32_0 = arith.constant 0 : i32
    %c0_i32_1 = arith.constant 0 : i32
    return %c0_i32, %c0_i32_0 : i32, i32
  }
  func.func @transform_3(%arg0: i32) -> (i32, i32, i32) {
    %c0_i32 = arith.constant 0 : i32
    %c0_i32_0 = arith.constant 0 : i32
    %c0_i32_1 = arith.constant 0 : i32
    %c0_i32_2 = arith.constant 0 : i32
    return %c0_i32, %c0_i32_0, %c0_i32_1 : i32, i32, i32
  }
  func.func @transform_4(%arg0: i32) -> (i32, i32) {
    %c0_i32 = arith.constant 0 : i32
    %c0_i32_0 = arith.constant 0 : i32
    %c0_i32_1 = arith.constant 0 : i32
    return %c0_i32, %c0_i32_0 : i32, i32
  }
  func.func @transform_5(%arg0: i32) -> (i32, i32) {
    %c0_i32 = arith.constant 0 : i32
    %c0_i32_0 = arith.constant 0 : i32
    %c0_i32_1 = arith.constant 0 : i32
    return %c0_i32, %c0_i32_0 : i32, i32
  }
  func.func @transform_6(%arg0: i32) -> (i32, i32) {
    %c0_i32 = arith.constant 0 : i32
    %c0_i32_0 = arith.constant 0 : i32
    %c0_i32_1 = arith.constant 0 : i32
    return %c0_i32, %c0_i32_0 : i32, i32
  }
  func.func @transform_7(%arg0: i32) -> (i32, i32) {
    %c0_i32 = arith.constant 0 : i32
    %c0_i32_0 = arith.constant 0 : i32
    %c0_i32_1 = arith.constant 0 : i32
    return %c0_i32, %c0_i32_0 : i32, i32
  }
  func.func @transform_8(%arg0: i32) -> (i32, i32) {
    %c0_i32 = arith.constant 0 : i32
    %c0_i32_0 = arith.constant 0 : i32
    %c0_i32_1 = arith.constant 0 : i32
    return %c0_i32, %c0_i32_0 : i32, i32
  }
  func.func @transform_9(%arg0: i32) -> (i32, i32, i32, i32) {
    %c0_i32 = arith.constant 0 : i32
    %c0_i32_0 = arith.constant 0 : i32
    %c0_i32_1 = arith.constant 0 : i32
    %c0_i32_2 = arith.constant 0 : i32
    return %arg0, %c0_i32, %c0_i32_0, %c0_i32_1 : i32, i32, i32, i32
  }
}

</mosaic_0001>

<llo_original>
// kernel: tpu_custom_call.1
$region0: #{tpu_custom_call.1}
  #allocation0 [shape = 'u32[]', space=smem, size = 0x4, offset = 0x4, fixed_abs, tag = 'smem constant byte address 0x4 - core index']
  #allocation1 [shape = 'u32[144,128]{1,0:T(1,128)}', space=vmem, size = 0x12000, scoped, tag = 'internal scratch']
  #allocation2 [shape = 'f32[1,18,32,32]{3,2,1,0:T(8,128)}', space=vmem, size = 0x48000, scoped, tag = 'scratch operand']
  %s0 = inlined_call_operand.vmem [shape: f32[2,16,16,32], index: 0, kind: input, shape index: {}]
  %s1 = inlined_call_operand.vmem [shape: f32[3,96,32], index: 1, kind: input, shape index: {}]
  %s2 = inlined_call_operand.vmem [shape: f32[1,32], index: 2, kind: input, shape index: {}]
  %s3 = inlined_call_operand.vmem [shape: f32[3,96,32], index: 3, kind: input, shape index: {}]
  %s4 = inlined_call_operand.vmem [shape: f32[1,32], index: 4, kind: input, shape index: {}]
  %s5 = inlined_call_operand.vmem [shape: f32[2,32], index: 5, kind: input, shape index: {}]
  %s6 = inlined_call_operand.vmem [shape: f32[2,1], index: 6, kind: input, shape index: {}]
  %s7 = inlined_call_operand.vmem [shape: f32[2,32], index: 7, kind: input, shape index: {}]
  %s8 = inlined_call_operand.vmem [shape: f32[1,32], index: 8, kind: input, shape index: {}]
  %s9 = inlined_call_operand.hbm [shape: f32[2,16,16,32], index: 9, kind: output, shape index: {}]
  %s10 = sld [smem:[#allocation0]]
  $region69: #{tpu_custom_call.1} parent=0
    _
  %s12 = ssub.s32 1, %s10
  %s13 = scalar_select 0, %s12, %s10
  $region1: #{tpu_custom_call.1} parent=0
    #allocation3 [shape = 'u8[262144]{0}', space=vmem, size = 0x40000, scoped, tag = 'output window, operand 0']
    #allocation4 [shape = 's32[2]{0}', space=sflag, size = 0x8, scoped, tag = 'scoped memory for tpu_custom_call.1']
    %14 = vsyncpa [#allocation4], 0
    %s15 = scalar_lea.sflag [#allocation4], 1
    %16 = vsyncpa %s15, 0
    loop: start=0, step=1, limit=4
    $region2: #{tpu_custom_call.1} parent=1 // loop_pre_header
      _
    $region3: #{tpu_custom_call.1} parent=1 // loop_header
      %s18 = sphi 0, %s22
      %p19 = scmp.ge.s32.totalorder %s18, 4
      %s28 = sphi 0, %s30
      %s31 = sphi 0, %s28
      %s32 = sphi 0, %s31
      %s48 = sphi 0, %s32
      %s52 = sphi 0, %s52
      %s54 = sphi 0, %s52
      %s55 = sphi 0, %s54
      %s69 = sphi 0, %s55
      %s73 = sphi 0, %s73
      %s75 = sphi 0, %s73
      %s76 = sphi 0, %s75
      %s90 = sphi 0, %s76
      %s94 = sphi 0, %s94
      %s96 = sphi 0, %s94
      %s97 = sphi 0, %s96
      %s111 = sphi 0, %s97
      %s115 = sphi 0, %s115
      %s117 = sphi 0, %s115
      %s118 = sphi 0, %s117
      %s132 = sphi 0, %s118
      %s136 = sphi 0, %s136
      %s138 = sphi 0, %s136
      %s139 = sphi 0, %s138
      %s153 = sphi 0, %s139
      %s157 = sphi 0, %s157
      %s159 = sphi 0, %s157
      %s160 = sphi 0, %s159
      %s174 = sphi 0, %s160
      %s178 = sphi 0, %s178
      %s180 = sphi 0, %s178
      %s181 = sphi 0, %s180
      %s195 = sphi 0, %s181
      %s199 = sphi 0, %s199
      %s201 = sphi 0, %s199
      %s202 = sphi 0, %s201
      %s216 = sphi 0, %s202
      %s222 = sphi 0, %s224
      %s225 = sphi 0, %s222
      %s226 = sphi 0, %s225
      %s242 = sphi 0, %s226
    $region4: #{tpu_custom_call.1} parent=1 // loop_header_branch
      %21 = sbr.rel (%p19) target = $region8
    $region5: #{tpu_custom_call.1} parent=1 // loop_body
      %s23 = ssub.s32 %s18, 1
      %s24 = ssub.s32 %s18, 2
      %s25 = sadd.s32 %s18, 1
      %s26 = ssub.s32 %s18, %s25
      %p27 = scmp.eq.s32.totalorder %s26, 0
      %s29 = sadd.s32 %s28, 1
      %s30 = scalar_select %p27, %s28, %s29
      %p33 = pneg %p27
      %p34 = scmp.eq.s32.totalorder %s18, 1
      %p35 = por %p33, %p34
      %p36 = scmp.ne.s32.totalorder %s28, %s31
      %p37 = scmp.eq.s32.totalorder %s18, 0
      %p38 = por %p36, %p37
      %p39 = scmp.ne.s32.totalorder %s28, %s31
      %p40 = scmp.eq.s32.totalorder %s23, 1
      %p41 = por %p39, %p40
      %p42 = scmp.ne.s32.totalorder %s31, %s32
      %p43 = scmp.eq.s32.totalorder %s23, 0
      %p44 = por %p42, %p43
      %p45 = scmp.ne.s32.totalorder %s31, %s32
      %p46 = scmp.eq.s32.totalorder %s24, 1
      %p47 = por %p45, %p46
      %p49 = scmp.ne.s32.totalorder %s32, %s48
      %p50 = scmp.eq.s32.totalorder %s24, 0
      %p51 = por %p49, %p50
      %s53 = sadd.s32 %s52, 1
      %p56 = scmp.eq.s32.totalorder %s18, 1
      %p57 = scmp.ne.s32.totalorder %s52, %s54
      %p58 = scmp.eq.s32.totalorder %s18, 0
      %p59 = por %p57, %p58
      %p60 = scmp.ne.s32.totalorder %s52, %s54
      %p61 = scmp.eq.s32.totalorder %s23, 1
      %p62 = por %p60, %p61
      %p63 = scmp.ne.s32.totalorder %s54, %s55
      %p64 = scmp.eq.s32.totalorder %s23, 0
      %p65 = por %p63, %p64
      %p66 = scmp.ne.s32.totalorder %s54, %s55
      %p67 = scmp.eq.s32.totalorder %s24, 1
      %p68 = por %p66, %p67
      %p70 = scmp.ne.s32.totalorder %s55, %s69
      %p71 = scmp.eq.s32.totalorder %s24, 0
      %p72 = por %p70, %p71
      %s74 = sadd.s32 %s73, 1
      %p77 = scmp.eq.s32.totalorder %s18, 1
      %p78 = scmp.ne.s32.totalorder %s73, %s75
      %p79 = scmp.eq.s32.totalorder %s18, 0
      %p80 = por %p78, %p79
      %p81 = scmp.ne.s32.totalorder %s73, %s75
      %p82 = scmp.eq.s32.totalorder %s23, 1
      %p83 = por %p81, %p82
      %p84 = scmp.ne.s32.totalorder %s75, %s76
      %p85 = scmp.eq.s32.totalorder %s23, 0
      %p86 = por %p84, %p85
      %p87 = scmp.ne.s32.totalorder %s75, %s76
      %p88 = scmp.eq.s32.totalorder %s24, 1
      %p89 = por %p87, %p88
      %p91 = scmp.ne.s32.totalorder %s76, %s90
      %p92 = scmp.eq.s32.totalorder %s24, 0
      %p93 = por %p91, %p92
      %s95 = sadd.s32 %s94, 1
      %p98 = scmp.eq.s32.totalorder %s18, 1
      %p99 = scmp.ne.s32.totalorder %s94, %s96
      %p100 = scmp.eq.s32.totalorder %s18, 0
      %p101 = por %p99, %p100
      %p102 = scmp.ne.s32.totalorder %s94, %s96
      %p103 = scmp.eq.s32.totalorder %s23, 1
      %p104 = por %p102, %p103
      %p105 = scmp.ne.s32.totalorder %s96, %s97
      %p106 = scmp.eq.s32.totalorder %s23, 0
      %p107 = por %p105, %p106
      %p108 = scmp.ne.s32.totalorder %s96, %s97
      %p109 = scmp.eq.s32.totalorder %s24, 1
      %p110 = por %p108, %p109
      %p112 = scmp.ne.s32.totalorder %s97, %s111
      %p113 = scmp.eq.s32.totalorder %s24, 0
      %p114 = por %p112, %p113
      %s116 = sadd.s32 %s115, 1
      %p119 = scmp.eq.s32.totalorder %s18, 1
      %p120 = scmp.ne.s32.totalorder %s115, %s117
      %p121 = scmp.eq.s32.totalorder %s18, 0
      %p122 = por %p120, %p121
      %p123 = scmp.ne.s32.totalorder %s115, %s117
      %p124 = scmp.eq.s32.totalorder %s23, 1
      %p125 = por %p123, %p124
      %p126 = scmp.ne.s32.totalorder %s117, %s118
      %p127 = scmp.eq.s32.totalorder %s23, 0
      %p128 = por %p126, %p127
      %p129 = scmp.ne.s32.totalorder %s117, %s118
      %p130 = scmp.eq.s32.totalorder %s24, 1
      %p131 = por %p129, %p130
      %p133 = scmp.ne.s32.totalorder %s118, %s132
      %p134 = scmp.eq.s32.totalorder %s24, 0
      %p135 = por %p133, %p134
      %s137 = sadd.s32 %s136, 1
      %p140 = scmp.eq.s32.totalorder %s18, 1
      %p141 = scmp.ne.s32.totalorder %s136, %s138
      %p142 = scmp.eq.s32.totalorder %s18, 0
      %p143 = por %p141, %p142
      %p144 = scmp.ne.s32.totalorder %s136, %s138
      %p145 = scmp.eq.s32.totalorder %s23, 1
      %p146 = por %p144, %p145
      %p147 = scmp.ne.s32.totalorder %s138, %s139
      %p148 = scmp.eq.s32.totalorder %s23, 0
      %p149 = por %p147, %p148
      %p150 = scmp.ne.s32.totalorder %s138, %s139
      %p151 = scmp.eq.s32.totalorder %s24, 1
      %p152 = por %p150, %p151
      %p154 = scmp.ne.s32.totalorder %s139, %s153
      %p155 = scmp.eq.s32.totalorder %s24, 0
      %p156 = por %p154, %p155
      %s158 = sadd.s32 %s157, 1
      %p161 = scmp.eq.s32.totalorder %s18, 1
      %p162 = scmp.ne.s32.totalorder %s157, %s159
      %p163 = scmp.eq.s32.totalorder %s18, 0
      %p164 = por %p162, %p163
      %p165 = scmp.ne.s32.totalorder %s157, %s159
      %p166 = scmp.eq.s32.totalorder %s23, 1
      %p167 = por %p165, %p166
      %p168 = scmp.ne.s32.totalorder %s159, %s160
      %p169 = scmp.eq.s32.totalorder %s23, 0
      %p170 = por %p168, %p169
      %p171 = scmp.ne.s32.totalorder %s159, %s160
      %p172 = scmp.eq.s32.totalorder %s24, 1
      %p173 = por %p171, %p172
      %p175 = scmp.ne.s32.totalorder %s160, %s174
      %p176 = scmp.eq.s32.totalorder %s24, 0
      %p177 = por %p175, %p176
      %s179 = sadd.s32 %s178, 1
      %p182 = scmp.eq.s32.totalorder %s18, 1
      %p183 = scmp.ne.s32.totalorder %s178, %s180
      %p184 = scmp.eq.s32.totalorder %s18, 0
      %p185 = por %p183, %p184
      %p186 = scmp.ne.s32.totalorder %s178, %s180
      %p187 = scmp.eq.s32.totalorder %s23, 1
      %p188 = por %p186, %p187
      %p189 = scmp.ne.s32.totalorder %s180, %s181
      %p190 = scmp.eq.s32.totalorder %s23, 0
      %p191 = por %p189, %p190
      %p192 = scmp.ne.s32.totalorder %s180, %s181
      %p193 = scmp.eq.s32.totalorder %s24, 1
      %p194 = por %p192, %p193
      %p196 = scmp.ne.s32.totalorder %s181, %s195
      %p197 = scmp.eq.s32.totalorder %s24, 0
      %p198 = por %p196, %p197
      %s200 = sadd.s32 %s199, 1
      %p203 = scmp.eq.s32.totalorder %s18, 1
      %p204 = scmp.ne.s32.totalorder %s199, %s201
      %p205 = scmp.eq.s32.totalorder %s18, 0
      %p206 = por %p204, %p205
      %p207 = scmp.ne.s32.totalorder %s199, %s201
      %p208 = scmp.eq.s32.totalorder %s23, 1
      %p209 = por %p207, %p208
      %p210 = scmp.ne.s32.totalorder %s201, %s202
      %p211 = scmp.eq.s32.totalorder %s23, 0
      %p212 = por %p210, %p211
      %p213 = scmp.ne.s32.totalorder %s201, %s202
      %p214 = scmp.eq.s32.totalorder %s24, 1
      %p215 = por %p213, %p214
      %p217 = scmp.ne.s32.totalorder %s202, %s216
      %p218 = scmp.eq.s32.totalorder %s24, 0
      %p219 = por %p217, %p218
      %s220 = ssub.s32 %s18, %s25
      %p221 = scmp.eq.s32.totalorder %s220, 0
      %s223 = sadd.s32 %s222, 1
      %s224 = scalar_select %p221, %s222, %s223
      %p227 = pneg %p221
      %p228 = scmp.eq.s32.totalorder %s18, 1
      %p229 = por %p227, %p228
      %p230 = scmp.ne.s32.totalorder %s222, %s225
      %p231 = scmp.eq.s32.totalorder %s18, 0
      %p232 = por %p230, %p231
      %p233 = scmp.ne.s32.totalorder %s222, %s225
      %p234 = scmp.eq.s32.totalorder %s23, 1
      %p235 = por %p233, %p234
      %p236 = scmp.ne.s32.totalorder %s225, %s226
      %p237 = scmp.eq.s32.totalorder %s23, 0
      %p238 = por %p236, %p237
      %p239 = scmp.ne.s32.totalorder %s225, %s226
      %p240 = scmp.eq.s32.totalorder %s24, 1
      %p241 = por %p239, %p240
      %p243 = scmp.ne.s32.totalorder %s226, %s242
      %p244 = scmp.eq.s32.totalorder %s24, 0
      %p245 = por %p243, %p244
      %p246 = scmp.le.s32.totalorder 1, %s18
      %p247 = scmp.lt.s32.totalorder %s18, 3
      %p248 = pnand %p246, %p247
      %p249 = pneg %p248
      // Predicated region
      $region9: #{tpu_custom_call.1} parent=5 // pred_check
        _
      $region10: #{tpu_custom_call.1} parent=5 // pred_check_branch
        %251 = sbr.rel (%p248) target = $region12
      $region11: #{tpu_custom_call.1} parent=5 // pred_region
        %s252 = ssub.s32 %s18, 1
        // Predicated region
        $region13: #{tpu_custom_call.1} parent=11 // pred_check
          %p253 = pneg %p65
        $region14: #{tpu_custom_call.1} parent=11 // pred_check_branch
          %255 = sbr.rel (%p253) target = $region16
        $region15: #{tpu_custom_call.1} parent=11 // pred_region
          _
        $region16: #{tpu_custom_call.1} parent=11 // pred_fallthru
          _
        // Predicated region
        $region17: #{tpu_custom_call.1} parent=11 // pred_check
          %p256 = pneg %p86
        $region18: #{tpu_custom_call.1} parent=11 // pred_check_branch
          %258 = sbr.rel (%p256) target = $region20
        $region19: #{tpu_custom_call.1} parent=11 // pred_region
          _
        $region20: #{tpu_custom_call.1} parent=11 // pred_fallthru
          _
        // Predicated region
        $region21: #{tpu_custom_call.1} parent=11 // pred_check
          %p259 = pneg %p107
        $region22: #{tpu_custom_call.1} parent=11 // pred_check_branch
          %261 = sbr.rel (%p259) target = $region24
        $region23: #{tpu_custom_call.1} parent=11 // pred_region
          _
        $region24: #{tpu_custom_call.1} parent=11 // pred_fallthru
          _
        // Predicated region
        $region25: #{tpu_custom_call.1} parent=11 // pred_check
          %p262 = pneg %p128
        $region26: #{tpu_custom_call.1} parent=11 // pred_check_branch
          %264 = sbr.rel (%p262) target = $region28
        $region27: #{tpu_custom_call.1} parent=11 // pred_region
          _
        $region28: #{tpu_custom_call.1} parent=11 // pred_fallthru
          _
        // Predicated region
        $region29: #{tpu_custom_call.1} parent=11 // pred_check
          %p265 = pneg %p149
        $region30: #{tpu_custom_call.1} parent=11 // pred_check_branch
          %267 = sbr.rel (%p265) target = $region32
        $region31: #{tpu_custom_call.1} parent=11 // pred_region
          _
        $region32: #{tpu_custom_call.1} parent=11 // pred_fallthru
          _
        // Predicated region
        $region33: #{tpu_custom_call.1} parent=11 // pred_check
          %p268 = pneg %p170
        $region34: #{tpu_custom_call.1} parent=11 // pred_check_branch
          %270 = sbr.rel (%p268) target = $region36
        $region35: #{tpu_custom_call.1} parent=11 // pred_region
          _
        $region36: #{tpu_custom_call.1} parent=11 // pred_fallthru
          _
        // Predicated region
        $region37: #{tpu_custom_call.1} parent=11 // pred_check
          %p271 = pneg %p191
        $region38: #{tpu_custom_call.1} parent=11 // pred_check_branch
          %273 = sbr.rel (%p271) target = $region40
        $region39: #{tpu_custom_call.1} parent=11 // pred_region
          _
        $region40: #{tpu_custom_call.1} parent=11 // pred_fallthru
          _
        // Predicated region
        $region41: #{tpu_custom_call.1} parent=11 // pred_check
          %p274 = pneg %p212
        $region42: #{tpu_custom_call.1} parent=11 // pred_check_branch
          %276 = sbr.rel (%p274) target = $region44
        $region43: #{tpu_custom_call.1} parent=11 // pred_region
          _
        $region44: #{tpu_custom_call.1} parent=11 // pred_fallthru
          _
      $region12: #{tpu_custom_call.1} parent=5 // pred_fallthru
        _
      %p277 = scmp.lt.s32.totalorder %s18, 2
      // Predicated region
      $region45: #{tpu_custom_call.1} parent=5 // pred_check
        %p278 = pneg %p277
      $region46: #{tpu_custom_call.1} parent=5 // pred_check_branch
        %280 = sbr.rel (%p278) target = $region48
      $region47: #{tpu_custom_call.1} parent=5 // pred_region
        // Predicated region
        $region49: #{tpu_custom_call.1} parent=47 // pred_check
          %p281 = pneg %p38
        $region50: #{tpu_custom_call.1} parent=47 // pred_check_branch
          %283 = sbr.rel (%p281) target = $region52
        $region51: #{tpu_custom_call.1} parent=47 // pred_region
          %p284 = scmp.lt.s32.totalorder %s18, 1
          %s285 = scalar_select %p284, %s18, 1
          %s286 = smul.addr %s285, 32
          %s287 = smul.addr %s286, 8
          %s288 = scalar_lea.vmem %s0, %s287
        $region52: #{tpu_custom_call.1} parent=47 // pred_fallthru
          _
      $region48: #{tpu_custom_call.1} parent=5 // pred_fallthru
        _
      %p289 = scmp.le.s32.totalorder 1, %s18
      %p290 = scmp.lt.s32.totalorder %s18, 3
      %p291 = pnand %p289, %p290
      %p292 = pneg %p291
      // Predicated region
      $region53: #{tpu_custom_call.1} parent=5 // pred_check
        _
      $region54: #{tpu_custom_call.1} parent=5 // pred_check_branch
        %294 = sbr.rel (%p291) target = $region56
      $region55: #{tpu_custom_call.1} parent=5 // pred_region
        %s295 = ssub.s32 %s18, 1
        %p296 = scmp.lt.s32.totalorder %s23, 1
        %s297 = scalar_select %p296, %s23, 1
        %s298 = smul.addr %s297, 32
        %s299 = smul.addr %s298, 8
        %s300 = scalar_lea.vmem %s0, %s299
        %p301 = pneg %p44
        %p302 = pneg %p41
        %p303 = pneg %p65
        %p304 = pneg %p62
        %p305 = pneg %p86
        %p306 = pneg %p83
        %p307 = pneg %p107
        %p308 = pneg %p104
        %p309 = pneg %p128
        %p310 = pneg %p125
        %p311 = pneg %p149
        %p312 = pneg %p146
        %p313 = pneg %p170
        %p314 = pneg %p167
        %p315 = pneg %p191
        %p316 = pneg %p188
        %p317 = pneg %p212
        %p318 = pneg %p209
        %p319 = pneg %p238
        %p320 = pneg %p235
        %s321 = sand.u32 %s225, 1
        %s322 = scalar_lea.sflag [#allocation4], %s321
        %s323 = sand.u32 %s225, 1
        %s324 = smul.addr %s323, 256
        %s325 = scalar_lea.vmem [#allocation3], %s324
        %p326 = scmp.lt.s32.totalorder %s23, 1
        %s327 = scalar_select %p326, %s23, 1
        %s328 = smul.addr %s327, 32
        %s329 = smul.addr %s328, 8
        %s330 = scalar_lea.vmem %s0, %s329
        %vm331 = vcmask 261120
        %332 = vst.msk [vmem:[#allocation2] sm:$0xff] %vm331, 0.0
        %333 = vst.msk [vmem:[#allocation2 + $0x8] sm:$0xff] %vm331, 0.0
        %334 = vst.msk [vmem:[#allocation2 + $0x10] sm:$0xff] %vm331, 0.0
        %335 = vst.msk [vmem:[#allocation2 + $0x18] sm:$0xff] %vm331, 0.0
        %s336 = scalar_lea.vmem [#allocation2], 544
        %337 = vst.msk [vmem:[%s336] sm:$0xff] %vm331, 0.0
        %338 = vst.msk [vmem:[%s336 + $0x8] sm:$0xff] %vm331, 0.0
        %339 = vst.msk [vmem:[%s336 + $0x10] sm:$0xff] %vm331, 0.0
        %340 = vst.msk [vmem:[%s336 + $0x18] sm:$0xff] %vm331, 0.0
        %341 = vst.msk [vmem:[#allocation2] sm:$0xff] %vm331, 0.0
        %342 = vst.msk [vmem:[#allocation2 + $0x20] sm:$0xff] %vm331, 0.0
        %343 = vst.msk [vmem:[#allocation2 + $0x40] sm:$0xff] %vm331, 0.0
        %344 = vst.msk [vmem:[#allocation2 + $0x60] sm:$0xff] %vm331, 0.0
        %345 = vst.msk [vmem:[#allocation2 + $0x80] sm:$0xff] %vm331, 0.0
        %346 = vst.msk [vmem:[#allocation2 + $0xa0] sm:$0xff] %vm331, 0.0
        %347 = vst.msk [vmem:[#allocation2 + $0xc0] sm:$0xff] %vm331, 0.0
        %348 = vst.msk [vmem:[#allocation2 + $0xe0] sm:$0xff] %vm331, 0.0
        %349 = vst.msk [vmem:[#allocation2 + $0x100] sm:$0xff] %vm331, 0.0
        %350 = vst.msk [vmem:[#allocation2 + $0x120] sm:$0xff] %vm331, 0.0
        %351 = vst.msk [vmem:[#allocation2 + $0x140] sm:$0xff] %vm331, 0.0
        %352 = vst.msk [vmem:[#allocation2 + $0x160] sm:$0xff] %vm331, 0.0
        %353 = vst.msk [vmem:[#allocation2 + $0x180] sm:$0xff] %vm331, 0.0
        %354 = vst.msk [vmem:[#allocation2 + $0x1a0] sm:$0xff] %vm331, 0.0
        %355 = vst.msk [vmem:[#allocation2 + $0x1c0] sm:$0xff] %vm331, 0.0
        %356 = vst.msk [vmem:[#allocation2 + $0x1e0] sm:$0xff] %vm331, 0.0
        %357 = vst.msk [vmem:[#allocation2 + $0x200] sm:$0xff] %vm331, 0.0
        %358 = vst.msk [vmem:[#allocation2 + $0x220] sm:$0xff] %vm331, 0.0
        %359 = vst.msk [vmem:[#allocation2 + $0x18] sm:$0xff] %vm331, 0.0
        %360 = vst.msk [vmem:[#allocation2 + $0x38] sm:$0xff] %vm331, 0.0
        %361 = vst.msk [vmem:[#allocation2 + $0x58] sm:$0xff] %vm331, 0.0
        %362 = vst.msk [vmem:[#allocation2 + $0x78] sm:$0xff] %vm331, 0.0
        %363 = vst.msk [vmem:[#allocation2 + $0x98] sm:$0xff] %vm331, 0.0
        %364 = vst.msk [vmem:[#allocation2 + $0xb8] sm:$0xff] %vm331, 0.0
        %365 = vst.msk [vmem:[#allocation2 + $0xd8] sm:$0xff] %vm331, 0.0
        %366 = vst.msk [vmem:[#allocation2 + $0xf8] sm:$0xff] %vm331, 0.0
        %367 = vst.msk [vmem:[#allocation2 + $0x118] sm:$0xff] %vm331, 0.0
        %368 = vst.msk [vmem:[#allocation2 + $0x138] sm:$0xff] %vm331, 0.0
        %369 = vst.msk [vmem:[#allocation2 + $0x158] sm:$0xff] %vm331, 0.0
        %370 = vst.msk [vmem:[#allocation2 + $0x178] sm:$0xff] %vm331, 0.0
        %371 = vst.msk [vmem:[#allocation2 + $0x198] sm:$0xff] %vm331, 0.0
        %372 = vst.msk [vmem:[#allocation2 + $0x1b8] sm:$0xff] %vm331, 0.0
        %373 = vst.msk [vmem:[#allocation2 + $0x1d8] sm:$0xff] %vm331, 0.0
        %374 = vst.msk [vmem:[#allocation2 + $0x1f8] sm:$0xff] %vm331, 0.0
        %375 = vst.msk [vmem:[#allocation2 + $0x218] sm:$0xff] %vm331, 0.0
        %376 = vst.msk [vmem:[#allocation2 + $0x238] sm:$0xff] %vm331, 0.0
        %v377 = vld [vmem:[%s330] sm:$0xff]
        %v378 = vld [vmem:[%s330 + $0x8] sm:$0xff]
        %v379 = vld [vmem:[%s330 + $0x10] sm:$0xff]
        %v380 = vld [vmem:[%s330 + $0x18] sm:$0xff]
        %v381 = vld [vmem:[%s330 + $0x20] sm:$0xff]
        %v382 = vld [vmem:[%s330 + $0x28] sm:$0xff]
        %v383 = vld [vmem:[%s330 + $0x30] sm:$0xff]
        %v384 = vld [vmem:[%s330 + $0x38] sm:$0xff]
        %v385 = vld [vmem:[%s330 + $0x40] sm:$0xff]
        %v386 = vld [vmem:[%s330 + $0x48] sm:$0xff]
        %v387 = vld [vmem:[%s330 + $0x50] sm:$0xff]
        %v388 = vld [vmem:[%s330 + $0x58] sm:$0xff]
        %v389 = vld [vmem:[%s330 + $0x60] sm:$0xff]
        %v390 = vld [vmem:[%s330 + $0x68] sm:$0xff]
        %v391 = vld [vmem:[%s330 + $0x70] sm:$0xff]
        %v392 = vld [vmem:[%s330 + $0x78] sm:$0xff]
        %v393 = vld [vmem:[%s330 + $0x80] sm:$0xff]
        %v394 = vld [vmem:[%s330 + $0x88] sm:$0xff]
        %v395 = vld [vmem:[%s330 + $0x90] sm:$0xff]
        %v396 = vld [vmem:[%s330 + $0x98] sm:$0xff]
        %v397 = vld [vmem:[%s330 + $0xa0] sm:$0xff]
        %v398 = vld [vmem:[%s330 + $0xa8] sm:$0xff]
        %v399 = vld [vmem:[%s330 + $0xb0] sm:$0xff]
        %v400 = vld [vmem:[%s330 + $0xb8] sm:$0xff]
        %v401 = vld [vmem:[%s330 + $0xc0] sm:$0xff]
        %v402 = vld [vmem:[%s330 + $0xc8] sm:$0xff]
        %v403 = vld [vmem:[%s330 + $0xd0] sm:$0xff]
        %v404 = vld [vmem:[%s330 + $0xd8] sm:$0xff]
        %v405 = vld [vmem:[%s330 + $0xe0] sm:$0xff]
        %v406 = vld [vmem:[%s330 + $0xe8] sm:$0xff]
        %v407 = vld [vmem:[%s330 + $0xf0] sm:$0xff]
        %v408 = vld [vmem:[%s330 + $0xf8] sm:$0xff]
        %s409 = scalar_lea.vmem [#allocation2], 32
        %410 = vst.msk [vmem:[%s409 + $0x8] sm:$0xff] %vm331, %v377
        %411 = vst.msk [vmem:[%s409 + $0x10] sm:$0xff] %vm331, %v378
        %412 = vst.msk [vmem:[%s409 + $0x28] sm:$0xff] %vm331, %v379
        %413 = vst.msk [vmem:[%s409 + $0x30] sm:$0xff] %vm331, %v380
        %414 = vst.msk [vmem:[%s409 + $0x48] sm:$0xff] %vm331, %v381
        %415 = vst.msk [vmem:[%s409 + $0x50] sm:$0xff] %vm331, %v382
        %416 = vst.msk [vmem:[%s409 + $0x68] sm:$0xff] %vm331, %v383
        %417 = vst.msk [vmem:[%s409 + $0x70] sm:$0xff] %vm331, %v384
        %418 = vst.msk [vmem:[%s409 + $0x88] sm:$0xff] %vm331, %v385
        %419 = vst.msk [vmem:[%s409 + $0x90] sm:$0xff] %vm331, %v386
        %420 = vst.msk [vmem:[%s409 + $0xa8] sm:$0xff] %vm331, %v387
        %421 = vst.msk [vmem:[%s409 + $0xb0] sm:$0xff] %vm331, %v388
        %422 = vst.msk [vmem:[%s409 + $0xc8] sm:$0xff] %vm331, %v389
        %423 = vst.msk [vmem:[%s409 + $0xd0] sm:$0xff] %vm331, %v390
        %424 = vst.msk [vmem:[%s409 + $0xe8] sm:$0xff] %vm331, %v391
        %425 = vst.msk [vmem:[%s409 + $0xf0] sm:$0xff] %vm331, %v392
        %426 = vst.msk [vmem:[%s409 + $0x108] sm:$0xff] %vm331, %v393
        %427 = vst.msk [vmem:[%s409 + $0x110] sm:$0xff] %vm331, %v394
        %428 = vst.msk [vmem:[%s409 + $0x128] sm:$0xff] %vm331, %v395
        %429 = vst.msk [vmem:[%s409 + $0x130] sm:$0xff] %vm331, %v396
        %430 = vst.msk [vmem:[%s409 + $0x148] sm:$0xff] %vm331, %v397
        %431 = vst.msk [vmem:[%s409 + $0x150] sm:$0xff] %vm331, %v398
        %432 = vst.msk [vmem:[%s409 + $0x168] sm:$0xff] %vm331, %v399
        %433 = vst.msk [vmem:[%s409 + $0x170] sm:$0xff] %vm331, %v400
        %434 = vst.msk [vmem:[%s409 + $0x188] sm:$0xff] %vm331, %v401
        %435 = vst.msk [vmem:[%s409 + $0x190] sm:$0xff] %vm331, %v402
        %436 = vst.msk [vmem:[%s409 + $0x1a8] sm:$0xff] %vm331, %v403
        %437 = vst.msk [vmem:[%s409 + $0x1b0] sm:$0xff] %vm331, %v404
        %438 = vst.msk [vmem:[%s409 + $0x1c8] sm:$0xff] %vm331, %v405
        %439 = vst.msk [vmem:[%s409 + $0x1d0] sm:$0xff] %vm331, %v406
        %440 = vst.msk [vmem:[%s409 + $0x1e8] sm:$0xff] %vm331, %v407
        %441 = vst.msk [vmem:[%s409 + $0x1f0] sm:$0xff] %vm331, %v408
        %v442 = vld [vmem:[#allocation2 + $0x7] sm:$0xff]
        %v443 = vld [vmem:[#allocation2 + $0xf] sm:$0xff]
        %v444 = vld [vmem:[#allocation2 + $0x27] sm:$0xff]
        %v445 = vld [vmem:[#allocation2 + $0x2f] sm:$0xff]
        %v446 = vld [vmem:[#allocation2 + $0x47] sm:$0xff]
        %v447 = vld [vmem:[#allocation2 + $0x4f] sm:$0xff]
        %v448 = vld [vmem:[#allocation2 + $0x67] sm:$0xff]
        %v449 = vld [vmem:[#allocation2 + $0x6f] sm:$0xff]
        %v450 = vld [vmem:[#allocation2 + $0x87] sm:$0xff]
        %v451 = vld [vmem:[#allocation2 + $0x8f] sm:$0xff]
        %v452 = vld [vmem:[#allocation2 + $0xa7] sm:$0xff]
        %v453 = vld [vmem:[#allocation2 + $0xaf] sm:$0xff]
        %v454 = vld [vmem:[#allocation2 + $0xc7] sm:$0xff]
        %v455 = vld [vmem:[#allocation2 + $0xcf] sm:$0xff]
        %v456 = vld [vmem:[#allocation2 + $0xe7] sm:$0xff]
        %v457 = vld [vmem:[#allocation2 + $0xef] sm:$0xff]
        %v458 = vld [vmem:[#allocation2 + $0x107] sm:$0xff]
        %v459 = vld [vmem:[#allocation2 + $0x10f] sm:$0xff]
        %v460 = vld [vmem:[#allocation2 + $0x127] sm:$0xff]
        %v461 = vld [vmem:[#allocation2 + $0x12f] sm:$0xff]
        %v462 = vld [vmem:[#allocation2 + $0x147] sm:$0xff]
        %v463 = vld [vmem:[#allocation2 + $0x14f] sm:$0xff]
        %v464 = vld [vmem:[#allocation2 + $0x167] sm:$0xff]
        %v465 = vld [vmem:[#allocation2 + $0x16f] sm:$0xff]
        %v466 = vld [vmem:[#allocation2 + $0x187] sm:$0xff]
        %v467 = vld [vmem:[#allocation2 + $0x18f] sm:$0xff]
        %v468 = vld [vmem:[#allocation2 + $0x1a7] sm:$0xff]
        %v469 = vld [vmem:[#allocation2 + $0x1af] sm:$0xff]
        %v470 = vld [vmem:[#allocation2 + $0x1c7] sm:$0xff]
        %v471 = vld [vmem:[#allocation2 + $0x1cf] sm:$0xff]
        %v472 = vld [vmem:[#allocation2 + $0x1e7] sm:$0xff]
        %v473 = vld [vmem:[#allocation2 + $0x1ef] sm:$0xff]
        %v474 = vld [vmem:[#allocation2 + $0x207] sm:$0xff]
        %v475 = vld [vmem:[#allocation2 + $0x20f] sm:$0xff]
        %v476 = vld [vmem:[#allocation2 + $0x227] sm:$0xff]
        %v477 = vld [vmem:[#allocation2 + $0x22f] sm:$0xff]
        %v478 = vld [vmem:[#allocation2 + $0x8] sm:$0xff]
        %v479 = vld [vmem:[#allocation2 + $0x10] sm:$0xff]
        %v480 = vld [vmem:[#allocation2 + $0x28] sm:$0xff]
        %v481 = vld [vmem:[#allocation2 + $0x30] sm:$0xff]
        %v482 = vld [vmem:[#allocation2 + $0x48] sm:$0xff]
        %v483 = vld [vmem:[#allocation2 + $0x50] sm:$0xff]
        %v484 = vld [vmem:[#allocation2 + $0x68] sm:$0xff]
        %v485 = vld [vmem:[#allocation2 + $0x70] sm:$0xff]
        %v486 = vld [vmem:[#allocation2 + $0x88] sm:$0xff]
        %v487 = vld [vmem:[#allocation2 + $0x90] sm:$0xff]
        %v488 = vld [vmem:[#allocation2 + $0xa8] sm:$0xff]
        %v489 = vld [vmem:[#allocation2 + $0xb0] sm:$0xff]
        %v490 = vld [vmem:[#allocation2 + $0xc8] sm:$0xff]
        %v491 = vld [vmem:[#allocation2 + $0xd0] sm:$0xff]
        %v492 = vld [vmem:[#allocation2 + $0xe8] sm:$0xff]
        %v493 = vld [vmem:[#allocation2 + $0xf0] sm:$0xff]
        %v494 = vld [vmem:[#allocation2 + $0x108] sm:$0xff]
        %v495 = vld [vmem:[#allocation2 + $0x110] sm:$0xff]
        %v496 = vld [vmem:[#allocation2 + $0x128] sm:$0xff]
        %v497 = vld [vmem:[#allocation2 + $0x130] sm:$0xff]
        %v498 = vld [vmem:[#allocation2 + $0x148] sm:$0xff]
        %v499 = vld [vmem:[#allocation2 + $0x150] sm:$0xff]
        %v500 = vld [vmem:[#allocation2 + $0x168] sm:$0xff]
        %v501 = vld [vmem:[#allocation2 + $0x170] sm:$0xff]
        %v502 = vld [vmem:[#allocation2 + $0x188] sm:$0xff]
        %v503 = vld [vmem:[#allocation2 + $0x190] sm:$0xff]
        %v504 = vld [vmem:[#allocation2 + $0x1a8] sm:$0xff]
        %v505 = vld [vmem:[#allocation2 + $0x1b0] sm:$0xff]
        %v506 = vld [vmem:[#allocation2 + $0x1c8] sm:$0xff]
        %v507 = vld [vmem:[#allocation2 + $0x1d0] sm:$0xff]
        %v508 = vld [vmem:[#allocation2 + $0x1e8] sm:$0xff]
        %v509 = vld [vmem:[#allocation2 + $0x1f0] sm:$0xff]
        %v510 = vld [vmem:[#allocation2 + $0x208] sm:$0xff]
        %v511 = vld [vmem:[#allocation2 + $0x210] sm:$0xff]
        %v512 = vld [vmem:[#allocation2 + $0x228] sm:$0xff]
        %v513 = vld [vmem:[#allocation2 + $0x230] sm:$0xff]
        %v514 = vld [vmem:[#allocation2 + $0x9] sm:$0xff]
        %v515 = vld [vmem:[#allocation2 + $0x11] sm:$0xff]
        %v516 = vld [vmem:[#allocation2 + $0x29] sm:$0xff]
        %v517 = vld [vmem:[#allocation2 + $0x31] sm:$0xff]
        %v518 = vld [vmem:[#allocation2 + $0x49] sm:$0xff]
        %v519 = vld [vmem:[#allocation2 + $0x51] sm:$0xff]
        %v520 = vld [vmem:[#allocation2 + $0x69] sm:$0xff]
        %v521 = vld [vmem:[#allocation2 + $0x71] sm:$0xff]
        %v522 = vld [vmem:[#allocation2 + $0x89] sm:$0xff]
        %v523 = vld [vmem:[#allocation2 + $0x91] sm:$0xff]
        %v524 = vld [vmem:[#allocation2 + $0xa9] sm:$0xff]
        %v525 = vld [vmem:[#allocation2 + $0xb1] sm:$0xff]
        %v526 = vld [vmem:[#allocation2 + $0xc9] sm:$0xff]
        %v527 = vld [vmem:[#allocation2 + $0xd1] sm:$0xff]
        %v528 = vld [vmem:[#allocation2 + $0xe9] sm:$0xff]
        %v529 = vld [vmem:[#allocation2 + $0xf1] sm:$0xff]
        %v530 = vld [vmem:[#allocation2 + $0x109] sm:$0xff]
        %v531 = vld [vmem:[#allocation2 + $0x111] sm:$0xff]
        %v532 = vld [vmem:[#allocation2 + $0x129] sm:$0xff]
        %v533 = vld [vmem:[#allocation2 + $0x131] sm:$0xff]
        %v534 = vld [vmem:[#allocation2 + $0x149] sm:$0xff]
        %v535 = vld [vmem:[#allocation2 + $0x151] sm:$0xff]
        %v536 = vld [vmem:[#allocation2 + $0x169] sm:$0xff]
        %v537 = vld [vmem:[#allocation2 + $0x171] sm:$0xff]
        %v538 = vld [vmem:[#allocation2 + $0x189] sm:$0xff]
        %v539 = vld [vmem:[#allocation2 + $0x191] sm:$0xff]
        %v540 = vld [vmem:[#allocation2 + $0x1a9] sm:$0xff]
        %v541 = vld [vmem:[#allocation2 + $0x1b1] sm:$0xff]
        %v542 = vld [vmem:[#allocation2 + $0x1c9] sm:$0xff]
        %v543 = vld [vmem:[#allocation2 + $0x1d1] sm:$0xff]
        %v544 = vld [vmem:[#allocation2 + $0x1e9] sm:$0xff]
        %v545 = vld [vmem:[#allocation2 + $0x1f1] sm:$0xff]
        %v546 = vld [vmem:[#allocation2 + $0x209] sm:$0xff]
        %v547 = vld [vmem:[#allocation2 + $0x211] sm:$0xff]
        %v548 = vld [vmem:[#allocation2 + $0x229] sm:$0xff]
        %v549 = vld [vmem:[#allocation2 + $0x231] sm:$0xff]
        %586 = vrot.lane.b32.xlu0 %v478, 32
        %v587 = vpop.permute.xlu0 %586
        %588 = vrot.lane.b32.xlu0 %v479, 32
        %v589 = vpop.permute.xlu0 %588
        %590 = vrot.lane.b32.xlu0 %v480, 32
        %v591 = vpop.permute.xlu0 %590
        %592 = vrot.lane.b32.xlu0 %v481, 32
        %v593 = vpop.permute.xlu0 %592
        %594 = vrot.lane.b32.xlu0 %v482, 32
        %v595 = vpop.permute.xlu0 %594
        %596 = vrot.lane.b32.xlu0 %v483, 32
        %v597 = vpop.permute.xlu0 %596
        %598 = vrot.lane.b32.xlu0 %v484, 32
        %v599 = vpop.permute.xlu0 %598
        %600 = vrot.lane.b32.xlu0 %v485, 32
        %v601 = vpop.permute.xlu0 %600
        %602 = vrot.lane.b32.xlu0 %v486, 32
        %v603 = vpop.permute.xlu0 %602
        %604 = vrot.lane.b32.xlu0 %v487, 32
        %v605 = vpop.permute.xlu0 %604
        %606 = vrot.lane.b32.xlu0 %v488, 32
        %v607 = vpop.permute.xlu0 %606
        %608 = vrot.lane.b32.xlu0 %v489, 32
        %v609 = vpop.permute.xlu0 %608
        %610 = vrot.lane.b32.xlu0 %v490, 32
        %v611 = vpop.permute.xlu0 %610
        %612 = vrot.lane.b32.xlu0 %v491, 32
        %v613 = vpop.permute.xlu0 %612
        %614 = vrot.lane.b32.xlu0 %v492, 32
        %v615 = vpop.permute.xlu0 %614
        %616 = vrot.lane.b32.xlu0 %v493, 32
        %v617 = vpop.permute.xlu0 %616
        %618 = vrot.lane.b32.xlu0 %v494, 32
        %v619 = vpop.permute.xlu0 %618
        %620 = vrot.lane.b32.xlu0 %v495, 32
        %v621 = vpop.permute.xlu0 %620
        %622 = vrot.lane.b32.xlu0 %v496, 32
        %v623 = vpop.permute.xlu0 %622
        %624 = vrot.lane.b32.xlu0 %v497, 32
        %v625 = vpop.permute.xlu0 %624
        %626 = vrot.lane.b32.xlu0 %v498, 32
        %v627 = vpop.permute.xlu0 %626
        %628 = vrot.lane.b32.xlu0 %v499, 32
        %v629 = vpop.permute.xlu0 %628
        %630 = vrot.lane.b32.xlu0 %v500, 32
        %v631 = vpop.permute.xlu0 %630
        %632 = vrot.lane.b32.xlu0 %v501, 32
        %v633 = vpop.permute.xlu0 %632
        %634 = vrot.lane.b32.xlu0 %v502, 32
        %v635 = vpop.permute.xlu0 %634
        %636 = vrot.lane.b32.xlu0 %v503, 32
        %v637 = vpop.permute.xlu0 %636
        %638 = vrot.lane.b32.xlu0 %v504, 32
        %v639 = vpop.permute.xlu0 %638
        %640 = vrot.lane.b32.xlu0 %v505, 32
        %v641 = vpop.permute.xlu0 %640
        %642 = vrot.lane.b32.xlu0 %v506, 32
        %v643 = vpop.permute.xlu0 %642
        %644 = vrot.lane.b32.xlu0 %v507, 32
        %v645 = vpop.permute.xlu0 %644
        %646 = vrot.lane.b32.xlu0 %v508, 32
        %v647 = vpop.permute.xlu0 %646
        %648 = vrot.lane.b32.xlu0 %v509, 32
        %v649 = vpop.permute.xlu0 %648
        %650 = vrot.lane.b32.xlu0 %v510, 32
        %v651 = vpop.permute.xlu0 %650
        %652 = vrot.lane.b32.xlu0 %v511, 32
        %v653 = vpop.permute.xlu0 %652
        %654 = vrot.lane.b32.xlu0 %v512, 32
        %v655 = vpop.permute.xlu0 %654
        %656 = vrot.lane.b32.xlu0 %v513, 32
        %v657 = vpop.permute.xlu0 %656
        %730 = vrot.lane.b32.xlu0 %v514, 64
        %v731 = vpop.permute.xlu0 %730
        %732 = vrot.lane.b32.xlu0 %v515, 64
        %v733 = vpop.permute.xlu0 %732
        %734 = vrot.lane.b32.xlu0 %v516, 64
        %v735 = vpop.permute.xlu0 %734
        %736 = vrot.lane.b32.xlu0 %v517, 64
        %v737 = vpop.permute.xlu0 %736
        %738 = vrot.lane.b32.xlu0 %v518, 64
        %v739 = vpop.permute.xlu0 %738
        %740 = vrot.lane.b32.xlu0 %v519, 64
        %v741 = vpop.permute.xlu0 %740
        %742 = vrot.lane.b32.xlu0 %v520, 64
        %v743 = vpop.permute.xlu0 %742
        %744 = vrot.lane.b32.xlu0 %v521, 64
        %v745 = vpop.permute.xlu0 %744
        %746 = vrot.lane.b32.xlu0 %v522, 64
        %v747 = vpop.permute.xlu0 %746
        %748 = vrot.lane.b32.xlu0 %v523, 64
        %v749 = vpop.permute.xlu0 %748
        %750 = vrot.lane.b32.xlu0 %v524, 64
        %v751 = vpop.permute.xlu0 %750
        %752 = vrot.lane.b32.xlu0 %v525, 64
        %v753 = vpop.permute.xlu0 %752
        %754 = vrot.lane.b32.xlu0 %v526, 64
        %v755 = vpop.permute.xlu0 %754
        %756 = vrot.lane.b32.xlu0 %v527, 64
        %v757 = vpop.permute.xlu0 %756
        %758 = vrot.lane.b32.xlu0 %v528, 64
        %v759 = vpop.permute.xlu0 %758
        %760 = vrot.lane.b32.xlu0 %v529, 64
        %v761 = vpop.permute.xlu0 %760
        %762 = vrot.lane.b32.xlu0 %v530, 64
        %v763 = vpop.permute.xlu0 %762
        %764 = vrot.lane.b32.xlu0 %v531, 64
        %v765 = vpop.permute.xlu0 %764
        %766 = vrot.lane.b32.xlu0 %v532, 64
        %v767 = vpop.permute.xlu0 %766
        %768 = vrot.lane.b32.xlu0 %v533, 64
        %v769 = vpop.permute.xlu0 %768
        %770 = vrot.lane.b32.xlu0 %v534, 64
        %v771 = vpop.permute.xlu0 %770
        %772 = vrot.lane.b32.xlu0 %v535, 64
        %v773 = vpop.permute.xlu0 %772
        %774 = vrot.lane.b32.xlu0 %v536, 64
        %v775 = vpop.permute.xlu0 %774
        %776 = vrot.lane.b32.xlu0 %v537, 64
        %v777 = vpop.permute.xlu0 %776
        %778 = vrot.lane.b32.xlu0 %v538, 64
        %v779 = vpop.permute.xlu0 %778
        %780 = vrot.lane.b32.xlu0 %v539, 64
        %v781 = vpop.permute.xlu0 %780
        %782 = vrot.lane.b32.xlu0 %v540, 64
        %v783 = vpop.permute.xlu0 %782
        %784 = vrot.lane.b32.xlu0 %v541, 64
        %v785 = vpop.permute.xlu0 %784
        %786 = vrot.lane.b32.xlu0 %v542, 64
        %v787 = vpop.permute.xlu0 %786
        %788 = vrot.lane.b32.xlu0 %v543, 64
        %v789 = vpop.permute.xlu0 %788
        %790 = vrot.lane.b32.xlu0 %v544, 64
        %v791 = vpop.permute.xlu0 %790
        %792 = vrot.lane.b32.xlu0 %v545, 64
        %v793 = vpop.permute.xlu0 %792
        %794 = vrot.lane.b32.xlu0 %v546, 64
        %v795 = vpop.permute.xlu0 %794
        %796 = vrot.lane.b32.xlu0 %v547, 64
        %v797 = vpop.permute.xlu0 %796
        %798 = vrot.lane.b32.xlu0 %v548, 64
        %v799 = vpop.permute.xlu0 %798
        %800 = vrot.lane.b32.xlu0 %v549, 64
        %v801 = vpop.permute.xlu0 %800
        %v838 = vsel %vm331, %v442, %v587
        %v839 = vsel %vm331, %v443, %v589
        %v840 = vsel %vm331, %v444, %v591
        %v841 = vsel %vm331, %v445, %v593
        %v842 = vsel %vm331, %v446, %v595
        %v843 = vsel %vm331, %v447, %v597
        %v844 = vsel %vm331, %v448, %v599
        %v845 = vsel %vm331, %v449, %v601
        %v846 = vsel %vm331, %v450, %v603
        %v847 = vsel %vm331, %v451, %v605
        %v848 = vsel %vm331, %v452, %v607
        %v849 = vsel %vm331, %v453, %v609
        %v850 = vsel %vm331, %v454, %v611
        %v851 = vsel %vm331, %v455, %v613
        %v852 = vsel %vm331, %v456, %v615
        %v853 = vsel %vm331, %v457, %v617
        %v854 = vsel %vm331, %v458, %v619
        %v855 = vsel %vm331, %v459, %v621
        %v856 = vsel %vm331, %v460, %v623
        %v857 = vsel %vm331, %v461, %v625
        %v858 = vsel %vm331, %v462, %v627
        %v859 = vsel %vm331, %v463, %v629
        %v860 = vsel %vm331, %v464, %v631
        %v861 = vsel %vm331, %v465, %v633
        %v862 = vsel %vm331, %v466, %v635
        %v863 = vsel %vm331, %v467, %v637
        %v864 = vsel %vm331, %v468, %v639
        %v865 = vsel %vm331, %v469, %v641
        %v866 = vsel %vm331, %v470, %v643
        %v867 = vsel %vm331, %v471, %v645
        %v868 = vsel %vm331, %v472, %v647
        %v869 = vsel %vm331, %v473, %v649
        %v870 = vsel %vm331, %v474, %v651
        %v871 = vsel %vm331, %v475, %v653
        %v872 = vsel %vm331, %v476, %v655
        %v873 = vsel %vm331, %v477, %v657
        %vm874 = vcmask 523264
        %v875 = vsel %vm874, %v838, %v731
        %v876 = vsel %vm874, %v839, %v733
        %v877 = vsel %vm874, %v840, %v735
        %v878 = vsel %vm874, %v841, %v737
        %v879 = vsel %vm874, %v842, %v739
        %v880 = vsel %vm874, %v843, %v741
        %v881 = vsel %vm874, %v844, %v743
        %v882 = vsel %vm874, %v845, %v745
        %v883 = vsel %vm874, %v846, %v747
        %v884 = vsel %vm874, %v847, %v749
        %v885 = vsel %vm874, %v848, %v751
        %v886 = vsel %vm874, %v849, %v753
        %v887 = vsel %vm874, %v850, %v755
        %v888 = vsel %vm874, %v851, %v757
        %v889 = vsel %vm874, %v852, %v759
        %v890 = vsel %vm874, %v853, %v761
        %v891 = vsel %vm874, %v854, %v763
        %v892 = vsel %vm874, %v855, %v765
        %v893 = vsel %vm874, %v856, %v767
        %v894 = vsel %vm874, %v857, %v769
        %v895 = vsel %vm874, %v858, %v771
        %v896 = vsel %vm874, %v859, %v773
        %v897 = vsel %vm874, %v860, %v775
        %v898 = vsel %vm874, %v861, %v777
        %v899 = vsel %vm874, %v862, %v779
        %v900 = vsel %vm874, %v863, %v781
        %v901 = vsel %vm874, %v864, %v783
        %v902 = vsel %vm874, %v865, %v785
        %v903 = vsel %vm874, %v866, %v787
        %v904 = vsel %vm874, %v867, %v789
        %v905 = vsel %vm874, %v868, %v791
        %v906 = vsel %vm874, %v869, %v793
        %v907 = vsel %vm874, %v870, %v795
        %v908 = vsel %vm874, %v871, %v797
        %v909 = vsel %vm874, %v872, %v799
        %v910 = vsel %vm874, %v873, %v801
        %v911 = vld [vmem:[%s1] sm:$0xff]
        %v912 = vld [vmem:[%s1 + $0x8] sm:$0xff]
        %v913 = vld [vmem:[%s1 + $0x10] sm:$0xff]
        %v914 = vld [vmem:[%s1 + $0x18] sm:$0xff]
        %v915 = vld [vmem:[%s1 + $0x20] sm:$0xff]
        %v916 = vld [vmem:[%s1 + $0x28] sm:$0xff]
        %v917 = vld [vmem:[%s1 + $0x30] sm:$0xff]
        %v918 = vld [vmem:[%s1 + $0x38] sm:$0xff]
        %v919 = vld [vmem:[%s1 + $0x40] sm:$0xff]
        %v920 = vld [vmem:[%s1 + $0x48] sm:$0xff]
        %v921 = vld [vmem:[%s1 + $0x50] sm:$0xff]
        %v922 = vld [vmem:[%s1 + $0x58] sm:$0xff]
        %s923 = scalar_lea.vmem %s1, 96
        %v924 = vld [vmem:[%s923] sm:$0xff]
        %v925 = vld [vmem:[%s923 + $0x8] sm:$0xff]
        %v926 = vld [vmem:[%s923 + $0x10] sm:$0xff]
        %v927 = vld [vmem:[%s923 + $0x18] sm:$0xff]
        %v928 = vld [vmem:[%s923 + $0x20] sm:$0xff]
        %v929 = vld [vmem:[%s923 + $0x28] sm:$0xff]
        %v930 = vld [vmem:[%s923 + $0x30] sm:$0xff]
        %v931 = vld [vmem:[%s923 + $0x38] sm:$0xff]
        %v932 = vld [vmem:[%s923 + $0x40] sm:$0xff]
        %v933 = vld [vmem:[%s923 + $0x48] sm:$0xff]
        %v934 = vld [vmem:[%s923 + $0x50] sm:$0xff]
        %v935 = vld [vmem:[%s923 + $0x58] sm:$0xff]
        %vm936 = vcmask 785408
        %v938 = vsel %vm936, %v877, 0
        %v941 = vsel %vm936, %v878, 0
        %v944 = vsel %vm936, %v879, 0
        %v947 = vsel %vm936, %v880, 0
        %v950 = vsel %vm936, %v881, 0
        %v953 = vsel %vm936, %v882, 0
        %v956 = vsel %vm936, %v883, 0
        %v959 = vsel %vm936, %v884, 0
        %v962 = vsel %vm936, %v885, 0
        %v965 = vsel %vm936, %v886, 0
        %v968 = vsel %vm936, %v887, 0
        %v971 = vsel %vm936, %v888, 0
        %v974 = vsel %vm936, %v889, 0
        %v977 = vsel %vm936, %v890, 0
        %v980 = vsel %vm936, %v891, 0
        %v983 = vsel %vm936, %v892, 0
        %v986 = vsel %vm936, %v893, 0
        %v989 = vsel %vm936, %v894, 0
        %v992 = vsel %vm936, %v895, 0
        %v995 = vsel %vm936, %v896, 0
        %v998 = vsel %vm936, %v897, 0
        %v1001 = vsel %vm936, %v898, 0
        %v1004 = vsel %vm936, %v899, 0
        %v1007 = vsel %vm936, %v900, 0
        %v1010 = vsel %vm936, %v901, 0
        %v1013 = vsel %vm936, %v902, 0
        %v1016 = vsel %vm936, %v903, 0
        %v1019 = vsel %vm936, %v904, 0
        %v1022 = vsel %vm936, %v905, 0
        %v1025 = vsel %vm936, %v906, 0
        %v1028 = vsel %vm936, %v907, 0
        %v1031 = vsel %vm936, %v908, 0
        %1033 = vmatprep.subr.mxu0 0.0
        %1034 = vmatpush1.msra.mxu0 %v924
        %1035 = vmatprep.subr.mxu0 0.0
        %1036 = vmatpush1.msra.mxu0 %v925
        %1037 = vmatprep.subr.mxu0 0.0
        %1038 = vmatpush1.msra.mxu0 %v926
        %1039 = vmatprep.subr.mxu0 0.0
        %1040 = vmatpush1.msra.mxu0 %v927
        %1041 = vmatprep.subr.mxu0 0.0
        %1042 = vmatpush1.msra.mxu0 %v928
        %1043 = vmatprep.subr.mxu0 0.0
        %1044 = vmatpush1.msra.mxu0 %v929
        %1045 = vmatprep.subr.mxu0 0.0
        %1046 = vmatpush1.msra.mxu0 %v930
        %1047 = vmatprep.subr.mxu0 0.0
        %1048 = vmatpush1.msra.mxu0 %v931
        %1049 = vmatprep.subr.mxu0 0.0
        %1050 = vmatpush1.msra.mxu0 %v932
        %1051 = vmatprep.subr.mxu0 0.0
        %1052 = vmatpush1.msra.mxu0 %v933
        %1053 = vmatprep.subr.mxu0 0.0
        %1054 = vmatpush1.msra.mxu0 %v934
        %1055 = vmatprep.subr.mxu0 0.0
        %1056 = vmatpush1.msra.mxu0 %v935
        %1057 = vmatprep.subr.mxu0 0.0
        %1058 = vmatpush1.msra.mxu0 0.0
        %1059 = vmatprep.subr.mxu0 0.0
        %1060 = vmatpush1.msra.mxu0 0.0
        %1061 = vmatprep.subr.mxu0 0.0
        %1062 = vmatpush1.msra.mxu0 0.0
        %1063 = vmatprep.subr.mxu0 0.0
        %1064 = vmatpush1.msra.mxu0 0.0
        %1065 = vmatprep.subr.mxu0 0.0
        %1066 = vmatpush1.msra.mxu0 0.0
        %1067 = vmatprep.subr.mxu0 0.0
        %1068 = vmatpush1.msra.mxu0 0.0
        %1069 = vmatprep.subr.mxu0 0.0
        %1070 = vmatpush1.msra.mxu0 0.0
        %1071 = vmatprep.subr.mxu0 0.0
        %1072 = vmatpush1.msra.mxu0 0.0
        %1073 = vmatprep.subr.mxu0 0.0
        %1074 = vmatpush1.msra.mxu0 0.0
        %1075 = vmatprep.subr.mxu0 0.0
        %1076 = vmatpush1.msra.mxu0 0.0
        %1077 = vmatprep.subr.mxu0 0.0
        %1078 = vmatpush1.msra.mxu0 0.0
        %1079 = vmatprep.subr.mxu0 0.0
        %1080 = vmatpush1.msra.mxu0 0.0
        %1081 = vmatprep.subr.mxu0 0.0
        %1082 = vmatpush1.msra.mxu0 0.0
        %1083 = vmatprep.subr.mxu0 0.0
        %1084 = vmatpush1.msra.mxu0 0.0
        %1085 = vmatprep.subr.mxu0 0.0
        %1086 = vmatpush1.msra.mxu0 0.0
        %1087 = vmatprep.subr.mxu0 0.0
        %1088 = vmatpush1.msra.mxu0 0.0
        %1089 = vmatprep.subr.mxu0 0.0
        %1090 = vmatpush1.msra.mxu0 0.0
        %1091 = vmatprep.subr.mxu0 0.0
        %1092 = vmatpush1.msra.mxu0 0.0
        %1093 = vmatprep.subr.mxu0 0.0
        %1094 = vmatpush1.msra.mxu0 0.0
        %1095 = vmatprep.subr.mxu0 0.0
        %1096 = vmatpush1.msra.mxu0 0.0
        %1097 = vmatprep.mubr.f32.mxu0 0.0
        %1098 = vmatmul.mubr.f32.gmra.mrb[0].mxu0 %v938
        %v1099 = vpop.f32.mrb[0].mxu0
        %v1100 = vadd.f32 0.0, %v1099
        %v1101 = vpop.f32.mrb[0].mxu0
        %1102 = vmatprep.mubr.f32.mxu0 0.0
        %1103 = vmatmul.mubr.f32.gmra.mrb[0].mxu0 %v941
        %v1104 = vpop.f32.mrb[0].mxu0
        %v1105 = vadd.f32 0.0, %v1104
        %v1106 = vpop.f32.mrb[0].mxu0
        %1107 = vmatprep.mubr.f32.mxu0 0.0
        %1108 = vmatmul.mubr.f32.gmra.mrb[0].mxu0 %v944
        %v1109 = vpop.f32.mrb[0].mxu0
        %v1110 = vadd.f32 0.0, %v1109
        %v1111 = vpop.f32.mrb[0].mxu0
        %1112 = vmatprep.mubr.f32.mxu0 0.0
        %1113 = vmatmul.mubr.f32.gmra.mrb[0].mxu0 %v947
        %v1114 = vpop.f32.mrb[0].mxu0
        %v1115 = vadd.f32 0.0, %v1114
        %v1116 = vpop.f32.mrb[0].mxu0
        %1117 = vmatprep.mubr.f32.mxu0 0.0
        %1118 = vmatmul.mubr.f32.gmra.mrb[0].mxu0 %v950
        %v1119 = vpop.f32.mrb[0].mxu0
        %v1120 = vadd.f32 0.0, %v1119
        %v1121 = vpop.f32.mrb[0].mxu0
        %1122 = vmatprep.mubr.f32.mxu0 0.0
        %1123 = vmatmul.mubr.f32.gmra.mrb[0].mxu0 %v953
        %v1124 = vpop.f32.mrb[0].mxu0
        %v1125 = vadd.f32 0.0, %v1124
        %v1126 = vpop.f32.mrb[0].mxu0
        %1127 = vmatprep.mubr.f32.mxu0 0.0
        %1128 = vmatmul.mubr.f32.gmra.mrb[0].mxu0 %v956
        %v1129 = vpop.f32.mrb[0].mxu0
        %v1130 = vadd.f32 0.0, %v1129
        %v1131 = vpop.f32.mrb[0].mxu0
        %1132 = vmatprep.mubr.f32.mxu0 0.0
        %1133 = vmatmul.mubr.f32.gmra.mrb[0].mxu0 %v959
        %v1134 = vpop.f32.mrb[0].mxu0
        %v1135 = vadd.f32 0.0, %v1134
        %v1136 = vpop.f32.mrb[0].mxu0
        %1137 = vmatprep.mubr.f32.mxu0 0.0
        %1138 = vmatmul.mubr.f32.gmra.mrb[0].mxu0 %v962
        %v1139 = vpop.f32.mrb[0].mxu0
        %v1140 = vadd.f32 0.0, %v1139
        %v1141 = vpop.f32.mrb[0].mxu0
        %1142 = vmatprep.mubr.f32.mxu0 0.0
        %1143 = vmatmul.mubr.f32.gmra.mrb[0].mxu0 %v965
        %v1144 = vpop.f32.mrb[0].mxu0
        %v1145 = vadd.f32 0.0, %v1144
        %v1146 = vpop.f32.mrb[0].mxu0
        %1147 = vmatprep.mubr.f32.mxu0 0.0
        %1148 = vmatmul.mubr.f32.gmra.mrb[0].mxu0 %v968
        %v1149 = vpop.f32.mrb[0].mxu0
        %v1150 = vadd.f32 0.0, %v1149
        %v1151 = vpop.f32.mrb[0].mxu0
        %1152 = vmatprep.mubr.f32.mxu0 0.0
        %1153 = vmatmul.mubr.f32.gmra.mrb[0].mxu0 %v971
        %v1154 = vpop.f32.mrb[0].mxu0
        %v1155 = vadd.f32 0.0, %v1154
        %v1156 = vpop.f32.mrb[0].mxu0
        %1157 = vmatprep.mubr.f32.mxu0 0.0
        %1158 = vmatmul.mubr.f32.gmra.mrb[0].mxu0 %v974
        %v1159 = vpop.f32.mrb[0].mxu0
        %v1160 = vadd.f32 0.0, %v1159
        %v1161 = vpop.f32.mrb[0].mxu0
        %1162 = vmatprep.mubr.f32.mxu0 0.0
        %1163 = vmatmul.mubr.f32.gmra.mrb[0].mxu0 %v977
        %v1164 = vpop.f32.mrb[0].mxu0
        %v1165 = vadd.f32 0.0, %v1164
        %v1166 = vpop.f32.mrb[0].mxu0
        %1167 = vmatprep.mubr.f32.mxu0 0.0
        %1168 = vmatmul.mubr.f32.gmra.mrb[0].mxu0 %v980
        %v1169 = vpop.f32.mrb[0].mxu0
        %v1170 = vadd.f32 0.0, %v1169
        %v1171 = vpop.f32.mrb[0].mxu0
        %1172 = vmatprep.mubr.f32.mxu0 0.0
        %1173 = vmatmul.mubr.f32.gmra.mrb[0].mxu0 %v983
        %v1174 = vpop.f32.mrb[0].mxu0
        %v1175 = vadd.f32 0.0, %v1174
        %v1176 = vpop.f32.mrb[0].mxu0
        %1177 = vmatprep.mubr.f32.mxu0 0.0
        %1178 = vmatmul.mubr.f32.gmra.mrb[0].mxu0 %v986
        %v1179 = vpop.f32.mrb[0].mxu0
        %v1180 = vadd.f32 0.0, %v1179
        %v1181 = vpop.f32.mrb[0].mxu0
        %1182 = vmatprep.mubr.f32.mxu0 0.0
        %1183 = vmatmul.mubr.f32.gmra.mrb[0].mxu0 %v989
        %v1184 = vpop.f32.mrb[0].mxu0
        %v1185 = vadd.f32 0.0, %v1184
        %v1186 = vpop.f32.mrb[0].mxu0
        %1187 = vmatprep.mubr.f32.mxu0 0.0
        %1188 = vmatmul.mubr.f32.gmra.mrb[0].mxu0 %v992
        %v1189 = vpop.f32.mrb[0].mxu0
        %v1190 = vadd.f32 0.0, %v1189
        %v1191 = vpop.f32.mrb[0].mxu0
        %1192 = vmatprep.mubr.f32.mxu0 0.0
        %1193 = vmatmul.mubr.f32.gmra.mrb[0].mxu0 %v995
        %v1194 = vpop.f32.mrb[0].mxu0
        %v1195 = vadd.f32 0.0, %v1194
        %v1196 = vpop.f32.mrb[0].mxu0
        %1197 = vmatprep.mubr.f32.mxu0 0.0
        %1198 = vmatmul.mubr.f32.gmra.mrb[0].mxu0 %v998
        %v1199 = vpop.f32.mrb[0].mxu0
        %v1200 = vadd.f32 0.0, %v1199
        %v1201 = vpop.f32.mrb[0].mxu0
        %1202 = vmatprep.mubr.f32.mxu0 0.0
        %1203 = vmatmul.mubr.f32.gmra.mrb[0].mxu0 %v1001
        %v1204 = vpop.f32.mrb[0].mxu0
        %v1205 = vadd.f32 0.0, %v1204
        %v1206 = vpop.f32.mrb[0].mxu0
        %1207 = vmatprep.mubr.f32.mxu0 0.0
        %1208 = vmatmul.mubr.f32.gmra.mrb[0].mxu0 %v1004
        %v1209 = vpop.f32.mrb[0].mxu0
        %v1210 = vadd.f32 0.0, %v1209
        %v1211 = vpop.f32.mrb[0].mxu0
        %1212 = vmatprep.mubr.f32.mxu0 0.0
        %1213 = vmatmul.mubr.f32.gmra.mrb[0].mxu0 %v1007
        %v1214 = vpop.f32.mrb[0].mxu0
        %v1215 = vadd.f32 0.0, %v1214
        %v1216 = vpop.f32.mrb[0].mxu0
        %1217 = vmatprep.mubr.f32.mxu0 0.0
        %1218 = vmatmul.mubr.f32.gmra.mrb[0].mxu0 %v1010
        %v1219 = vpop.f32.mrb[0].mxu0
        %v1220 = vadd.f32 0.0, %v1219
        %v1221 = vpop.f32.mrb[0].mxu0
        %1222 = vmatprep.mubr.f32.mxu0 0.0
        %1223 = vmatmul.mubr.f32.gmra.mrb[0].mxu0 %v1013
        %v1224 = vpop.f32.mrb[0].mxu0
        %v1225 = vadd.f32 0.0, %v1224
        %v1226 = vpop.f32.mrb[0].mxu0
        %1227 = vmatprep.mubr.f32.mxu0 0.0
        %1228 = vmatmul.mubr.f32.gmra.mrb[0].mxu0 %v1016
        %v1229 = vpop.f32.mrb[0].mxu0
        %v1230 = vadd.f32 0.0, %v1229
        %v1231 = vpop.f32.mrb[0].mxu0
        %1232 = vmatprep.mubr.f32.mxu0 0.0
        %1233 = vmatmul.mubr.f32.gmra.mrb[0].mxu0 %v1019
        %v1234 = vpop.f32.mrb[0].mxu0
        %v1235 = vadd.f32 0.0, %v1234
        %v1236 = vpop.f32.mrb[0].mxu0
        %1237 = vmatprep.mubr.f32.mxu0 0.0
        %1238 = vmatmul.mubr.f32.gmra.mrb[0].mxu0 %v1022
        %v1239 = vpop.f32.mrb[0].mxu0
        %v1240 = vadd.f32 0.0, %v1239
        %v1241 = vpop.f32.mrb[0].mxu0
        %1242 = vmatprep.mubr.f32.mxu0 0.0
        %1243 = vmatmul.mubr.f32.gmra.mrb[0].mxu0 %v1025
        %v1244 = vpop.f32.mrb[0].mxu0
        %v1245 = vadd.f32 0.0, %v1244
        %v1246 = vpop.f32.mrb[0].mxu0
        %1247 = vmatprep.mubr.f32.mxu0 0.0
        %1248 = vmatmul.mubr.f32.gmra.mrb[0].mxu0 %v1028
        %v1249 = vpop.f32.mrb[0].mxu0
        %v1250 = vadd.f32 0.0, %v1249
        %v1251 = vpop.f32.mrb[0].mxu0
        %1252 = vmatprep.mubr.f32.mxu0 0.0
        %1253 = vmatmul.mubr.f32.gmra.mrb[0].mxu0 %v1031
        %v1254 = vpop.f32.mrb[0].mxu0
        %v1255 = vadd.f32 0.0, %v1254
        %v1256 = vpop.f32.mrb[0].mxu0
        %1257 = vdwg.mxu0
        %v1259 = vsel %vm936, %v875, 0
        %v1262 = vsel %vm936, %v876, 0
        %1264 = vmatprep.subr.mxu0 0.0
        %1265 = vmatpush1.msra.mxu0 %v911
        %1266 = vmatprep.subr.mxu0 0.0
        %1267 = vmatpush1.msra.mxu0 %v912
        %1268 = vmatprep.subr.mxu0 0.0
        %1269 = vmatpush1.msra.mxu0 %v913
        %1270 = vmatprep.subr.mxu0 0.0
        %1271 = vmatpush1.msra.mxu0 %v914
        %1272 = vmatprep.subr.mxu0 0.0
        %1273 = vmatpush1.msra.mxu0 %v915
        %1274 = vmatprep.subr.mxu0 0.0
        %1275 = vmatpush1.msra.mxu0 %v916
        %1276 = vmatprep.subr.mxu0 0.0
        %1277 = vmatpush1.msra.mxu0 %v917
        %1278 = vmatprep.subr.mxu0 0.0
        %1279 = vmatpush1.msra.mxu0 %v918
        %1280 = vmatprep.subr.mxu0 0.0
        %1281 = vmatpush1.msra.mxu0 %v919
        %1282 = vmatprep.subr.mxu0 0.0
        %1283 = vmatpush1.msra.mxu0 %v920
        %1284 = vmatprep.subr.mxu0 0.0
        %1285 = vmatpush1.msra.mxu0 %v921
        %1286 = vmatprep.subr.mxu0 0.0
        %1287 = vmatpush1.msra.mxu0 %v922
        %1288 = vmatprep.subr.mxu0 0.0
        %1289 = vmatpush1.msra.mxu0 0.0
        %1290 = vmatprep.subr.mxu0 0.0
        %1291 = vmatpush1.msra.mxu0 0.0
        %1292 = vmatprep.subr.mxu0 0.0
        %1293 = vmatpush1.msra.mxu0 0.0
        %1294 = vmatprep.subr.mxu0 0.0
        %1295 = vmatpush1.msra.mxu0 0.0
        %1296 = vmatprep.subr.mxu0 0.0
        %1297 = vmatpush1.msra.mxu0 0.0
        %1298 = vmatprep.subr.mxu0 0.0
        %1299 = vmatpush1.msra.mxu0 0.0
        %1300 = vmatprep.subr.mxu0 0.0
        %1301 = vmatpush1.msra.mxu0 0.0
        %1302 = vmatprep.subr.mxu0 0.0
        %1303 = vmatpush1.msra.mxu0 0.0
        %1304 = vmatprep.subr.mxu0 0.0
        %1305 = vmatpush1.msra.mxu0 0.0
        %1306 = vmatprep.subr.mxu0 0.0
        %1307 = vmatpush1.msra.mxu0 0.0
        %1308 = vmatprep.subr.mxu0 0.0
        %1309 = vmatpush1.msra.mxu0 0.0
        %1310 = vmatprep.subr.mxu0 0.0
        %1311 = vmatpush1.msra.mxu0 0.0
        %1312 = vmatprep.subr.mxu0 0.0
        %1313 = vmatpush1.msra.mxu0 0.0
        %1314 = vmatprep.subr.mxu0 0.0
        %1315 = vmatpush1.msra.mxu0 0.0
        %1316 = vmatprep.subr.mxu0 0.0
        %1317 = vmatpush1.msra.mxu0 0.0
        %1318 = vmatprep.subr.mxu0 0.0
        %1319 = vmatpush1.msra.mxu0 0.0
        %1320 = vmatprep.subr.mxu0 0.0
        %1321 = vmatpush1.msra.mxu0 0.0
        %1322 = vmatprep.subr.mxu0 0.0
        %1323 = vmatpush1.msra.mxu0 0.0
        %1324 = vmatprep.subr.mxu0 0.0
        %1325 = vmatpush1.msra.mxu0 0.0
        %1326 = vmatprep.subr.mxu0 0.0
        %1327 = vmatpush1.msra.mxu0 0.0
        %1328 = vmatprep.mubr.f32.mxu0 0.0
        %1329 = vmatmul.mubr.f32.gmra.mrb[0].mxu0 %v1259
        %v1330 = vpop.f32.mrb[0].mxu0
        %v1331 = vadd.f32 %v1100, %v1330
        %v1332 = vpop.f32.mrb[0].mxu0
        %1333 = vmatprep.mubr.f32.mxu0 0.0
        %1334 = vmatmul.mubr.f32.gmra.mrb[0].mxu0 %v1262
        %v1335 = vpop.f32.mrb[0].mxu0
        %v1336 = vadd.f32 %v1105, %v1335
        %v1337 = vpop.f32.mrb[0].mxu0
        %1338 = vmatprep.mubr.f32.mxu0 0.0
        %1339 = vmatmul.mubr.f32.gmra.mrb[0].mxu0 %v938
        %v1340 = vpop.f32.mrb[0].mxu0
        %v1341 = vadd.f32 %v1110, %v1340
        %v1342 = vpop.f32.mrb[0].mxu0
        %1343 = vmatprep.mubr.f32.mxu0 0.0
        %1344 = vmatmul.mubr.f32.gmra.mrb[0].mxu0 %v941
        %v1345 = vpop.f32.mrb[0].mxu0
        %v1346 = vadd.f32 %v1115, %v1345
        %v1347 = vpop.f32.mrb[0].mxu0
        %1348 = vmatprep.mubr.f32.mxu0 0.0
        %1349 = vmatmul.mubr.f32.gmra.mrb[0].mxu0 %v944
        %v1350 = vpop.f32.mrb[0].mxu0
        %v1351 = vadd.f32 %v1120, %v1350
        %v1352 = vpop.f32.mrb[0].mxu0
        %1353 = vmatprep.mubr.f32.mxu0 0.0
        %1354 = vmatmul.mubr.f32.gmra.mrb[0].mxu0 %v947
        %v1355 = vpop.f32.mrb[0].mxu0
        %v1356 = vadd.f32 %v1125, %v1355
        %v1357 = vpop.f32.mrb[0].mxu0
        %1358 = vmatprep.mubr.f32.mxu0 0.0
        %1359 = vmatmul.mubr.f32.gmra.mrb[0].mxu0 %v950
        %v1360 = vpop.f32.mrb[0].mxu0
        %v1361 = vadd.f32 %v1130, %v1360
        %v1362 = vpop.f32.mrb[0].mxu0
        %1363 = vmatprep.mubr.f32.mxu0 0.0
        %1364 = vmatmul.mubr.f32.gmra.mrb[0].mxu0 %v953
        %v1365 = vpop.f32.mrb[0].mxu0
        %v1366 = vadd.f32 %v1135, %v1365
        %v1367 = vpop.f32.mrb[0].mxu0
        %1368 = vmatprep.mubr.f32.mxu0 0.0
        %1369 = vmatmul.mubr.f32.gmra.mrb[0].mxu0 %v956
        %v1370 = vpop.f32.mrb[0].mxu0
        %v1371 = vadd.f32 %v1140, %v1370
        %v1372 = vpop.f32.mrb[0].mxu0
        %1373 = vmatprep.mubr.f32.mxu0 0.0
        %1374 = vmatmul.mubr.f32.gmra.mrb[0].mxu0 %v959
        %v1375 = vpop.f32.mrb[0].mxu0
        %v1376 = vadd.f32 %v1145, %v1375
        %v1377 = vpop.f32.mrb[0].mxu0
        %1378 = vmatprep.mubr.f32.mxu0 0.0
        %1379 = vmatmul.mubr.f32.gmra.mrb[0].mxu0 %v962
        %v1380 = vpop.f32.mrb[0].mxu0
        %v1381 = vadd.f32 %v1150, %v1380
        %v1382 = vpop.f32.mrb[0].mxu0
        %1383 = vmatprep.mubr.f32.mxu0 0.0
        %1384 = vmatmul.mubr.f32.gmra.mrb[0].mxu0 %v965
        %v1385 = vpop.f32.mrb[0].mxu0
        %v1386 = vadd.f32 %v1155, %v1385
        %v1387 = vpop.f32.mrb[0].mxu0
        %1388 = vmatprep.mubr.f32.mxu0 0.0
        %1389 = vmatmul.mubr.f32.gmra.mrb[0].mxu0 %v968
        %v1390 = vpop.f32.mrb[0].mxu0
        %v1391 = vadd.f32 %v1160, %v1390
        %v1392 = vpop.f32.mrb[0].mxu0
        %1393 = vmatprep.mubr.f32.mxu0 0.0
        %1394 = vmatmul.mubr.f32.gmra.mrb[0].mxu0 %v971
        %v1395 = vpop.f32.mrb[0].mxu0
        %v1396 = vadd.f32 %v1165, %v1395
        %v1397 = vpop.f32.mrb[0].mxu0
        %1398 = vmatprep.mubr.f32.mxu0 0.0
        %1399 = vmatmul.mubr.f32.gmra.mrb[0].mxu0 %v974
        %v1400 = vpop.f32.mrb[0].mxu0
        %v1401 = vadd.f32 %v1170, %v1400
        %v1402 = vpop.f32.mrb[0].mxu0
        %1403 = vmatprep.mubr.f32.mxu0 0.0
        %1404 = vmatmul.mubr.f32.gmra.mrb[0].mxu0 %v977
        %v1405 = vpop.f32.mrb[0].mxu0
        %v1406 = vadd.f32 %v1175, %v1405
        %v1407 = vpop.f32.mrb[0].mxu0
        %1408 = vmatprep.mubr.f32.mxu0 0.0
        %1409 = vmatmul.mubr.f32.gmra.mrb[0].mxu0 %v980
        %v1410 = vpop.f32.mrb[0].mxu0
        %v1411 = vadd.f32 %v1180, %v1410
        %v1412 = vpop.f32.mrb[0].mxu0
        %1413 = vmatprep.mubr.f32.mxu0 0.0
        %1414 = vmatmul.mubr.f32.gmra.mrb[0].mxu0 %v983
        %v1415 = vpop.f32.mrb[0].mxu0
        %v1416 = vadd.f32 %v1185, %v1415
        %v1417 = vpop.f32.mrb[0].mxu0
        %1418 = vmatprep.mubr.f32.mxu0 0.0
        %1419 = vmatmul.mubr.f32.gmra.mrb[0].mxu0 %v986
        %v1420 = vpop.f32.mrb[0].mxu0
        %v1421 = vadd.f32 %v1190, %v1420
        %v1422 = vpop.f32.mrb[0].mxu0
        %1423 = vmatprep.mubr.f32.mxu0 0.0
        %1424 = vmatmul.mubr.f32.gmra.mrb[0].mxu0 %v989
        %v1425 = vpop.f32.mrb[0].mxu0
        %v1426 = vadd.f32 %v1195, %v1425
        %v1427 = vpop.f32.mrb[0].mxu0
        %1428 = vmatprep.mubr.f32.mxu0 0.0
        %1429 = vmatmul.mubr.f32.gmra.mrb[0].mxu0 %v992
        %v1430 = vpop.f32.mrb[0].mxu0
        %v1431 = vadd.f32 %v1200, %v1430
        %v1432 = vpop.f32.mrb[0].mxu0
        %1433 = vmatprep.mubr.f32.mxu0 0.0
        %1434 = vmatmul.mubr.f32.gmra.mrb[0].mxu0 %v995
        %v1435 = vpop.f32.mrb[0].mxu0
        %v1436 = vadd.f32 %v1205, %v1435
        %v1437 = vpop.f32.mrb[0].mxu0
        %1438 = vmatprep.mubr.f32.mxu0 0.0
        %1439 = vmatmul.mubr.f32.gmra.mrb[0].mxu0 %v998
        %v1440 = vpop.f32.mrb[0].mxu0
        %v1441 = vadd.f32 %v1210, %v1440
        %v1442 = vpop.f32.mrb[0].mxu0
        %1443 = vmatprep.mubr.f32.mxu0 0.0
        %1444 = vmatmul.mubr.f32.gmra.mrb[0].mxu0 %v1001
        %v1445 = vpop.f32.mrb[0].mxu0
        %v1446 = vadd.f32 %v1215, %v1445
        %v1447 = vpop.f32.mrb[0].mxu0
        %1448 = vmatprep.mubr.f32.mxu0 0.0
        %1449 = vmatmul.mubr.f32.gmra.mrb[0].mxu0 %v1004
        %v1450 = vpop.f32.mrb[0].mxu0
        %v1451 = vadd.f32 %v1220, %v1450
        %v1452 = vpop.f32.mrb[0].mxu0
        %1453 = vmatprep.mubr.f32.mxu0 0.0
        %1454 = vmatmul.mubr.f32.gmra.mrb[0].mxu0 %v1007
        %v1455 = vpop.f32.mrb[0].mxu0
        %v1456 = vadd.f32 %v1225, %v1455
        %v1457 = vpop.f32.mrb[0].mxu0
        %1458 = vmatprep.mubr.f32.mxu0 0.0
        %1459 = vmatmul.mubr.f32.gmra.mrb[0].mxu0 %v1010
        %v1460 = vpop.f32.mrb[0].mxu0
        %v1461 = vadd.f32 %v1230, %v1460
        %v1462 = vpop.f32.mrb[0].mxu0
        %1463 = vmatprep.mubr.f32.mxu0 0.0
        %1464 = vmatmul.mubr.f32.gmra.mrb[0].mxu0 %v1013
        %v1465 = vpop.f32.mrb[0].mxu0
        %v1466 = vadd.f32 %v1235, %v1465
        %v1467 = vpop.f32.mrb[0].mxu0
        %1468 = vmatprep.mubr.f32.mxu0 0.0
        %1469 = vmatmul.mubr.f32.gmra.mrb[0].mxu0 %v1016
        %v1470 = vpop.f32.mrb[0].mxu0
        %v1471 = vadd.f32 %v1240, %v1470
        %v1472 = vpop.f32.mrb[0].mxu0
        %1473 = vmatprep.mubr.f32.mxu0 0.0
        %1474 = vmatmul.mubr.f32.gmra.mrb[0].mxu0 %v1019
        %v1475 = vpop.f32.mrb[0].mxu0
        %v1476 = vadd.f32 %v1245, %v1475
        %v1477 = vpop.f32.mrb[0].mxu0
        %1478 = vmatprep.mubr.f32.mxu0 0.0
        %1479 = vmatmul.mubr.f32.gmra.mrb[0].mxu0 %v1022
        %v1480 = vpop.f32.mrb[0].mxu0
        %v1481 = vadd.f32 %v1250, %v1480
        %v1482 = vpop.f32.mrb[0].mxu0
        %1483 = vmatprep.mubr.f32.mxu0 0.0
        %1484 = vmatmul.mubr.f32.gmra.mrb[0].mxu0 %v1025
        %v1485 = vpop.f32.mrb[0].mxu0
        %v1486 = vadd.f32 %v1255, %v1485
        %v1487 = vpop.f32.mrb[0].mxu0
        %1488 = vdwg.mxu0
        %s1489 = scalar_lea.vmem %s1, 192
        %v1490 = vld [vmem:[%s1489] sm:$0xff]
        %v1491 = vld [vmem:[%s1489 + $0x8] sm:$0xff]
        %v1492 = vld [vmem:[%s1489 + $0x10] sm:$0xff]
        %v1493 = vld [vmem:[%s1489 + $0x18] sm:$0xff]
        %v1494 = vld [vmem:[%s1489 + $0x20] sm:$0xff]
        %v1495 = vld [vmem:[%s1489 + $0x28] sm:$0xff]
        %v1496 = vld [vmem:[%s1489 + $0x30] sm:$0xff]
        %v1497 = vld [vmem:[%s1489 + $0x38] sm:$0xff]
        %v1498 = vld [vmem:[%s1489 + $0x40] sm:$0xff]
        %v1499 = vld [vmem:[%s1489 + $0x48] sm:$0xff]
        %v1500 = vld [vmem:[%s1489 + $0x50] sm:$0xff]
        %v1501 = vld [vmem:[%s1489 + $0x58] sm:$0xff]
        %v1503 = vsel %vm936, %v909, 0
        %v1506 = vsel %vm936, %v910, 0
        %1508 = vmatprep.subr.mxu0 0.0
        %1509 = vmatpush1.msra.mxu0 %v1490
        %1510 = vmatprep.subr.mxu0 0.0
        %1511 = vmatpush1.msra.mxu0 %v1491
        %1512 = vmatprep.subr.mxu0 0.0
        %1513 = vmatpush1.msra.mxu0 %v1492
        %1514 = vmatprep.subr.mxu0 0.0
        %1515 = vmatpush1.msra.mxu0 %v1493
        %1516 = vmatprep.subr.mxu0 0.0
        %1517 = vmatpush1.msra.mxu0 %v1494
        %1518 = vmatprep.subr.mxu0 0.0
        %1519 = vmatpush1.msra.mxu0 %v1495
        %1520 = vmatprep.subr.mxu0 0.0
        %1521 = vmatpush1.msra.mxu0 %v1496
        %1522 = vmatprep.subr.mxu0 0.0
        %1523 = vmatpush1.msra.mxu0 %v1497
        %1524 = vmatprep.subr.mxu0 0.0
        %1525 = vmatpush1.msra.mxu0 %v1498
        %1526 = vmatprep.subr.mxu0 0.0
        %1527 = vmatpush1.msra.mxu0 %v1499
        %1528 = vmatprep.subr.mxu0 0.0
        %1529 = vmatpush1.msra.mxu0 %v1500
        %1530 = vmatprep.subr.mxu0 0.0
        %1531 = vmatpush1.msra.mxu0 %v1501
        %1532 = vmatprep.subr.mxu0 0.0
        %1533 = vmatpush1.msra.mxu0 0.0
        %1534 = vmatprep.subr.mxu0 0.0
        %1535 = vmatpush1.msra.mxu0 0.0
        %1536 = vmatprep.subr.mxu0 0.0
        %1537 = vmatpush1.msra.mxu0 0.0
        %1538 = vmatprep.subr.mxu0 0.0
        %1539 = vmatpush1.msra.mxu0 0.0
        %1540 = vmatprep.subr.mxu0 0.0
        %1541 = vmatpush1.msra.mxu0 0.0
        %1542 = vmatprep.subr.mxu0 0.0
        %1543 = vmatpush1.msra.mxu0 0.0
        %1544 = vmatprep.subr.mxu0 0.0
        %1545 = vmatpush1.msra.mxu0 0.0
        %1546 = vmatprep.subr.mxu0 0.0
        %1547 = vmatpush1.msra.mxu0 0.0
        %1548 = vmatprep.subr.mxu0 0.0
        %1549 = vmatpush1.msra.mxu0 0.0
        %1550 = vmatprep.subr.mxu0 0.0
        %1551 = vmatpush1.msra.mxu0 0.0
        %1552 = vmatprep.subr.mxu0 0.0
        %1553 = vmatpush1.msra.mxu0 0.0
        %1554 = vmatprep.subr.mxu0 0.0
        %1555 = vmatpush1.msra.mxu0 0.0
        %1556 = vmatprep.subr.mxu0 0.0
        %1557 = vmatpush1.msra.mxu0 0.0
        %1558 = vmatprep.subr.mxu0 0.0
        %1559 = vmatpush1.msra.mxu0 0.0
        %1560 = vmatprep.subr.mxu0 0.0
        %1561 = vmatpush1.msra.mxu0 0.0
        %1562 = vmatprep.subr.mxu0 0.0
        %1563 = vmatpush1.msra.mxu0 0.0
        %1564 = vmatprep.subr.mxu0 0.0
        %1565 = vmatpush1.msra.mxu0 0.0
        %1566 = vmatprep.subr.mxu0 0.0
        %1567 = vmatpush1.msra.mxu0 0.0
        %1568 = vmatprep.subr.mxu0 0.0
        %1569 = vmatpush1.msra.mxu0 0.0
        %1570 = vmatprep.subr.mxu0 0.0
        %1571 = vmatpush1.msra.mxu0 0.0
        %1572 = vmatprep.mubr.f32.mxu0 0.0
        %1573 = vmatmul.mubr.f32.gmra.mrb[0].mxu0 %v944
        %v1574 = vpop.f32.mrb[0].mxu0
        %v1575 = vadd.f32 0.0, %v1574
        %v1576 = vpop.f32.mrb[0].mxu0
        %1577 = vmatprep.mubr.f32.mxu0 0.0
        %1578 = vmatmul.mubr.f32.gmra.mrb[0].mxu0 %v947
        %v1579 = vpop.f32.mrb[0].mxu0
        %v1580 = vadd.f32 0.0, %v1579
        %v1581 = vpop.f32.mrb[0].mxu0
        %1582 = vmatprep.mubr.f32.mxu0 0.0
        %1583 = vmatmul.mubr.f32.gmra.mrb[0].mxu0 %v950
        %v1584 = vpop.f32.mrb[0].mxu0
        %v1585 = vadd.f32 0.0, %v1584
        %v1586 = vpop.f32.mrb[0].mxu0
        %1587 = vmatprep.mubr.f32.mxu0 0.0
        %1588 = vmatmul.mubr.f32.gmra.mrb[0].mxu0 %v953
        %v1589 = vpop.f32.mrb[0].mxu0
        %v1590 = vadd.f32 0.0, %v1589
        %v1591 = vpop.f32.mrb[0].mxu0
        %1592 = vmatprep.mubr.f32.mxu0 0.0
        %1593 = vmatmul.mubr.f32.gmra.mrb[0].mxu0 %v956
        %v1594 = vpop.f32.mrb[0].mxu0
        %v1595 = vadd.f32 0.0, %v1594
        %v1596 = vpop.f32.mrb[0].mxu0
        %1597 = vmatprep.mubr.f32.mxu0 0.0
        %1598 = vmatmul.mubr.f32.gmra.mrb[0].mxu0 %v959
        %v1599 = vpop.f32.mrb[0].mxu0
        %v1600 = vadd.f32 0.0, %v1599
        %v1601 = vpop.f32.mrb[0].mxu0
        %1602 = vmatprep.mubr.f32.mxu0 0.0
        %1603 = vmatmul.mubr.f32.gmra.mrb[0].mxu0 %v962
        %v1604 = vpop.f32.mrb[0].mxu0
        %v1605 = vadd.f32 0.0, %v1604
        %v1606 = vpop.f32.mrb[0].mxu0
        %1607 = vmatprep.mubr.f32.mxu0 0.0
        %1608 = vmatmul.mubr.f32.gmra.mrb[0].mxu0 %v965
        %v1609 = vpop.f32.mrb[0].mxu0
        %v1610 = vadd.f32 0.0, %v1609
        %v1611 = vpop.f32.mrb[0].mxu0
        %1612 = vmatprep.mubr.f32.mxu0 0.0
        %1613 = vmatmul.mubr.f32.gmra.mrb[0].mxu0 %v968
        %v1614 = vpop.f32.mrb[0].mxu0
        %v1615 = vadd.f32 0.0, %v1614
        %v1616 = vpop.f32.mrb[0].mxu0
        %1617 = vmatprep.mubr.f32.mxu0 0.0
        %1618 = vmatmul.mubr.f32.gmra.mrb[0].mxu0 %v971
        %v1619 = vpop.f32.mrb[0].mxu0
        %v1620 = vadd.f32 0.0, %v1619
        %v1621 = vpop.f32.mrb[0].mxu0
        %1622 = vmatprep.mubr.f32.mxu0 0.0
        %1623 = vmatmul.mubr.f32.gmra.mrb[0].mxu0 %v974
        %v1624 = vpop.f32.mrb[0].mxu0
        %v1625 = vadd.f32 0.0, %v1624
        %v1626 = vpop.f32.mrb[0].mxu0
        %1627 = vmatprep.mubr.f32.mxu0 0.0
        %1628 = vmatmul.mubr.f32.gmra.mrb[0].mxu0 %v977
        %v1629 = vpop.f32.mrb[0].mxu0
        %v1630 = vadd.f32 0.0, %v1629
        %v1631 = vpop.f32.mrb[0].mxu0
        %1632 = vmatprep.mubr.f32.mxu0 0.0
        %1633 = vmatmul.mubr.f32.gmra.mrb[0].mxu0 %v980
        %v1634 = vpop.f32.mrb[0].mxu0
        %v1635 = vadd.f32 0.0, %v1634
        %v1636 = vpop.f32.mrb[0].mxu0
        %1637 = vmatprep.mubr.f32.mxu0 0.0
        %1638 = vmatmul.mubr.f32.gmra.mrb[0].mxu0 %v983
        %v1639 = vpop.f32.mrb[0].mxu0
        %v1640 = vadd.f32 0.0, %v1639
        %v1641 = vpop.f32.mrb[0].mxu0
        %1642 = vmatprep.mubr.f32.mxu0 0.0
        %1643 = vmatmul.mubr.f32.gmra.mrb[0].mxu0 %v986
        %v1644 = vpop.f32.mrb[0].mxu0
        %v1645 = vadd.f32 0.0, %v1644
        %v1646 = vpop.f32.mrb[0].mxu0
        %1647 = vmatprep.mubr.f32.mxu0 0.0
        %1648 = vmatmul.mubr.f32.gmra.mrb[0].mxu0 %v989
        %v1649 = vpop.f32.mrb[0].mxu0
        %v1650 = vadd.f32 0.0, %v1649
        %v1651 = vpop.f32.mrb[0].mxu0
        %1652 = vmatprep.mubr.f32.mxu0 0.0
        %1653 = vmatmul.mubr.f32.gmra.mrb[0].mxu0 %v992
        %v1654 = vpop.f32.mrb[0].mxu0
        %v1655 = vadd.f32 0.0, %v1654
        %v1656 = vpop.f32.mrb[0].mxu0
        %1657 = vmatprep.mubr.f32.mxu0 0.0
        %1658 = vmatmul.mubr.f32.gmra.mrb[0].mxu0 %v995
        %v1659 = vpop.f32.mrb[0].mxu0
        %v1660 = vadd.f32 0.0, %v1659
        %v1661 = vpop.f32.mrb[0].mxu0
        %1662 = vmatprep.mubr.f32.mxu0 0.0
        %1663 = vmatmul.mubr.f32.gmra.mrb[0].mxu0 %v998
        %v1664 = vpop.f32.mrb[0].mxu0
        %v1665 = vadd.f32 0.0, %v1664
        %v1666 = vpop.f32.mrb[0].mxu0
        %1667 = vmatprep.mubr.f32.mxu0 0.0
        %1668 = vmatmul.mubr.f32.gmra.mrb[0].mxu0 %v1001
        %v1669 = vpop.f32.mrb[0].mxu0
        %v1670 = vadd.f32 0.0, %v1669
        %v1671 = vpop.f32.mrb[0].mxu0
        %1672 = vmatprep.mubr.f32.mxu0 0.0
        %1673 = vmatmul.mubr.f32.gmra.mrb[0].mxu0 %v1004
        %v1674 = vpop.f32.mrb[0].mxu0
        %v1675 = vadd.f32 0.0, %v1674
        %v1676 = vpop.f32.mrb[0].mxu0
        %1677 = vmatprep.mubr.f32.mxu0 0.0
        %1678 = vmatmul.mubr.f32.gmra.mrb[0].mxu0 %v1007
        %v1679 = vpop.f32.mrb[0].mxu0
        %v1680 = vadd.f32 0.0, %v1679
        %v1681 = vpop.f32.mrb[0].mxu0
        %1682 = vmatprep.mubr.f32.mxu0 0.0
        %1683 = vmatmul.mubr.f32.gmra.mrb[0].mxu0 %v1010
        %v1684 = vpop.f32.mrb[0].mxu0
        %v1685 = vadd.f32 0.0, %v1684
        %v1686 = vpop.f32.mrb[0].mxu0
        %1687 = vmatprep.mubr.f32.mxu0 0.0
        %1688 = vmatmul.mubr.f32.gmra.mrb[0].mxu0 %v1013
        %v1689 = vpop.f32.mrb[0].mxu0
        %v1690 = vadd.f32 0.0, %v1689
        %v1691 = vpop.f32.mrb[0].mxu0
        %1692 = vmatprep.mubr.f32.mxu0 0.0
        %1693 = vmatmul.mubr.f32.gmra.mrb[0].mxu0 %v1016
        %v1694 = vpop.f32.mrb[0].mxu0
        %v1695 = vadd.f32 0.0, %v1694
        %v1696 = vpop.f32.mrb[0].mxu0
        %1697 = vmatprep.mubr.f32.mxu0 0.0
        %1698 = vmatmul.mubr.f32.gmra.mrb[0].mxu0 %v1019
        %v1699 = vpop.f32.mrb[0].mxu0
        %v1700 = vadd.f32 0.0, %v1699
        %v1701 = vpop.f32.mrb[0].mxu0
        %1702 = vmatprep.mubr.f32.mxu0 0.0
        %1703 = vmatmul.mubr.f32.gmra.mrb[0].mxu0 %v1022
        %v1704 = vpop.f32.mrb[0].mxu0
        %v1705 = vadd.f32 0.0, %v1704
        %v1706 = vpop.f32.mrb[0].mxu0
        %1707 = vmatprep.mubr.f32.mxu0 0.0
        %1708 = vmatmul.mubr.f32.gmra.mrb[0].mxu0 %v1025
        %v1709 = vpop.f32.mrb[0].mxu0
        %v1710 = vadd.f32 0.0, %v1709
        %v1711 = vpop.f32.mrb[0].mxu0
        %1712 = vmatprep.mubr.f32.mxu0 0.0
        %1713 = vmatmul.mubr.f32.gmra.mrb[0].mxu0 %v1028
        %v1714 = vpop.f32.mrb[0].mxu0
        %v1715 = vadd.f32 0.0, %v1714
        %v1716 = vpop.f32.mrb[0].mxu0
        %1717 = vmatprep.mubr.f32.mxu0 0.0
        %1718 = vmatmul.mubr.f32.gmra.mrb[0].mxu0 %v1031
        %v1719 = vpop.f32.mrb[0].mxu0
        %v1720 = vadd.f32 0.0, %v1719
        %v1721 = vpop.f32.mrb[0].mxu0
        %1722 = vmatprep.mubr.f32.mxu0 0.0
        %1723 = vmatmul.mubr.f32.gmra.mrb[0].mxu0 %v1503
        %v1724 = vpop.f32.mrb[0].mxu0
        %v1725 = vadd.f32 0.0, %v1724
        %v1726 = vpop.f32.mrb[0].mxu0
        %1727 = vmatprep.mubr.f32.mxu0 0.0
        %1728 = vmatmul.mubr.f32.gmra.mrb[0].mxu0 %v1506
        %v1729 = vpop.f32.mrb[0].mxu0
        %v1730 = vadd.f32 0.0, %v1729
        %v1731 = vpop.f32.mrb[0].mxu0
        %1732 = vdwg.mxu0
        %v1733 = vadd.f32 %v1331, %v1575
        %v1734 = vadd.f32 %v1336, %v1580
        %v1735 = vadd.f32 %v1341, %v1585
        %v1736 = vadd.f32 %v1346, %v1590
        %v1737 = vadd.f32 %v1351, %v1595
        %v1738 = vadd.f32 %v1356, %v1600
        %v1739 = vadd.f32 %v1361, %v1605
        %v1740 = vadd.f32 %v1366, %v1610
        %v1741 = vadd.f32 %v1371, %v1615
        %v1742 = vadd.f32 %v1376, %v1620
        %v1743 = vadd.f32 %v1381, %v1625
        %v1744 = vadd.f32 %v1386, %v1630
        %v1745 = vadd.f32 %v1391, %v1635
        %v1746 = vadd.f32 %v1396, %v1640
        %v1747 = vadd.f32 %v1401, %v1645
        %v1748 = vadd.f32 %v1406, %v1650
        %v1749 = vadd.f32 %v1411, %v1655
        %v1750 = vadd.f32 %v1416, %v1660
        %v1751 = vadd.f32 %v1421, %v1665
        %v1752 = vadd.f32 %v1426, %v1670
        %v1753 = vadd.f32 %v1431, %v1675
        %v1754 = vadd.f32 %v1436, %v1680
        %v1755 = vadd.f32 %v1441, %v1685
        %v1756 = vadd.f32 %v1446, %v1690
        %v1757 = vadd.f32 %v1451, %v1695
        %v1758 = vadd.f32 %v1456, %v1700
        %v1759 = vadd.f32 %v1461, %v1705
        %v1760 = vadd.f32 %v1466, %v1710
        %v1761 = vadd.f32 %v1471, %v1715
        %v1762 = vadd.f32 %v1476, %v1720
        %v1763 = vadd.f32 %v1481, %v1725
        %v1764 = vadd.f32 %v1486, %v1730
        %v1765 = vld [vmem:[%s2] sm:$0x1]
        %v1767 = vlaneseq
        %v1768 = vshrl.u32 %v1767, 7
        %v1769 = vsub.s32 0, %v1768
        %v1770 = vrot.slane %v1765, %v1769
        %v1772 = vadd.f32 %v1733, %v1770
        %v1773 = vadd.f32 %v1734, %v1770
        %v1774 = vadd.f32 %v1735, %v1770
        %v1775 = vadd.f32 %v1736, %v1770
        %v1776 = vadd.f32 %v1737, %v1770
        %v1777 = vadd.f32 %v1738, %v1770
        %v1778 = vadd.f32 %v1739, %v1770
        %v1779 = vadd.f32 %v1740, %v1770
        %v1780 = vadd.f32 %v1741, %v1770
        %v1781 = vadd.f32 %v1742, %v1770
        %v1782 = vadd.f32 %v1743, %v1770
        %v1783 = vadd.f32 %v1744, %v1770
        %v1784 = vadd.f32 %v1745, %v1770
        %v1785 = vadd.f32 %v1746, %v1770
        %v1786 = vadd.f32 %v1747, %v1770
        %v1787 = vadd.f32 %v1748, %v1770
        %v1788 = vadd.f32 %v1749, %v1770
        %v1789 = vadd.f32 %v1750, %v1770
        %v1790 = vadd.f32 %v1751, %v1770
        %v1791 = vadd.f32 %v1752, %v1770
        %v1792 = vadd.f32 %v1753, %v1770
        %v1793 = vadd.f32 %v1754, %v1770
        %v1794 = vadd.f32 %v1755, %v1770
        %v1795 = vadd.f32 %v1756, %v1770
        %v1796 = vadd.f32 %v1757, %v1770
        %v1797 = vadd.f32 %v1758, %v1770
        %v1798 = vadd.f32 %v1759, %v1770
        %v1799 = vadd.f32 %v1760, %v1770
        %v1800 = vadd.f32 %v1761, %v1770
        %v1801 = vadd.f32 %v1762, %v1770
        %v1802 = vadd.f32 %v1763, %v1770
        %v1803 = vadd.f32 %v1764, %v1770
        %v1804 = vmax.f32 %v1772, 0.0
        %v1805 = vmax.f32 %v1773, 0.0
        %v1806 = vmax.f32 %v1774, 0.0
        %v1807 = vmax.f32 %v1775, 0.0
        %v1808 = vmax.f32 %v1776, 0.0
        %v1809 = vmax.f32 %v1777, 0.0
        %v1810 = vmax.f32 %v1778, 0.0
        %v1811 = vmax.f32 %v1779, 0.0
        %v1812 = vmax.f32 %v1780, 0.0
        %v1813 = vmax.f32 %v1781, 0.0
        %v1814 = vmax.f32 %v1782, 0.0
        %v1815 = vmax.f32 %v1783, 0.0
        %v1816 = vmax.f32 %v1784, 0.0
        %v1817 = vmax.f32 %v1785, 0.0
        %v1818 = vmax.f32 %v1786, 0.0
        %v1819 = vmax.f32 %v1787, 0.0
        %v1820 = vmax.f32 %v1788, 0.0
        %v1821 = vmax.f32 %v1789, 0.0
        %v1822 = vmax.f32 %v1790, 0.0
        %v1823 = vmax.f32 %v1791, 0.0
        %v1824 = vmax.f32 %v1792, 0.0
        %v1825 = vmax.f32 %v1793, 0.0
        %v1826 = vmax.f32 %v1794, 0.0
        %v1827 = vmax.f32 %v1795, 0.0
        %v1828 = vmax.f32 %v1796, 0.0
        %v1829 = vmax.f32 %v1797, 0.0
        %v1830 = vmax.f32 %v1798, 0.0
        %v1831 = vmax.f32 %v1799, 0.0
        %v1832 = vmax.f32 %v1800, 0.0
        %v1833 = vmax.f32 %v1801, 0.0
        %v1834 = vmax.f32 %v1802, 0.0
        %v1835 = vmax.f32 %v1803, 0.0
        %1836 = vst.msk [vmem:[%s409 + $0x8] sm:$0xff] %vm331, %v1804
        %1837 = vst.msk [vmem:[%s409 + $0x10] sm:$0xff] %vm331, %v1805
        %1838 = vst.msk [vmem:[%s409 + $0x28] sm:$0xff] %vm331, %v1806
        %1839 = vst.msk [vmem:[%s409 + $0x30] sm:$0xff] %vm331, %v1807
        %1840 = vst.msk [vmem:[%s409 + $0x48] sm:$0xff] %vm331, %v1808
        %1841 = vst.msk [vmem:[%s409 + $0x50] sm:$0xff] %vm331, %v1809
        %1842 = vst.msk [vmem:[%s409 + $0x68] sm:$0xff] %vm331, %v1810
        %1843 = vst.msk [vmem:[%s409 + $0x70] sm:$0xff] %vm331, %v1811
        %1844 = vst.msk [vmem:[%s409 + $0x88] sm:$0xff] %vm331, %v1812
        %1845 = vst.msk [vmem:[%s409 + $0x90] sm:$0xff] %vm331, %v1813
        %1846 = vst.msk [vmem:[%s409 + $0xa8] sm:$0xff] %vm331, %v1814
        %1847 = vst.msk [vmem:[%s409 + $0xb0] sm:$0xff] %vm331, %v1815
        %1848 = vst.msk [vmem:[%s409 + $0xc8] sm:$0xff] %vm331, %v1816
        %1849 = vst.msk [vmem:[%s409 + $0xd0] sm:$0xff] %vm331, %v1817
        %1850 = vst.msk [vmem:[%s409 + $0xe8] sm:$0xff] %vm331, %v1818
        %1851 = vst.msk [vmem:[%s409 + $0xf0] sm:$0xff] %vm331, %v1819
        %1852 = vst.msk [vmem:[%s409 + $0x108] sm:$0xff] %vm331, %v1820
        %1853 = vst.msk [vmem:[%s409 + $0x110] sm:$0xff] %vm331, %v1821
        %1854 = vst.msk [vmem:[%s409 + $0x128] sm:$0xff] %vm331, %v1822
        %1855 = vst.msk [vmem:[%s409 + $0x130] sm:$0xff] %vm331, %v1823
        %1856 = vst.msk [vmem:[%s409 + $0x148] sm:$0xff] %vm331, %v1824
        %1857 = vst.msk [vmem:[%s409 + $0x150] sm:$0xff] %vm331, %v1825
        %1858 = vst.msk [vmem:[%s409 + $0x168] sm:$0xff] %vm331, %v1826
        %1859 = vst.msk [vmem:[%s409 + $0x170] sm:$0xff] %vm331, %v1827
        %1860 = vst.msk [vmem:[%s409 + $0x188] sm:$0xff] %vm331, %v1828
        %1861 = vst.msk [vmem:[%s409 + $0x190] sm:$0xff] %vm331, %v1829
        %1862 = vst.msk [vmem:[%s409 + $0x1a8] sm:$0xff] %vm331, %v1830
        %1863 = vst.msk [vmem:[%s409 + $0x1b0] sm:$0xff] %vm331, %v1831
        %1864 = vst.msk [vmem:[%s409 + $0x1c8] sm:$0xff] %vm331, %v1832
        %1865 = vst.msk [vmem:[%s409 + $0x1d0] sm:$0xff] %vm331, %v1833
        %1866 = vst.msk [vmem:[%s409 + $0x1e8] sm:$0xff] %vm331, %v1834
        %1867 = vst.msk [vmem:[%s409 + $0x1f0] sm:$0xff] %vm331, %v1835
        %v1868 = vld [vmem:[#allocation2 + $0x7] sm:$0xff]
        %v1869 = vld [vmem:[#allocation2 + $0xf] sm:$0xff]
        %v1870 = vld [vmem:[#allocation2 + $0x27] sm:$0xff]
        %v1871 = vld [vmem:[#allocation2 + $0x2f] sm:$0xff]
        %v1872 = vld [vmem:[#allocation2 + $0x47] sm:$0xff]
        %v1873 = vld [vmem:[#allocation2 + $0x4f] sm:$0xff]
        %v1874 = vld [vmem:[#allocation2 + $0x67] sm:$0xff]
        %v1875 = vld [vmem:[#allocation2 + $0x6f] sm:$0xff]
        %v1876 = vld [vmem:[#allocation2 + $0x87] sm:$0xff]
        %v1877 = vld [vmem:[#allocation2 + $0x8f] sm:$0xff]
        %v1878 = vld [vmem:[#allocation2 + $0xa7] sm:$0xff]
        %v1879 = vld [vmem:[#allocation2 + $0xaf] sm:$0xff]
        %v1880 = vld [vmem:[#allocation2 + $0xc7] sm:$0xff]
        %v1881 = vld [vmem:[#allocation2 + $0xcf] sm:$0xff]
        %v1882 = vld [vmem:[#allocation2 + $0xe7] sm:$0xff]
        %v1883 = vld [vmem:[#allocation2 + $0xef] sm:$0xff]
        %v1884 = vld [vmem:[#allocation2 + $0x107] sm:$0xff]
        %v1885 = vld [vmem:[#allocation2 + $0x10f] sm:$0xff]
        %v1886 = vld [vmem:[#allocation2 + $0x127] sm:$0xff]
        %v1887 = vld [vmem:[#allocation2 + $0x12f] sm:$0xff]
        %v1888 = vld [vmem:[#allocation2 + $0x147] sm:$0xff]
        %v1889 = vld [vmem:[#allocation2 + $0x14f] sm:$0xff]
        %v1890 = vld [vmem:[#allocation2 + $0x167] sm:$0xff]
        %v1891 = vld [vmem:[#allocation2 + $0x16f] sm:$0xff]
        %v1892 = vld [vmem:[#allocation2 + $0x187] sm:$0xff]
        %v1893 = vld [vmem:[#allocation2 + $0x18f] sm:$0xff]
        %v1894 = vld [vmem:[#allocation2 + $0x1a7] sm:$0xff]
        %v1895 = vld [vmem:[#allocation2 + $0x1af] sm:$0xff]
        %v1896 = vld [vmem:[#allocation2 + $0x1c7] sm:$0xff]
        %v1897 = vld [vmem:[#allocation2 + $0x1cf] sm:$0xff]
        %v1898 = vld [vmem:[#allocation2 + $0x1e7] sm:$0xff]
        %v1899 = vld [vmem:[#allocation2 + $0x1ef] sm:$0xff]
        %v1900 = vld [vmem:[#allocation2 + $0x207] sm:$0xff]
        %v1901 = vld [vmem:[#allocation2 + $0x20f] sm:$0xff]
        %v1902 = vld [vmem:[#allocation2 + $0x227] sm:$0xff]
        %v1903 = vld [vmem:[#allocation2 + $0x22f] sm:$0xff]
        %v1904 = vld [vmem:[#allocation2 + $0x8] sm:$0xff]
        %v1905 = vld [vmem:[#allocation2 + $0x10] sm:$0xff]
        %v1906 = vld [vmem:[#allocation2 + $0x28] sm:$0xff]
        %v1907 = vld [vmem:[#allocation2 + $0x30] sm:$0xff]
        %v1908 = vld [vmem:[#allocation2 + $0x48] sm:$0xff]
        %v1909 = vld [vmem:[#allocation2 + $0x50] sm:$0xff]
        %v1910 = vld [vmem:[#allocation2 + $0x68] sm:$0xff]
        %v1911 = vld [vmem:[#allocation2 + $0x70] sm:$0xff]
        %v1912 = vld [vmem:[#allocation2 + $0x88] sm:$0xff]
        %v1913 = vld [vmem:[#allocation2 + $0x90] sm:$0xff]
        %v1914 = vld [vmem:[#allocation2 + $0xa8] sm:$0xff]
        %v1915 = vld [vmem:[#allocation2 + $0xb0] sm:$0xff]
        %v1916 = vld [vmem:[#allocation2 + $0xc8] sm:$0xff]
        %v1917 = vld [vmem:[#allocation2 + $0xd0] sm:$0xff]
        %v1918 = vld [vmem:[#allocation2 + $0xe8] sm:$0xff]
        %v1919 = vld [vmem:[#allocation2 + $0xf0] sm:$0xff]
        %v1920 = vld [vmem:[#allocation2 + $0x108] sm:$0xff]
        %v1921 = vld [vmem:[#allocation2 + $0x110] sm:$0xff]
        %v1922 = vld [vmem:[#allocation2 + $0x128] sm:$0xff]
        %v1923 = vld [vmem:[#allocation2 + $0x130] sm:$0xff]
        %v1924 = vld [vmem:[#allocation2 + $0x148] sm:$0xff]
        %v1925 = vld [vmem:[#allocation2 + $0x150] sm:$0xff]
        %v1926 = vld [vmem:[#allocation2 + $0x168] sm:$0xff]
        %v1927 = vld [vmem:[#allocation2 + $0x170] sm:$0xff]
        %v1928 = vld [vmem:[#allocation2 + $0x188] sm:$0xff]
        %v1929 = vld [vmem:[#allocation2 + $0x190] sm:$0xff]
        %v1930 = vld [vmem:[#allocation2 + $0x1a8] sm:$0xff]
        %v1931 = vld [vmem:[#allocation2 + $0x1b0] sm:$0xff]
        %v1932 = vld [vmem:[#allocation2 + $0x1c8] sm:$0xff]
        %v1933 = vld [vmem:[#allocation2 + $0x1d0] sm:$0xff]
        %v1934 = vld [vmem:[#allocation2 + $0x1e8] sm:$0xff]
        %v1935 = vld [vmem:[#allocation2 + $0x1f0] sm:$0xff]
        %v1936 = vld [vmem:[#allocation2 + $0x208] sm:$0xff]
        %v1937 = vld [vmem:[#allocation2 + $0x210] sm:$0xff]
        %v1938 = vld [vmem:[#allocation2 + $0x228] sm:$0xff]
        %v1939 = vld [vmem:[#allocation2 + $0x230] sm:$0xff]
        %v1940 = vld [vmem:[#allocation2 + $0x9] sm:$0xff]
        %v1941 = vld [vmem:[#allocation2 + $0x11] sm:$0xff]
        %v1942 = vld [vmem:[#allocation2 + $0x29] sm:$0xff]
        %v1943 = vld [vmem:[#allocation2 + $0x31] sm:$0xff]
        %v1944 = vld [vmem:[#allocation2 + $0x49] sm:$0xff]
        %v1945 = vld [vmem:[#allocation2 + $0x51] sm:$0xff]
        %v1946 = vld [vmem:[#allocation2 + $0x69] sm:$0xff]
        %v1947 = vld [vmem:[#allocation2 + $0x71] sm:$0xff]
        %v1948 = vld [vmem:[#allocation2 + $0x89] sm:$0xff]
        %v1949 = vld [vmem:[#allocation2 + $0x91] sm:$0xff]
        %v1950 = vld [vmem:[#allocation2 + $0xa9] sm:$0xff]
        %v1951 = vld [vmem:[#allocation2 + $0xb1] sm:$0xff]
        %v1952 = vld [vmem:[#allocation2 + $0xc9] sm:$0xff]
        %v1953 = vld [vmem:[#allocation2 + $0xd1] sm:$0xff]
        %v1954 = vld [vmem:[#allocation2 + $0xe9] sm:$0xff]
        %v1955 = vld [vmem:[#allocation2 + $0xf1] sm:$0xff]
        %v1956 = vld [vmem:[#allocation2 + $0x109] sm:$0xff]
        %v1957 = vld [vmem:[#allocation2 + $0x111] sm:$0xff]
        %v1958 = vld [vmem:[#allocation2 + $0x129] sm:$0xff]
        %v1959 = vld [vmem:[#allocation2 + $0x131] sm:$0xff]
        %v1960 = vld [vmem:[#allocation2 + $0x149] sm:$0xff]
        %v1961 = vld [vmem:[#allocation2 + $0x151] sm:$0xff]
        %v1962 = vld [vmem:[#allocation2 + $0x169] sm:$0xff]
        %v1963 = vld [vmem:[#allocation2 + $0x171] sm:$0xff]
        %v1964 = vld [vmem:[#allocation2 + $0x189] sm:$0xff]
        %v1965 = vld [vmem:[#allocation2 + $0x191] sm:$0xff]
        %v1966 = vld [vmem:[#allocation2 + $0x1a9] sm:$0xff]
        %v1967 = vld [vmem:[#allocation2 + $0x1b1] sm:$0xff]
        %v1968 = vld [vmem:[#allocation2 + $0x1c9] sm:$0xff]
        %v1969 = vld [vmem:[#allocation2 + $0x1d1] sm:$0xff]
        %v1970 = vld [vmem:[#allocation2 + $0x1e9] sm:$0xff]
        %v1971 = vld [vmem:[#allocation2 + $0x1f1] sm:$0xff]
        %v1972 = vld [vmem:[#allocation2 + $0x209] sm:$0xff]
        %v1973 = vld [vmem:[#allocation2 + $0x211] sm:$0xff]
        %v1974 = vld [vmem:[#allocation2 + $0x229] sm:$0xff]
        %v1975 = vld [vmem:[#allocation2 + $0x231] sm:$0xff]
        %2012 = vrot.lane.b32.xlu0 %v1904, 32
        %v2013 = vpop.permute.xlu0 %2012
        %2014 = vrot.lane.b32.xlu0 %v1905, 32
        %v2015 = vpop.permute.xlu0 %2014
        %2016 = vrot.lane.b32.xlu0 %v1906, 32
        %v2017 = vpop.permute.xlu0 %2016
        %2018 = vrot.lane.b32.xlu0 %v1907, 32
        %v2019 = vpop.permute.xlu0 %2018
        %2020 = vrot.lane.b32.xlu0 %v1908, 32
        %v2021 = vpop.permute.xlu0 %2020
        %2022 = vrot.lane.b32.xlu0 %v1909, 32
        %v2023 = vpop.permute.xlu0 %2022
        %2024 = vrot.lane.b32.xlu0 %v1910, 32
        %v2025 = vpop.permute.xlu0 %2024
        %2026 = vrot.lane.b32.xlu0 %v1911, 32
        %v2027 = vpop.permute.xlu0 %2026
        %2028 = vrot.lane.b32.xlu0 %v1912, 32
        %v2029 = vpop.permute.xlu0 %2028
        %2030 = vrot.lane.b32.xlu0 %v1913, 32
        %v2031 = vpop.permute.xlu0 %2030
        %2032 = vrot.lane.b32.xlu0 %v1914, 32
        %v2033 = vpop.permute.xlu0 %2032
        %2034 = vrot.lane.b32.xlu0 %v1915, 32
        %v2035 = vpop.permute.xlu0 %2034
        %2036 = vrot.lane.b32.xlu0 %v1916, 32
        %v2037 = vpop.permute.xlu0 %2036
        %2038 = vrot.lane.b32.xlu0 %v1917, 32
        %v2039 = vpop.permute.xlu0 %2038
        %2040 = vrot.lane.b32.xlu0 %v1918, 32
        %v2041 = vpop.permute.xlu0 %2040
        %2042 = vrot.lane.b32.xlu0 %v1919, 32
        %v2043 = vpop.permute.xlu0 %2042
        %2044 = vrot.lane.b32.xlu0 %v1920, 32
        %v2045 = vpop.permute.xlu0 %2044
        %2046 = vrot.lane.b32.xlu0 %v1921, 32
        %v2047 = vpop.permute.xlu0 %2046
        %2048 = vrot.lane.b32.xlu0 %v1922, 32
        %v2049 = vpop.permute.xlu0 %2048
        %2050 = vrot.lane.b32.xlu0 %v1923, 32
        %v2051 = vpop.permute.xlu0 %2050
        %2052 = vrot.lane.b32.xlu0 %v1924, 32
        %v2053 = vpop.permute.xlu0 %2052
        %2054 = vrot.lane.b32.xlu0 %v1925, 32
        %v2055 = vpop.permute.xlu0 %2054
        %2056 = vrot.lane.b32.xlu0 %v1926, 32
        %v2057 = vpop.permute.xlu0 %2056
        %2058 = vrot.lane.b32.xlu0 %v1927, 32
        %v2059 = vpop.permute.xlu0 %2058
        %2060 = vrot.lane.b32.xlu0 %v1928, 32
        %v2061 = vpop.permute.xlu0 %2060
        %2062 = vrot.lane.b32.xlu0 %v1929, 32
        %v2063 = vpop.permute.xlu0 %2062
        %2064 = vrot.lane.b32.xlu0 %v1930, 32
        %v2065 = vpop.permute.xlu0 %2064
        %2066 = vrot.lane.b32.xlu0 %v1931, 32
        %v2067 = vpop.permute.xlu0 %2066
        %2068 = vrot.lane.b32.xlu0 %v1932, 32
        %v2069 = vpop.permute.xlu0 %2068
        %2070 = vrot.lane.b32.xlu0 %v1933, 32
        %v2071 = vpop.permute.xlu0 %2070
        %2072 = vrot.lane.b32.xlu0 %v1934, 32
        %v2073 = vpop.permute.xlu0 %2072
        %2074 = vrot.lane.b32.xlu0 %v1935, 32
        %v2075 = vpop.permute.xlu0 %2074
        %2076 = vrot.lane.b32.xlu0 %v1936, 32
        %v2077 = vpop.permute.xlu0 %2076
        %2078 = vrot.lane.b32.xlu0 %v1937, 32
        %v2079 = vpop.permute.xlu0 %2078
        %2080 = vrot.lane.b32.xlu0 %v1938, 32
        %v2081 = vpop.permute.xlu0 %2080
        %2082 = vrot.lane.b32.xlu0 %v1939, 32
        %v2083 = vpop.permute.xlu0 %2082
        %2156 = vrot.lane.b32.xlu0 %v1940, 64
        %v2157 = vpop.permute.xlu0 %2156
        %2158 = vrot.lane.b32.xlu0 %v1941, 64
        %v2159 = vpop.permute.xlu0 %2158
        %2160 = vrot.lane.b32.xlu0 %v1942, 64
        %v2161 = vpop.permute.xlu0 %2160
        %2162 = vrot.lane.b32.xlu0 %v1943, 64
        %v2163 = vpop.permute.xlu0 %2162
        %2164 = vrot.lane.b32.xlu0 %v1944, 64
        %v2165 = vpop.permute.xlu0 %2164
        %2166 = vrot.lane.b32.xlu0 %v1945, 64
        %v2167 = vpop.permute.xlu0 %2166
        %2168 = vrot.lane.b32.xlu0 %v1946, 64
        %v2169 = vpop.permute.xlu0 %2168
        %2170 = vrot.lane.b32.xlu0 %v1947, 64
        %v2171 = vpop.permute.xlu0 %2170
        %2172 = vrot.lane.b32.xlu0 %v1948, 64
        %v2173 = vpop.permute.xlu0 %2172
        %2174 = vrot.lane.b32.xlu0 %v1949, 64
        %v2175 = vpop.permute.xlu0 %2174
        %2176 = vrot.lane.b32.xlu0 %v1950, 64
        %v2177 = vpop.permute.xlu0 %2176
        %2178 = vrot.lane.b32.xlu0 %v1951, 64
        %v2179 = vpop.permute.xlu0 %2178
        %2180 = vrot.lane.b32.xlu0 %v1952, 64
        %v2181 = vpop.permute.xlu0 %2180
        %2182 = vrot.lane.b32.xlu0 %v1953, 64
        %v2183 = vpop.permute.xlu0 %2182
        %2184 = vrot.lane.b32.xlu0 %v1954, 64
        %v2185 = vpop.permute.xlu0 %2184
        %2186 = vrot.lane.b32.xlu0 %v1955, 64
        %v2187 = vpop.permute.xlu0 %2186
        %2188 = vrot.lane.b32.xlu0 %v1956, 64
        %v2189 = vpop.permute.xlu0 %2188
        %2190 = vrot.lane.b32.xlu0 %v1957, 64
        %v2191 = vpop.permute.xlu0 %2190
        %2192 = vrot.lane.b32.xlu0 %v1958, 64
        %v2193 = vpop.permute.xlu0 %2192
        %2194 = vrot.lane.b32.xlu0 %v1959, 64
        %v2195 = vpop.permute.xlu0 %2194
        %2196 = vrot.lane.b32.xlu0 %v1960, 64
        %v2197 = vpop.permute.xlu0 %2196
        %2198 = vrot.lane.b32.xlu0 %v1961, 64
        %v2199 = vpop.permute.xlu0 %2198
        %2200 = vrot.lane.b32.xlu0 %v1962, 64
        %v2201 = vpop.permute.xlu0 %2200
        %2202 = vrot.lane.b32.xlu0 %v1963, 64
        %v2203 = vpop.permute.xlu0 %2202
        %2204 = vrot.lane.b32.xlu0 %v1964, 64
        %v2205 = vpop.permute.xlu0 %2204
        %2206 = vrot.lane.b32.xlu0 %v1965, 64
        %v2207 = vpop.permute.xlu0 %2206
        %2208 = vrot.lane.b32.xlu0 %v1966, 64
        %v2209 = vpop.permute.xlu0 %2208
        %2210 = vrot.lane.b32.xlu0 %v1967, 64
        %v2211 = vpop.permute.xlu0 %2210
        %2212 = vrot.lane.b32.xlu0 %v1968, 64
        %v2213 = vpop.permute.xlu0 %2212
        %2214 = vrot.lane.b32.xlu0 %v1969, 64
        %v2215 = vpop.permute.xlu0 %2214
        %2216 = vrot.lane.b32.xlu0 %v1970, 64
        %v2217 = vpop.permute.xlu0 %2216
        %2218 = vrot.lane.b32.xlu0 %v1971, 64
        %v2219 = vpop.permute.xlu0 %2218
        %2220 = vrot.lane.b32.xlu0 %v1972, 64
        %v2221 = vpop.permute.xlu0 %2220
        %2222 = vrot.lane.b32.xlu0 %v1973, 64
        %v2223 = vpop.permute.xlu0 %2222
        %2224 = vrot.lane.b32.xlu0 %v1974, 64
        %v2225 = vpop.permute.xlu0 %2224
        %2226 = vrot.lane.b32.xlu0 %v1975, 64
        %v2227 = vpop.permute.xlu0 %2226
        %v2264 = vsel %vm331, %v1868, %v2013
        %v2265 = vsel %vm331, %v1869, %v2015
        %v2266 = vsel %vm331, %v1870, %v2017
        %v2267 = vsel %vm331, %v1871, %v2019
        %v2268 = vsel %vm331, %v1872, %v2021
        %v2269 = vsel %vm331, %v1873, %v2023
        %v2270 = vsel %vm331, %v1874, %v2025
        %v2271 = vsel %vm331, %v1875, %v2027
        %v2272 = vsel %vm331, %v1876, %v2029
        %v2273 = vsel %vm331, %v1877, %v2031
        %v2274 = vsel %vm331, %v1878, %v2033
        %v2275 = vsel %vm331, %v1879, %v2035
        %v2276 = vsel %vm331, %v1880, %v2037
        %v2277 = vsel %vm331, %v1881, %v2039
        %v2278 = vsel %vm331, %v1882, %v2041
        %v2279 = vsel %vm331, %v1883, %v2043
        %v2280 = vsel %vm331, %v1884, %v2045
        %v2281 = vsel %vm331, %v1885, %v2047
        %v2282 = vsel %vm331, %v1886, %v2049
        %v2283 = vsel %vm331, %v1887, %v2051
        %v2284 = vsel %vm331, %v1888, %v2053
        %v2285 = vsel %vm331, %v1889, %v2055
        %v2286 = vsel %vm331, %v1890, %v2057
        %v2287 = vsel %vm331, %v1891, %v2059
        %v2288 = vsel %vm331, %v1892, %v2061
        %v2289 = vsel %vm331, %v1893, %v2063
        %v2290 = vsel %vm331, %v1894, %v2065
        %v2291 = vsel %vm331, %v1895, %v2067
        %v2292 = vsel %vm331, %v1896, %v2069
        %v2293 = vsel %vm331, %v1897, %v2071
        %v2294 = vsel %vm331, %v1898, %v2073
        %v2295 = vsel %vm331, %v1899, %v2075
        %v2296 = vsel %vm331, %v1900, %v2077
        %v2297 = vsel %vm331, %v1901, %v2079
        %v2298 = vsel %vm331, %v1902, %v2081
        %v2299 = vsel %vm331, %v1903, %v2083
        %v2300 = vsel %vm874, %v2264, %v2157
        %v2301 = vsel %vm874, %v2265, %v2159
        %v2302 = vsel %vm874, %v2266, %v2161
        %v2303 = vsel %vm874, %v2267, %v2163
        %v2304 = vsel %vm874, %v2268, %v2165
        %v2305 = vsel %vm874, %v2269, %v2167
        %v2306 = vsel %vm874, %v2270, %v2169
        %v2307 = vsel %vm874, %v2271, %v2171
        %v2308 = vsel %vm874, %v2272, %v2173
        %v2309 = vsel %vm874, %v2273, %v2175
        %v2310 = vsel %vm874, %v2274, %v2177
        %v2311 = vsel %vm874, %v2275, %v2179
        %v2312 = vsel %vm874, %v2276, %v2181
        %v2313 = vsel %vm874, %v2277, %v2183
        %v2314 = vsel %vm874, %v2278, %v2185
        %v2315 = vsel %vm874, %v2279, %v2187
        %v2316 = vsel %vm874, %v2280, %v2189
        %v2317 = vsel %vm874, %v2281, %v2191
        %v2318 = vsel %vm874, %v2282, %v2193
        %v2319 = vsel %vm874, %v2283, %v2195
        %v2320 = vsel %vm874, %v2284, %v2197
        %v2321 = vsel %vm874, %v2285, %v2199
        %v2322 = vsel %vm874, %v2286, %v2201
        %v2323 = vsel %vm874, %v2287, %v2203
        %v2324 = vsel %vm874, %v2288, %v2205
        %v2325 = vsel %vm874, %v2289, %v2207
        %v2326 = vsel %vm874, %v2290, %v2209
        %v2327 = vsel %vm874, %v2291, %v2211
        %v2328 = vsel %vm874, %v2292, %v2213
        %v2329 = vsel %vm874, %v2293, %v2215
        %v2330 = vsel %vm874, %v2294, %v2217
        %v2331 = vsel %vm874, %v2295, %v2219
        %v2332 = vsel %vm874, %v2296, %v2221
        %v2333 = vsel %vm874, %v2297, %v2223
        %v2334 = vsel %vm874, %v2298, %v2225
        %v2335 = vsel %vm874, %v2299, %v2227
        %v2336 = vld [vmem:[%s3] sm:$0xff]
        %v2337 = vld [vmem:[%s3 + $0x8] sm:$0xff]
        %v2338 = vld [vmem:[%s3 + $0x10] sm:$0xff]
        %v2339 = vld [vmem:[%s3 + $0x18] sm:$0xff]
        %v2340 = vld [vmem:[%s3 + $0x20] sm:$0xff]
        %v2341 = vld [vmem:[%s3 + $0x28] sm:$0xff]
        %v2342 = vld [vmem:[%s3 + $0x30] sm:$0xff]
        %v2343 = vld [vmem:[%s3 + $0x38] sm:$0xff]
        %v2344 = vld [vmem:[%s3 + $0x40] sm:$0xff]
        %v2345 = vld [vmem:[%s3 + $0x48] sm:$0xff]
        %v2346 = vld [vmem:[%s3 + $0x50] sm:$0xff]
        %v2347 = vld [vmem:[%s3 + $0x58] sm:$0xff]
        %s2348 = scalar_lea.vmem %s3, 96
        %v2349 = vld [vmem:[%s2348] sm:$0xff]
        %v2350 = vld [vmem:[%s2348 + $0x8] sm:$0xff]
        %v2351 = vld [vmem:[%s2348 + $0x10] sm:$0xff]
        %v2352 = vld [vmem:[%s2348 + $0x18] sm:$0xff]
        %v2353 = vld [vmem:[%s2348 + $0x20] sm:$0xff]
        %v2354 = vld [vmem:[%s2348 + $0x28] sm:$0xff]
        %v2355 = vld [vmem:[%s2348 + $0x30] sm:$0xff]
        %v2356 = vld [vmem:[%s2348 + $0x38] sm:$0xff]
        %v2357 = vld [vmem:[%s2348 + $0x40] sm:$0xff]
        %v2358 = vld [vmem:[%s2348 + $0x48] sm:$0xff]
        %v2359 = vld [vmem:[%s2348 + $0x50] sm:$0xff]
        %v2360 = vld [vmem:[%s2348 + $0x58] sm:$0xff]
        %v2362 = vsel %vm936, %v2302, 0
        %v2365 = vsel %vm936, %v2303, 0
        %v2368 = vsel %vm936, %v2304, 0
        %v2371 = vsel %vm936, %v2305, 0
        %v2374 = vsel %vm936, %v2306, 0
        %v2377 = vsel %vm936, %v2307, 0
        %v2380 = vsel %vm936, %v2308, 0
        %v2383 = vsel %vm936, %v2309, 0
        %v2386 = vsel %vm936, %v2310, 0
        %v2389 = vsel %vm936, %v2311, 0
        %v2392 = vsel %vm936, %v2312, 0
        %v2395 = vsel %vm936, %v2313, 0
        %v2398 = vsel %vm936, %v2314, 0
        %v2401 = vsel %vm936, %v2315, 0
        %v2404 = vsel %vm936, %v2316, 0
        %v2407 = vsel %vm936, %v2317, 0
        %v2410 = vsel %vm936, %v2318, 0
        %v2413 = vsel %vm936, %v2319, 0
        %v2416 = vsel %vm936, %v2320, 0
        %v2419 = vsel %vm936, %v2321, 0
        %v2422 = vsel %vm936, %v2322, 0
        %v2425 = vsel %vm936, %v2323, 0
        %v2428 = vsel %vm936, %v2324, 0
        %v2431 = vsel %vm936, %v2325, 0
        %v2434 = vsel %vm936, %v2326, 0
        %v2437 = vsel %vm936, %v2327, 0
        %v2440 = vsel %vm936, %v2328, 0
        %v2443 = vsel %vm936, %v2329, 0
        %v2446 = vsel %vm936, %v2330, 0
        %v2449 = vsel %vm936, %v2331, 0
        %v2452 = vsel %vm936, %v2332, 0
        %v2455 = vsel %vm936, %v2333, 0
        %2457 = vmatprep.subr.mxu0 0.0
        %2458 = vmatpush1.msra.mxu0 %v2349
        %2459 = vmatprep.subr.mxu0 0.0
        %2460 = vmatpush1.msra.mxu0 %v2350
        %2461 = vmatprep.subr.mxu0 0.0
        %2462 = vmatpush1.msra.mxu0 %v2351
        %2463 = vmatprep.subr.mxu0 0.0
        %2464 = vmatpush1.msra.mxu0 %v2352
        %2465 = vmatprep.subr.mxu0 0.0
        %2466 = vmatpush1.msra.mxu0 %v2353
        %2467 = vmatprep.subr.mxu0 0.0
        %2468 = vmatpush1.msra.mxu0 %v2354
        %2469 = vmatprep.subr.mxu0 0.0
        %2470 = vmatpush1.msra.mxu0 %v2355
        %2471 = vmatprep.subr.mxu0 0.0
        %2472 = vmatpush1.msra.mxu0 %v2356
        %2473 = vmatprep.subr.mxu0 0.0
        %2474 = vmatpush1.msra.mxu0 %v2357
        %2475 = vmatprep.subr.mxu0 0.0
        %2476 = vmatpush1.msra.mxu0 %v2358
        %2477 = vmatprep.subr.mxu0 0.0
        %2478 = vmatpush1.msra.mxu0 %v2359
        %2479 = vmatprep.subr.mxu0 0.0
        %2480 = vmatpush1.msra.mxu0 %v2360
        %2481 = vmatprep.subr.mxu0 0.0
        %2482 = vmatpush1.msra.mxu0 0.0
        %2483 = vmatprep.subr.mxu0 0.0
        %2484 = vmatpush1.msra.mxu0 0.0
        %2485 = vmatprep.subr.mxu0 0.0
        %2486 = vmatpush1.msra.mxu0 0.0
        %2487 = vmatprep.subr.mxu0 0.0
        %2488 = vmatpush1.msra.mxu0 0.0
        %2489 = vmatprep.subr.mxu0 0.0
        %2490 = vmatpush1.msra.mxu0 0.0
        %2491 = vmatprep.subr.mxu0 0.0
        %2492 = vmatpush1.msra.mxu0 0.0
        %2493 = vmatprep.subr.mxu0 0.0
        %2494 = vmatpush1.msra.mxu0 0.0
        %2495 = vmatprep.subr.mxu0 0.0
        %2496 = vmatpush1.msra.mxu0 0.0
        %2497 = vmatprep.subr.mxu0 0.0
        %2498 = vmatpush1.msra.mxu0 0.0
        %2499 = vmatprep.subr.mxu0 0.0
        %2500 = vmatpush1.msra.mxu0 0.0
        %2501 = vmatprep.subr.mxu0 0.0
        %2502 = vmatpush1.msra.mxu0 0.0
        %2503 = vmatprep.subr.mxu0 0.0
        %2504 = vmatpush1.msra.mxu0 0.0
        %2505 = vmatprep.subr.mxu0 0.0
        %2506 = vmatpush1.msra.mxu0 0.0
        %2507 = vmatprep.subr.mxu0 0.0
        %2508 = vmatpush1.msra.mxu0 0.0
        %2509 = vmatprep.subr.mxu0 0.0
        %2510 = vmatpush1.msra.mxu0 0.0
        %2511 = vmatprep.subr.mxu0 0.0
        %2512 = vmatpush1.msra.mxu0 0.0
        %2513 = vmatprep.subr.mxu0 0.0
        %2514 = vmatpush1.msra.mxu0 0.0
        %2515 = vmatprep.subr.mxu0 0.0
        %2516 = vmatpush1.msra.mxu0 0.0
        %2517 = vmatprep.subr.mxu0 0.0
        %2518 = vmatpush1.msra.mxu0 0.0
        %2519 = vmatprep.subr.mxu0 0.0
        %2520 = vmatpush1.msra.mxu0 0.0
        %2521 = vmatprep.mubr.f32.mxu0 0.0
        %2522 = vmatmul.mubr.f32.gmra.mrb[0].mxu0 %v2362
        %v2523 = vpop.f32.mrb[0].mxu0
        %v2524 = vadd.f32 0.0, %v2523
        %v2525 = vpop.f32.mrb[0].mxu0
        %2526 = vmatprep.mubr.f32.mxu0 0.0
        %2527 = vmatmul.mubr.f32.gmra.mrb[0].mxu0 %v2365
        %v2528 = vpop.f32.mrb[0].mxu0
        %v2529 = vadd.f32 0.0, %v2528
        %v2530 = vpop.f32.mrb[0].mxu0
        %2531 = vmatprep.mubr.f32.mxu0 0.0
        %2532 = vmatmul.mubr.f32.gmra.mrb[0].mxu0 %v2368
        %v2533 = vpop.f32.mrb[0].mxu0
        %v2534 = vadd.f32 0.0, %v2533
        %v2535 = vpop.f32.mrb[0].mxu0
        %2536 = vmatprep.mubr.f32.mxu0 0.0
        %2537 = vmatmul.mubr.f32.gmra.mrb[0].mxu0 %v2371
        %v2538 = vpop.f32.mrb[0].mxu0
        %v2539 = vadd.f32 0.0, %v2538
        %v2540 = vpop.f32.mrb[0].mxu0
        %2541 = vmatprep.mubr.f32.mxu0 0.0
        %2542 = vmatmul.mubr.f32.gmra.mrb[0].mxu0 %v2374
        %v2543 = vpop.f32.mrb[0].mxu0
        %v2544 = vadd.f32 0.0, %v2543
        %v2545 = vpop.f32.mrb[0].mxu0
        %2546 = vmatprep.mubr.f32.mxu0 0.0
        %2547 = vmatmul.mubr.f32.gmra.mrb[0].mxu0 %v2377
        %v2548 = vpop.f32.mrb[0].mxu0
        %v2549 = vadd.f32 0.0, %v2548
        %v2550 = vpop.f32.mrb[0].mxu0
        %2551 = vmatprep.mubr.f32.mxu0 0.0
        %2552 = vmatmul.mubr.f32.gmra.mrb[0].mxu0 %v2380
        %v2553 = vpop.f32.mrb[0].mxu0
        %v2554 = vadd.f32 0.0, %v2553
        %v2555 = vpop.f32.mrb[0].mxu0
        %2556 = vmatprep.mubr.f32.mxu0 0.0
        %2557 = vmatmul.mubr.f32.gmra.mrb[0].mxu0 %v2383
        %v2558 = vpop.f32.mrb[0].mxu0
        %v2559 = vadd.f32 0.0, %v2558
        %v2560 = vpop.f32.mrb[0].mxu0
        %2561 = vmatprep.mubr.f32.mxu0 0.0
        %2562 = vmatmul.mubr.f32.gmra.mrb[0].mxu0 %v2386
        %v2563 = vpop.f32.mrb[0].mxu0
        %v2564 = vadd.f32 0.0, %v2563
        %v2565 = vpop.f32.mrb[0].mxu0
        %2566 = vmatprep.mubr.f32.mxu0 0.0
        %2567 = vmatmul.mubr.f32.gmra.mrb[0].mxu0 %v2389
        %v2568 = vpop.f32.mrb[0].mxu0
        %v2569 = vadd.f32 0.0, %v2568
        %v2570 = vpop.f32.mrb[0].mxu0
        %2571 = vmatprep.mubr.f32.mxu0 0.0
        %2572 = vmatmul.mubr.f32.gmra.mrb[0].mxu0 %v2392
        %v2573 = vpop.f32.mrb[0].mxu0
        %v2574 = vadd.f32 0.0, %v2573
        %v2575 = vpop.f32.mrb[0].mxu0
        %2576 = vmatprep.mubr.f32.mxu0 0.0
        %2577 = vmatmul.mubr.f32.gmra.mrb[0].mxu0 %v2395
        %v2578 = vpop.f32.mrb[0].mxu0
        %v2579 = vadd.f32 0.0, %v2578
        %v2580 = vpop.f32.mrb[0].mxu0
        %2581 = vmatprep.mubr.f32.mxu0 0.0
        %2582 = vmatmul.mubr.f32.gmra.mrb[0].mxu0 %v2398
        %v2583 = vpop.f32.mrb[0].mxu0
        %v2584 = vadd.f32 0.0, %v2583
        %v2585 = vpop.f32.mrb[0].mxu0
        %2586 = vmatprep.mubr.f32.mxu0 0.0
        %2587 = vmatmul.mubr.f32.gmra.mrb[0].mxu0 %v2401
        %v2588 = vpop.f32.mrb[0].mxu0
        %v2589 = vadd.f32 0.0, %v2588
        %v2590 = vpop.f32.mrb[0].mxu0
        %2591 = vmatprep.mubr.f32.mxu0 0.0
        %2592 = vmatmul.mubr.f32.gmra.mrb[0].mxu0 %v2404
        %v2593 = vpop.f32.mrb[0].mxu0
        %v2594 = vadd.f32 0.0, %v2593
        %v2595 = vpop.f32.mrb[0].mxu0
        %2596 = vmatprep.mubr.f32.mxu0 0.0
        %2597 = vmatmul.mubr.f32.gmra.mrb[0].mxu0 %v2407
        %v2598 = vpop.f32.mrb[0].mxu0
        %v2599 = vadd.f32 0.0, %v2598
        %v2600 = vpop.f32.mrb[0].mxu0
        %2601 = vmatprep.mubr.f32.mxu0 0.0
        %2602 = vmatmul.mubr.f32.gmra.mrb[0].mxu0 %v2410
        %v2603 = vpop.f32.mrb[0].mxu0
        %v2604 = vadd.f32 0.0, %v2603
        %v2605 = vpop.f32.mrb[0].mxu0
        %2606 = vmatprep.mubr.f32.mxu0 0.0
        %2607 = vmatmul.mubr.f32.gmra.mrb[0].mxu0 %v2413
        %v2608 = vpop.f32.mrb[0].mxu0
        %v2609 = vadd.f32 0.0, %v2608
        %v2610 = vpop.f32.mrb[0].mxu0
        %2611 = vmatprep.mubr.f32.mxu0 0.0
        %2612 = vmatmul.mubr.f32.gmra.mrb[0].mxu0 %v2416
        %v2613 = vpop.f32.mrb[0].mxu0
        %v2614 = vadd.f32 0.0, %v2613
        %v2615 = vpop.f32.mrb[0].mxu0
        %2616 = vmatprep.mubr.f32.mxu0 0.0
        %2617 = vmatmul.mubr.f32.gmra.mrb[0].mxu0 %v2419
        %v2618 = vpop.f32.mrb[0].mxu0
        %v2619 = vadd.f32 0.0, %v2618
        %v2620 = vpop.f32.mrb[0].mxu0
        %2621 = vmatprep.mubr.f32.mxu0 0.0
        %2622 = vmatmul.mubr.f32.gmra.mrb[0].mxu0 %v2422
        %v2623 = vpop.f32.mrb[0].mxu0
        %v2624 = vadd.f32 0.0, %v2623
        %v2625 = vpop.f32.mrb[0].mxu0
        %2626 = vmatprep.mubr.f32.mxu0 0.0
        %2627 = vmatmul.mubr.f32.gmra.mrb[0].mxu0 %v2425
        %v2628 = vpop.f32.mrb[0].mxu0
        %v2629 = vadd.f32 0.0, %v2628
        %v2630 = vpop.f32.mrb[0].mxu0
        %2631 = vmatprep.mubr.f32.mxu0 0.0
        %2632 = vmatmul.mubr.f32.gmra.mrb[0].mxu0 %v2428
        %v2633 = vpop.f32.mrb[0].mxu0
        %v2634 = vadd.f32 0.0, %v2633
        %v2635 = vpop.f32.mrb[0].mxu0
        %2636 = vmatprep.mubr.f32.mxu0 0.0
        %2637 = vmatmul.mubr.f32.gmra.mrb[0].mxu0 %v2431
        %v2638 = vpop.f32.mrb[0].mxu0
        %v2639 = vadd.f32 0.0, %v2638
        %v2640 = vpop.f32.mrb[0].mxu0
        %2641 = vmatprep.mubr.f32.mxu0 0.0
        %2642 = vmatmul.mubr.f32.gmra.mrb[0].mxu0 %v2434
        %v2643 = vpop.f32.mrb[0].mxu0
        %v2644 = vadd.f32 0.0, %v2643
        %v2645 = vpop.f32.mrb[0].mxu0
        %2646 = vmatprep.mubr.f32.mxu0 0.0
        %2647 = vmatmul.mubr.f32.gmra.mrb[0].mxu0 %v2437
        %v2648 = vpop.f32.mrb[0].mxu0
        %v2649 = vadd.f32 0.0, %v2648
        %v2650 = vpop.f32.mrb[0].mxu0
        %2651 = vmatprep.mubr.f32.mxu0 0.0
        %2652 = vmatmul.mubr.f32.gmra.mrb[0].mxu0 %v2440
        %v2653 = vpop.f32.mrb[0].mxu0
        %v2654 = vadd.f32 0.0, %v2653
        %v2655 = vpop.f32.mrb[0].mxu0
        %2656 = vmatprep.mubr.f32.mxu0 0.0
        %2657 = vmatmul.mubr.f32.gmra.mrb[0].mxu0 %v2443
        %v2658 = vpop.f32.mrb[0].mxu0
        %v2659 = vadd.f32 0.0, %v2658
        %v2660 = vpop.f32.mrb[0].mxu0
        %2661 = vmatprep.mubr.f32.mxu0 0.0
        %2662 = vmatmul.mubr.f32.gmra.mrb[0].mxu0 %v2446
        %v2663 = vpop.f32.mrb[0].mxu0
        %v2664 = vadd.f32 0.0, %v2663
        %v2665 = vpop.f32.mrb[0].mxu0
        %2666 = vmatprep.mubr.f32.mxu0 0.0
        %2667 = vmatmul.mubr.f32.gmra.mrb[0].mxu0 %v2449
        %v2668 = vpop.f32.mrb[0].mxu0
        %v2669 = vadd.f32 0.0, %v2668
        %v2670 = vpop.f32.mrb[0].mxu0
        %2671 = vmatprep.mubr.f32.mxu0 0.0
        %2672 = vmatmul.mubr.f32.gmra.mrb[0].mxu0 %v2452
        %v2673 = vpop.f32.mrb[0].mxu0
        %v2674 = vadd.f32 0.0, %v2673
        %v2675 = vpop.f32.mrb[0].mxu0
        %2676 = vmatprep.mubr.f32.mxu0 0.0
        %2677 = vmatmul.mubr.f32.gmra.mrb[0].mxu0 %v2455
        %v2678 = vpop.f32.mrb[0].mxu0
        %v2679 = vadd.f32 0.0, %v2678
        %v2680 = vpop.f32.mrb[0].mxu0
        %2681 = vdwg.mxu0
        %v2683 = vsel %vm936, %v2300, 0
        %v2686 = vsel %vm936, %v2301, 0
        %2688 = vmatprep.subr.mxu0 0.0
        %2689 = vmatpush1.msra.mxu0 %v2336
        %2690 = vmatprep.subr.mxu0 0.0
        %2691 = vmatpush1.msra.mxu0 %v2337
        %2692 = vmatprep.subr.mxu0 0.0
        %2693 = vmatpush1.msra.mxu0 %v2338
        %2694 = vmatprep.subr.mxu0 0.0
        %2695 = vmatpush1.msra.mxu0 %v2339
        %2696 = vmatprep.subr.mxu0 0.0
        %2697 = vmatpush1.msra.mxu0 %v2340
        %2698 = vmatprep.subr.mxu0 0.0
        %2699 = vmatpush1.msra.mxu0 %v2341
        %2700 = vmatprep.subr.mxu0 0.0
        %2701 = vmatpush1.msra.mxu0 %v2342
        %2702 = vmatprep.subr.mxu0 0.0
        %2703 = vmatpush1.msra.mxu0 %v2343
        %2704 = vmatprep.subr.mxu0 0.0
        %2705 = vmatpush1.msra.mxu0 %v2344
        %2706 = vmatprep.subr.mxu0 0.0
        %2707 = vmatpush1.msra.mxu0 %v2345
        %2708 = vmatprep.subr.mxu0 0.0
        %2709 = vmatpush1.msra.mxu0 %v2346
        %2710 = vmatprep.subr.mxu0 0.0
        %2711 = vmatpush1.msra.mxu0 %v2347
        %2712 = vmatprep.subr.mxu0 0.0
        %2713 = vmatpush1.msra.mxu0 0.0
        %2714 = vmatprep.subr.mxu0 0.0
        %2715 = vmatpush1.msra.mxu0 0.0
        %2716 = vmatprep.subr.mxu0 0.0
        %2717 = vmatpush1.msra.mxu0 0.0
        %2718 = vmatprep.subr.mxu0 0.0
        %2719 = vmatpush1.msra.mxu0 0.0
        %2720 = vmatprep.subr.mxu0 0.0
        %2721 = vmatpush1.msra.mxu0 0.0
        %2722 = vmatprep.subr.mxu0 0.0
        %2723 = vmatpush1.msra.mxu0 0.0
        %2724 = vmatprep.subr.mxu0 0.0
        %2725 = vmatpush1.msra.mxu0 0.0
        %2726 = vmatprep.subr.mxu0 0.0
        %2727 = vmatpush1.msra.mxu0 0.0
        %2728 = vmatprep.subr.mxu0 0.0
        %2729 = vmatpush1.msra.mxu0 0.0
        %2730 = vmatprep.subr.mxu0 0.0
        %2731 = vmatpush1.msra.mxu0 0.0
        %2732 = vmatprep.subr.mxu0 0.0
        %2733 = vmatpush1.msra.mxu0 0.0
        %2734 = vmatprep.subr.mxu0 0.0
        %2735 = vmatpush1.msra.mxu0 0.0
        %2736 = vmatprep.subr.mxu0 0.0
        %2737 = vmatpush1.msra.mxu0 0.0
        %2738 = vmatprep.subr.mxu0 0.0
        %2739 = vmatpush1.msra.mxu0 0.0
        %2740 = vmatprep.subr.mxu0 0.0
        %2741 = vmatpush1.msra.mxu0 0.0
        %2742 = vmatprep.subr.mxu0 0.0
        %2743 = vmatpush1.msra.mxu0 0.0
        %2744 = vmatprep.subr.mxu0 0.0
        %2745 = vmatpush1.msra.mxu0 0.0
        %2746 = vmatprep.subr.mxu0 0.0
        %2747 = vmatpush1.msra.mxu0 0.0
        %2748 = vmatprep.subr.mxu0 0.0
        %2749 = vmatpush1.msra.mxu0 0.0
        %2750 = vmatprep.subr.mxu0 0.0
        %2751 = vmatpush1.msra.mxu0 0.0
        %2752 = vmatprep.mubr.f32.mxu0 0.0
        %2753 = vmatmul.mubr.f32.gmra.mrb[0].mxu0 %v2683
        %v2754 = vpop.f32.mrb[0].mxu0
        %v2755 = vadd.f32 %v2524, %v2754
        %v2756 = vpop.f32.mrb[0].mxu0
        %2757 = vmatprep.mubr.f32.mxu0 0.0
        %2758 = vmatmul.mubr.f32.gmra.mrb[0].mxu0 %v2686
        %v2759 = vpop.f32.mrb[0].mxu0
        %v2760 = vadd.f32 %v2529, %v2759
        %v2761 = vpop.f32.mrb[0].mxu0
        %2762 = vmatprep.mubr.f32.mxu0 0.0
        %2763 = vmatmul.mubr.f32.gmra.mrb[0].mxu0 %v2362
        %v2764 = vpop.f32.mrb[0].mxu0
        %v2765 = vadd.f32 %v2534, %v2764
        %v2766 = vpop.f32.mrb[0].mxu0
        %2767 = vmatprep.mubr.f32.mxu0 0.0
        %2768 = vmatmul.mubr.f32.gmra.mrb[0].mxu0 %v2365
        %v2769 = vpop.f32.mrb[0].mxu0
        %v2770 = vadd.f32 %v2539, %v2769
        %v2771 = vpop.f32.mrb[0].mxu0
        %2772 = vmatprep.mubr.f32.mxu0 0.0
        %2773 = vmatmul.mubr.f32.gmra.mrb[0].mxu0 %v2368
        %v2774 = vpop.f32.mrb[0].mxu0
        %v2775 = vadd.f32 %v2544, %v2774
        %v2776 = vpop.f32.mrb[0].mxu0
        %2777 = vmatprep.mubr.f32.mxu0 0.0
        %2778 = vmatmul.mubr.f32.gmra.mrb[0].mxu0 %v2371
        %v2779 = vpop.f32.mrb[0].mxu0
        %v2780 = vadd.f32 %v2549, %v2779
        %v2781 = vpop.f32.mrb[0].mxu0
        %2782 = vmatprep.mubr.f32.mxu0 0.0
        %2783 = vmatmul.mubr.f32.gmra.mrb[0].mxu0 %v2374
        %v2784 = vpop.f32.mrb[0].mxu0
        %v2785 = vadd.f32 %v2554, %v2784
        %v2786 = vpop.f32.mrb[0].mxu0
        %2787 = vmatprep.mubr.f32.mxu0 0.0
        %2788 = vmatmul.mubr.f32.gmra.mrb[0].mxu0 %v2377
        %v2789 = vpop.f32.mrb[0].mxu0
        %v2790 = vadd.f32 %v2559, %v2789
        %v2791 = vpop.f32.mrb[0].mxu0
        %2792 = vmatprep.mubr.f32.mxu0 0.0
        %2793 = vmatmul.mubr.f32.gmra.mrb[0].mxu0 %v2380
        %v2794 = vpop.f32.mrb[0].mxu0
        %v2795 = vadd.f32 %v2564, %v2794
        %v2796 = vpop.f32.mrb[0].mxu0
        %2797 = vmatprep.mubr.f32.mxu0 0.0
        %2798 = vmatmul.mubr.f32.gmra.mrb[0].mxu0 %v2383
        %v2799 = vpop.f32.mrb[0].mxu0
        %v2800 = vadd.f32 %v2569, %v2799
        %v2801 = vpop.f32.mrb[0].mxu0
        %2802 = vmatprep.mubr.f32.mxu0 0.0
        %2803 = vmatmul.mubr.f32.gmra.mrb[0].mxu0 %v2386
        %v2804 = vpop.f32.mrb[0].mxu0
        %v2805 = vadd.f32 %v2574, %v2804
        %v2806 = vpop.f32.mrb[0].mxu0
        %2807 = vmatprep.mubr.f32.mxu0 0.0
        %2808 = vmatmul.mubr.f32.gmra.mrb[0].mxu0 %v2389
        %v2809 = vpop.f32.mrb[0].mxu0
        %v2810 = vadd.f32 %v2579, %v2809
        %v2811 = vpop.f32.mrb[0].mxu0
        %2812 = vmatprep.mubr.f32.mxu0 0.0
        %2813 = vmatmul.mubr.f32.gmra.mrb[0].mxu0 %v2392
        %v2814 = vpop.f32.mrb[0].mxu0
        %v2815 = vadd.f32 %v2584, %v2814
        %v2816 = vpop.f32.mrb[0].mxu0
        %2817 = vmatprep.mubr.f32.mxu0 0.0
        %2818 = vmatmul.mubr.f32.gmra.mrb[0].mxu0 %v2395
        %v2819 = vpop.f32.mrb[0].mxu0
        %v2820 = vadd.f32 %v2589, %v2819
        %v2821 = vpop.f32.mrb[0].mxu0
        %2822 = vmatprep.mubr.f32.mxu0 0.0
        %2823 = vmatmul.mubr.f32.gmra.mrb[0].mxu0 %v2398
        %v2824 = vpop.f32.mrb[0].mxu0
        %v2825 = vadd.f32 %v2594, %v2824
        %v2826 = vpop.f32.mrb[0].mxu0
        %2827 = vmatprep.mubr.f32.mxu0 0.0
        %2828 = vmatmul.mubr.f32.gmra.mrb[0].mxu0 %v2401
        %v2829 = vpop.f32.mrb[0].mxu0
        %v2830 = vadd.f32 %v2599, %v2829
        %v2831 = vpop.f32.mrb[0].mxu0
        %2832 = vmatprep.mubr.f32.mxu0 0.0
        %2833 = vmatmul.mubr.f32.gmra.mrb[0].mxu0 %v2404
        %v2834 = vpop.f32.mrb[0].mxu0
        %v2835 = vadd.f32 %v2604, %v2834
        %v2836 = vpop.f32.mrb[0].mxu0
        %2837 = vmatprep.mubr.f32.mxu0 0.0
        %2838 = vmatmul.mubr.f32.gmra.mrb[0].mxu0 %v2407
        %v2839 = vpop.f32.mrb[0].mxu0
        %v2840 = vadd.f32 %v2609, %v2839
        %v2841 = vpop.f32.mrb[0].mxu0
        %2842 = vmatprep.mubr.f32.mxu0 0.0
        %2843 = vmatmul.mubr.f32.gmra.mrb[0].mxu0 %v2410
        %v2844 = vpop.f32.mrb[0].mxu0
        %v2845 = vadd.f32 %v2614, %v2844
        %v2846 = vpop.f32.mrb[0].mxu0
        %2847 = vmatprep.mubr.f32.mxu0 0.0
        %2848 = vmatmul.mubr.f32.gmra.mrb[0].mxu0 %v2413
        %v2849 = vpop.f32.mrb[0].mxu0
        %v2850 = vadd.f32 %v2619, %v2849
        %v2851 = vpop.f32.mrb[0].mxu0
        %2852 = vmatprep.mubr.f32.mxu0 0.0
        %2853 = vmatmul.mubr.f32.gmra.mrb[0].mxu0 %v2416
        %v2854 = vpop.f32.mrb[0].mxu0
        %v2855 = vadd.f32 %v2624, %v2854
        %v2856 = vpop.f32.mrb[0].mxu0
        %2857 = vmatprep.mubr.f32.mxu0 0.0
        %2858 = vmatmul.mubr.f32.gmra.mrb[0].mxu0 %v2419
        %v2859 = vpop.f32.mrb[0].mxu0
        %v2860 = vadd.f32 %v2629, %v2859
        %v2861 = vpop.f32.mrb[0].mxu0
        %2862 = vmatprep.mubr.f32.mxu0 0.0
        %2863 = vmatmul.mubr.f32.gmra.mrb[0].mxu0 %v2422
        %v2864 = vpop.f32.mrb[0].mxu0
        %v2865 = vadd.f32 %v2634, %v2864
        %v2866 = vpop.f32.mrb[0].mxu0
        %2867 = vmatprep.mubr.f32.mxu0 0.0
        %2868 = vmatmul.mubr.f32.gmra.mrb[0].mxu0 %v2425
        %v2869 = vpop.f32.mrb[0].mxu0
        %v2870 = vadd.f32 %v2639, %v2869
        %v2871 = vpop.f32.mrb[0].mxu0
        %2872 = vmatprep.mubr.f32.mxu0 0.0
        %2873 = vmatmul.mubr.f32.gmra.mrb[0].mxu0 %v2428
        %v2874 = vpop.f32.mrb[0].mxu0
        %v2875 = vadd.f32 %v2644, %v2874
        %v2876 = vpop.f32.mrb[0].mxu0
        %2877 = vmatprep.mubr.f32.mxu0 0.0
        %2878 = vmatmul.mubr.f32.gmra.mrb[0].mxu0 %v2431
        %v2879 = vpop.f32.mrb[0].mxu0
        %v2880 = vadd.f32 %v2649, %v2879
        %v2881 = vpop.f32.mrb[0].mxu0
        %2882 = vmatprep.mubr.f32.mxu0 0.0
        %2883 = vmatmul.mubr.f32.gmra.mrb[0].mxu0 %v2434
        %v2884 = vpop.f32.mrb[0].mxu0
        %v2885 = vadd.f32 %v2654, %v2884
        %v2886 = vpop.f32.mrb[0].mxu0
        %2887 = vmatprep.mubr.f32.mxu0 0.0
        %2888 = vmatmul.mubr.f32.gmra.mrb[0].mxu0 %v2437
        %v2889 = vpop.f32.mrb[0].mxu0
        %v2890 = vadd.f32 %v2659, %v2889
        %v2891 = vpop.f32.mrb[0].mxu0
        %2892 = vmatprep.mubr.f32.mxu0 0.0
        %2893 = vmatmul.mubr.f32.gmra.mrb[0].mxu0 %v2440
        %v2894 = vpop.f32.mrb[0].mxu0
        %v2895 = vadd.f32 %v2664, %v2894
        %v2896 = vpop.f32.mrb[0].mxu0
        %2897 = vmatprep.mubr.f32.mxu0 0.0
        %2898 = vmatmul.mubr.f32.gmra.mrb[0].mxu0 %v2443
        %v2899 = vpop.f32.mrb[0].mxu0
        %v2900 = vadd.f32 %v2669, %v2899
        %v2901 = vpop.f32.mrb[0].mxu0
        %2902 = vmatprep.mubr.f32.mxu0 0.0
        %2903 = vmatmul.mubr.f32.gmra.mrb[0].mxu0 %v2446
        %v2904 = vpop.f32.mrb[0].mxu0
        %v2905 = vadd.f32 %v2674, %v2904
        %v2906 = vpop.f32.mrb[0].mxu0
        %2907 = vmatprep.mubr.f32.mxu0 0.0
        %2908 = vmatmul.mubr.f32.gmra.mrb[0].mxu0 %v2449
        %v2909 = vpop.f32.mrb[0].mxu0
        %v2910 = vadd.f32 %v2679, %v2909
        %v2911 = vpop.f32.mrb[0].mxu0
        %2912 = vdwg.mxu0
        %s2913 = scalar_lea.vmem %s3, 192
        %v2914 = vld [vmem:[%s2913] sm:$0xff]
        %v2915 = vld [vmem:[%s2913 + $0x8] sm:$0xff]
        %v2916 = vld [vmem:[%s2913 + $0x10] sm:$0xff]
        %v2917 = vld [vmem:[%s2913 + $0x18] sm:$0xff]
        %v2918 = vld [vmem:[%s2913 + $0x20] sm:$0xff]
        %v2919 = vld [vmem:[%s2913 + $0x28] sm:$0xff]
        %v2920 = vld [vmem:[%s2913 + $0x30] sm:$0xff]
        %v2921 = vld [vmem:[%s2913 + $0x38] sm:$0xff]
        %v2922 = vld [vmem:[%s2913 + $0x40] sm:$0xff]
        %v2923 = vld [vmem:[%s2913 + $0x48] sm:$0xff]
        %v2924 = vld [vmem:[%s2913 + $0x50] sm:$0xff]
        %v2925 = vld [vmem:[%s2913 + $0x58] sm:$0xff]
        %v2927 = vsel %vm936, %v2334, 0
        %v2930 = vsel %vm936, %v2335, 0
        %2932 = vmatprep.subr.mxu0 0.0
        %2933 = vmatpush1.msra.mxu0 %v2914
        %2934 = vmatprep.subr.mxu0 0.0
        %2935 = vmatpush1.msra.mxu0 %v2915
        %2936 = vmatprep.subr.mxu0 0.0
        %2937 = vmatpush1.msra.mxu0 %v2916
        %2938 = vmatprep.subr.mxu0 0.0
        %2939 = vmatpush1.msra.mxu0 %v2917
        %2940 = vmatprep.subr.mxu0 0.0
        %2941 = vmatpush1.msra.mxu0 %v2918
        %2942 = vmatprep.subr.mxu0 0.0
        %2943 = vmatpush1.msra.mxu0 %v2919
        %2944 = vmatprep.subr.mxu0 0.0
        %2945 = vmatpush1.msra.mxu0 %v2920
        %2946 = vmatprep.subr.mxu0 0.0
        %2947 = vmatpush1.msra.mxu0 %v2921
        %2948 = vmatprep.subr.mxu0 0.0
        %2949 = vmatpush1.msra.mxu0 %v2922
        %2950 = vmatprep.subr.mxu0 0.0
        %2951 = vmatpush1.msra.mxu0 %v2923
        %2952 = vmatprep.subr.mxu0 0.0
        %2953 = vmatpush1.msra.mxu0 %v2924
        %2954 = vmatprep.subr.mxu0 0.0
        %2955 = vmatpush1.msra.mxu0 %v2925
        %2956 = vmatprep.subr.mxu0 0.0
        %2957 = vmatpush1.msra.mxu0 0.0
        %2958 = vmatprep.subr.mxu0 0.0
        %2959 = vmatpush1.msra.mxu0 0.0
        %2960 = vmatprep.subr.mxu0 0.0
        %2961 = vmatpush1.msra.mxu0 0.0
        %2962 = vmatprep.subr.mxu0 0.0
        %2963 = vmatpush1.msra.mxu0 0.0
        %2964 = vmatprep.subr.mxu0 0.0
        %2965 = vmatpush1.msra.mxu0 0.0
        %2966 = vmatprep.subr.mxu0 0.0
        %2967 = vmatpush1.msra.mxu0 0.0
        %2968 = vmatprep.subr.mxu0 0.0
        %2969 = vmatpush1.msra.mxu0 0.0
        %2970 = vmatprep.subr.mxu0 0.0
        %2971 = vmatpush1.msra.mxu0 0.0
        %2972 = vmatprep.subr.mxu0 0.0
        %2973 = vmatpush1.msra.mxu0 0.0
        %2974 = vmatprep.subr.mxu0 0.0
        %2975 = vmatpush1.msra.mxu0 0.0
        %2976 = vmatprep.subr.mxu0 0.0
        %2977 = vmatpush1.msra.mxu0 0.0
        %2978 = vmatprep.subr.mxu0 0.0
        %2979 = vmatpush1.msra.mxu0 0.0
        %2980 = vmatprep.subr.mxu0 0.0
        %2981 = vmatpush1.msra.mxu0 0.0
        %2982 = vmatprep.subr.mxu0 0.0
        %2983 = vmatpush1.msra.mxu0 0.0
        %2984 = vmatprep.subr.mxu0 0.0
        %2985 = vmatpush1.msra.mxu0 0.0
        %2986 = vmatprep.subr.mxu0 0.0
        %2987 = vmatpush1.msra.mxu0 0.0
        %2988 = vmatprep.subr.mxu0 0.0
        %2989 = vmatpush1.msra.mxu0 0.0
        %2990 = vmatprep.subr.mxu0 0.0
        %2991 = vmatpush1.msra.mxu0 0.0
        %2992 = vmatprep.subr.mxu0 0.0
        %2993 = vmatpush1.msra.mxu0 0.0
        %2994 = vmatprep.subr.mxu0 0.0
        %2995 = vmatpush1.msra.mxu0 0.0
        %2996 = vmatprep.mubr.f32.mxu0 0.0
        %2997 = vmatmul.mubr.f32.gmra.mrb[0].mxu0 %v2368
        %v2998 = vpop.f32.mrb[0].mxu0
        %v2999 = vadd.f32 0.0, %v2998
        %v3000 = vpop.f32.mrb[0].mxu0
        %3001 = vmatprep.mubr.f32.mxu0 0.0
        %3002 = vmatmul.mubr.f32.gmra.mrb[0].mxu0 %v2371
        %v3003 = vpop.f32.mrb[0].mxu0
        %v3004 = vadd.f32 0.0, %v3003
        %v3005 = vpop.f32.mrb[0].mxu0
        %3006 = vmatprep.mubr.f32.mxu0 0.0
        %3007 = vmatmul.mubr.f32.gmra.mrb[0].mxu0 %v2374
        %v3008 = vpop.f32.mrb[0].mxu0
        %v3009 = vadd.f32 0.0, %v3008
        %v3010 = vpop.f32.mrb[0].mxu0
        %3011 = vmatprep.mubr.f32.mxu0 0.0
        %3012 = vmatmul.mubr.f32.gmra.mrb[0].mxu0 %v2377
        %v3013 = vpop.f32.mrb[0].mxu0
        %v3014 = vadd.f32 0.0, %v3013
        %v3015 = vpop.f32.mrb[0].mxu0
        %3016 = vmatprep.mubr.f32.mxu0 0.0
        %3017 = vmatmul.mubr.f32.gmra.mrb[0].mxu0 %v2380
        %v3018 = vpop.f32.mrb[0].mxu0
        %v3019 = vadd.f32 0.0, %v3018
        %v3020 = vpop.f32.mrb[0].mxu0
        %3021 = vmatprep.mubr.f32.mxu0 0.0
        %3022 = vmatmul.mubr.f32.gmra.mrb[0].mxu0 %v2383
        %v3023 = vpop.f32.mrb[0].mxu0
        %v3024 = vadd.f32 0.0, %v3023
        %v3025 = vpop.f32.mrb[0].mxu0
        %3026 = vmatprep.mubr.f32.mxu0 0.0
        %3027 = vmatmul.mubr.f32.gmra.mrb[0].mxu0 %v2386
        %v3028 = vpop.f32.mrb[0].mxu0
        %v3029 = vadd.f32 0.0, %v3028
        %v3030 = vpop.f32.mrb[0].mxu0
        %3031 = vmatprep.mubr.f32.mxu0 0.0
        %3032 = vmatmul.mubr.f32.gmra.mrb[0].mxu0 %v2389
        %v3033 = vpop.f32.mrb[0].mxu0
        %v3034 = vadd.f32 0.0, %v3033
        %v3035 = vpop.f32.mrb[0].mxu0
        %3036 = vmatprep.mubr.f32.mxu0 0.0
        %3037 = vmatmul.mubr.f32.gmra.mrb[0].mxu0 %v2392
        %v3038 = vpop.f32.mrb[0].mxu0
        %v3039 = vadd.f32 0.0, %v3038
        %v3040 = vpop.f32.mrb[0].mxu0
        %3041 = vmatprep.mubr.f32.mxu0 0.0
        %3042 = vmatmul.mubr.f32.gmra.mrb[0].mxu0 %v2395
        %v3043 = vpop.f32.mrb[0].mxu0
        %v3044 = vadd.f32 0.0, %v3043
        %v3045 = vpop.f32.mrb[0].mxu0
        %3046 = vmatprep.mubr.f32.mxu0 0.0
        %3047 = vmatmul.mubr.f32.gmra.mrb[0].mxu0 %v2398
        %v3048 = vpop.f32.mrb[0].mxu0
        %v3049 = vadd.f32 0.0, %v3048
        %v3050 = vpop.f32.mrb[0].mxu0
        %3051 = vmatprep.mubr.f32.mxu0 0.0
        %3052 = vmatmul.mubr.f32.gmra.mrb[0].mxu0 %v2401
        %v3053 = vpop.f32.mrb[0].mxu0
        %v3054 = vadd.f32 0.0, %v3053
        %v3055 = vpop.f32.mrb[0].mxu0
        %3056 = vmatprep.mubr.f32.mxu0 0.0
        %3057 = vmatmul.mubr.f32.gmra.mrb[0].mxu0 %v2404
        %v3058 = vpop.f32.mrb[0].mxu0
        %v3059 = vadd.f32 0.0, %v3058
        %v3060 = vpop.f32.mrb[0].mxu0
        %3061 = vmatprep.mubr.f32.mxu0 0.0
        %3062 = vmatmul.mubr.f32.gmra.mrb[0].mxu0 %v2407
        %v3063 = vpop.f32.mrb[0].mxu0
        %v3064 = vadd.f32 0.0, %v3063
        %v3065 = vpop.f32.mrb[0].mxu0
        %3066 = vmatprep.mubr.f32.mxu0 0.0
        %3067 = vmatmul.mubr.f32.gmra.mrb[0].mxu0 %v2410
        %v3068 = vpop.f32.mrb[0].mxu0
        %v3069 = vadd.f32 0.0, %v3068
        %v3070 = vpop.f32.mrb[0].mxu0
        %3071 = vmatprep.mubr.f32.mxu0 0.0
        %3072 = vmatmul.mubr.f32.gmra.mrb[0].mxu0 %v2413
        %v3073 = vpop.f32.mrb[0].mxu0
        %v3074 = vadd.f32 0.0, %v3073
        %v3075 = vpop.f32.mrb[0].mxu0
        %3076 = vmatprep.mubr.f32.mxu0 0.0
        %3077 = vmatmul.mubr.f32.gmra.mrb[0].mxu0 %v2416
        %v3078 = vpop.f32.mrb[0].mxu0
        %v3079 = vadd.f32 0.0, %v3078
        %v3080 = vpop.f32.mrb[0].mxu0
        %3081 = vmatprep.mubr.f32.mxu0 0.0
        %3082 = vmatmul.mubr.f32.gmra.mrb[0].mxu0 %v2419
        %v3083 = vpop.f32.mrb[0].mxu0
        %v3084 = vadd.f32 0.0, %v3083
        %v3085 = vpop.f32.mrb[0].mxu0
        %3086 = vmatprep.mubr.f32.mxu0 0.0
        %3087 = vmatmul.mubr.f32.gmra.mrb[0].mxu0 %v2422
        %v3088 = vpop.f32.mrb[0].mxu0
        %v3089 = vadd.f32 0.0, %v3088
        %v3090 = vpop.f32.mrb[0].mxu0
        %3091 = vmatprep.mubr.f32.mxu0 0.0
        %3092 = vmatmul.mubr.f32.gmra.mrb[0].mxu0 %v2425
        %v3093 = vpop.f32.mrb[0].mxu0
        %v3094 = vadd.f32 0.0, %v3093
        %v3095 = vpop.f32.mrb[0].mxu0
        %3096 = vmatprep.mubr.f32.mxu0 0.0
        %3097 = vmatmul.mubr.f32.gmra.mrb[0].mxu0 %v2428
        %v3098 = vpop.f32.mrb[0].mxu0
        %v3099 = vadd.f32 0.0, %v3098
        %v3100 = vpop.f32.mrb[0].mxu0
        %3101 = vmatprep.mubr.f32.mxu0 0.0
        %3102 = vmatmul.mubr.f32.gmra.mrb[0].mxu0 %v2431
        %v3103 = vpop.f32.mrb[0].mxu0
        %v3104 = vadd.f32 0.0, %v3103
        %v3105 = vpop.f32.mrb[0].mxu0
        %3106 = vmatprep.mubr.f32.mxu0 0.0
        %3107 = vmatmul.mubr.f32.gmra.mrb[0].mxu0 %v2434
        %v3108 = vpop.f32.mrb[0].mxu0
        %v3109 = vadd.f32 0.0, %v3108
        %v3110 = vpop.f32.mrb[0].mxu0
        %3111 = vmatprep.mubr.f32.mxu0 0.0
        %3112 = vmatmul.mubr.f32.gmra.mrb[0].mxu0 %v2437
        %v3113 = vpop.f32.mrb[0].mxu0
        %v3114 = vadd.f32 0.0, %v3113
        %v3115 = vpop.f32.mrb[0].mxu0
        %3116 = vmatprep.mubr.f32.mxu0 0.0
        %3117 = vmatmul.mubr.f32.gmra.mrb[0].mxu0 %v2440
        %v3118 = vpop.f32.mrb[0].mxu0
        %v3119 = vadd.f32 0.0, %v3118
        %v3120 = vpop.f32.mrb[0].mxu0
        %3121 = vmatprep.mubr.f32.mxu0 0.0
        %3122 = vmatmul.mubr.f32.gmra.mrb[0].mxu0 %v2443
        %v3123 = vpop.f32.mrb[0].mxu0
        %v3124 = vadd.f32 0.0, %v3123
        %v3125 = vpop.f32.mrb[0].mxu0
        %3126 = vmatprep.mubr.f32.mxu0 0.0
        %3127 = vmatmul.mubr.f32.gmra.mrb[0].mxu0 %v2446
        %v3128 = vpop.f32.mrb[0].mxu0
        %v3129 = vadd.f32 0.0, %v3128
        %v3130 = vpop.f32.mrb[0].mxu0
        %3131 = vmatprep.mubr.f32.mxu0 0.0
        %3132 = vmatmul.mubr.f32.gmra.mrb[0].mxu0 %v2449
        %v3133 = vpop.f32.mrb[0].mxu0
        %v3134 = vadd.f32 0.0, %v3133
        %v3135 = vpop.f32.mrb[0].mxu0
        %3136 = vmatprep.mubr.f32.mxu0 0.0
        %3137 = vmatmul.mubr.f32.gmra.mrb[0].mxu0 %v2452
        %v3138 = vpop.f32.mrb[0].mxu0
        %v3139 = vadd.f32 0.0, %v3138
        %v3140 = vpop.f32.mrb[0].mxu0
        %3141 = vmatprep.mubr.f32.mxu0 0.0
        %3142 = vmatmul.mubr.f32.gmra.mrb[0].mxu0 %v2455
        %v3143 = vpop.f32.mrb[0].mxu0
        %v3144 = vadd.f32 0.0, %v3143
        %v3145 = vpop.f32.mrb[0].mxu0
        %3146 = vmatprep.mubr.f32.mxu0 0.0
        %3147 = vmatmul.mubr.f32.gmra.mrb[0].mxu0 %v2927
        %v3148 = vpop.f32.mrb[0].mxu0
        %v3149 = vadd.f32 0.0, %v3148
        %v3150 = vpop.f32.mrb[0].mxu0
        %3151 = vmatprep.mubr.f32.mxu0 0.0
        %3152 = vmatmul.mubr.f32.gmra.mrb[0].mxu0 %v2930
        %v3153 = vpop.f32.mrb[0].mxu0
        %v3154 = vadd.f32 0.0, %v3153
        %v3155 = vpop.f32.mrb[0].mxu0
        %3156 = vdwg.mxu0
        %v3157 = vadd.f32 %v2755, %v2999
        %v3158 = vadd.f32 %v2760, %v3004
        %v3159 = vadd.f32 %v2765, %v3009
        %v3160 = vadd.f32 %v2770, %v3014
        %v3161 = vadd.f32 %v2775, %v3019
        %v3162 = vadd.f32 %v2780, %v3024
        %v3163 = vadd.f32 %v2785, %v3029
        %v3164 = vadd.f32 %v2790, %v3034
        %v3165 = vadd.f32 %v2795, %v3039
        %v3166 = vadd.f32 %v2800, %v3044
        %v3167 = vadd.f32 %v2805, %v3049
        %v3168 = vadd.f32 %v2810, %v3054
        %v3169 = vadd.f32 %v2815, %v3059
        %v3170 = vadd.f32 %v2820, %v3064
        %v3171 = vadd.f32 %v2825, %v3069
        %v3172 = vadd.f32 %v2830, %v3074
        %v3173 = vadd.f32 %v2835, %v3079
        %v3174 = vadd.f32 %v2840, %v3084
        %v3175 = vadd.f32 %v2845, %v3089
        %v3176 = vadd.f32 %v2850, %v3094
        %v3177 = vadd.f32 %v2855, %v3099
        %v3178 = vadd.f32 %v2860, %v3104
        %v3179 = vadd.f32 %v2865, %v3109
        %v3180 = vadd.f32 %v2870, %v3114
        %v3181 = vadd.f32 %v2875, %v3119
        %v3182 = vadd.f32 %v2880, %v3124
        %v3183 = vadd.f32 %v2885, %v3129
        %v3184 = vadd.f32 %v2890, %v3134
        %v3185 = vadd.f32 %v2895, %v3139
        %v3186 = vadd.f32 %v2900, %v3144
        %v3187 = vadd.f32 %v2905, %v3149
        %v3188 = vadd.f32 %v2910, %v3154
        %v3189 = vld [vmem:[%s4] sm:$0x1]
        %v3191 = vlaneseq
        %v3192 = vshrl.u32 %v3191, 7
        %v3193 = vsub.s32 0, %v3192
        %v3194 = vrot.slane %v3189, %v3193
        %v3196 = vadd.f32 %v3157, %v3194
        %v3197 = vadd.f32 %v3158, %v3194
        %v3198 = vadd.f32 %v3159, %v3194
        %v3199 = vadd.f32 %v3160, %v3194
        %v3200 = vadd.f32 %v3161, %v3194
        %v3201 = vadd.f32 %v3162, %v3194
        %v3202 = vadd.f32 %v3163, %v3194
        %v3203 = vadd.f32 %v3164, %v3194
        %v3204 = vadd.f32 %v3165, %v3194
        %v3205 = vadd.f32 %v3166, %v3194
        %v3206 = vadd.f32 %v3167, %v3194
        %v3207 = vadd.f32 %v3168, %v3194
        %v3208 = vadd.f32 %v3169, %v3194
        %v3209 = vadd.f32 %v3170, %v3194
        %v3210 = vadd.f32 %v3171, %v3194
        %v3211 = vadd.f32 %v3172, %v3194
        %v3212 = vadd.f32 %v3173, %v3194
        %v3213 = vadd.f32 %v3174, %v3194
        %v3214 = vadd.f32 %v3175, %v3194
        %v3215 = vadd.f32 %v3176, %v3194
        %v3216 = vadd.f32 %v3177, %v3194
        %v3217 = vadd.f32 %v3178, %v3194
        %v3218 = vadd.f32 %v3179, %v3194
        %v3219 = vadd.f32 %v3180, %v3194
        %v3220 = vadd.f32 %v3181, %v3194
        %v3221 = vadd.f32 %v3182, %v3194
        %v3222 = vadd.f32 %v3183, %v3194
        %v3223 = vadd.f32 %v3184, %v3194
        %v3224 = vadd.f32 %v3185, %v3194
        %v3225 = vadd.f32 %v3186, %v3194
        %v3226 = vadd.f32 %v3187, %v3194
        %v3227 = vadd.f32 %v3188, %v3194
        %v3228 = vld [vmem:[%s5] sm:$0x3]
        %v3229 = vld [vmem:[%s6] sm:$0x3]
        %v3230 = vld [vmem:[%s7] sm:$0x3]
        %v3231 = vld [vmem:[%s8] sm:$0x1]
        %v3232 = vsel %vm331, %v3196, 0.0
        %v3233 = vsel %vm331, %v3197, 0.0
        %v3234 = vadd.f32 %v3232, %v3233
        %v3235 = vsel %vm331, %v3198, 0.0
        %v3236 = vadd.f32 %v3234, %v3235
        %v3237 = vsel %vm331, %v3199, 0.0
        %v3238 = vadd.f32 %v3236, %v3237
        %v3239 = vsel %vm331, %v3200, 0.0
        %v3240 = vadd.f32 %v3238, %v3239
        %v3241 = vsel %vm331, %v3201, 0.0
        %v3242 = vadd.f32 %v3240, %v3241
        %v3243 = vsel %vm331, %v3202, 0.0
        %v3244 = vadd.f32 %v3242, %v3243
        %v3245 = vsel %vm331, %v3203, 0.0
        %v3246 = vadd.f32 %v3244, %v3245
        %v3247 = vsel %vm331, %v3204, 0.0
        %v3248 = vadd.f32 %v3246, %v3247
        %v3249 = vsel %vm331, %v3205, 0.0
        %v3250 = vadd.f32 %v3248, %v3249
        %v3251 = vsel %vm331, %v3206, 0.0
        %v3252 = vadd.f32 %v3250, %v3251
        %v3253 = vsel %vm331, %v3207, 0.0
        %v3254 = vadd.f32 %v3252, %v3253
        %v3255 = vsel %vm331, %v3208, 0.0
        %v3256 = vadd.f32 %v3254, %v3255
        %v3257 = vsel %vm331, %v3209, 0.0
        %v3258 = vadd.f32 %v3256, %v3257
        %v3259 = vsel %vm331, %v3210, 0.0
        %v3260 = vadd.f32 %v3258, %v3259
        %v3261 = vsel %vm331, %v3211, 0.0
        %v3262 = vadd.f32 %v3260, %v3261
        %v3263 = vsel %vm331, %v3212, 0.0
        %v3264 = vadd.f32 %v3262, %v3263
        %v3265 = vsel %vm331, %v3213, 0.0
        %v3266 = vadd.f32 %v3264, %v3265
        %v3267 = vsel %vm331, %v3214, 0.0
        %v3268 = vadd.f32 %v3266, %v3267
        %v3269 = vsel %vm331, %v3215, 0.0
        %v3270 = vadd.f32 %v3268, %v3269
        %v3271 = vsel %vm331, %v3216, 0.0
        %v3272 = vadd.f32 %v3270, %v3271
        %v3273 = vsel %vm331, %v3217, 0.0
        %v3274 = vadd.f32 %v3272, %v3273
        %v3275 = vsel %vm331, %v3218, 0.0
        %v3276 = vadd.f32 %v3274, %v3275
        %v3277 = vsel %vm331, %v3219, 0.0
        %v3278 = vadd.f32 %v3276, %v3277
        %v3279 = vsel %vm331, %v3220, 0.0
        %v3280 = vadd.f32 %v3278, %v3279
        %v3281 = vsel %vm331, %v3221, 0.0
        %v3282 = vadd.f32 %v3280, %v3281
        %v3283 = vsel %vm331, %v3222, 0.0
        %v3284 = vadd.f32 %v3282, %v3283
        %v3285 = vsel %vm331, %v3223, 0.0
        %v3286 = vadd.f32 %v3284, %v3285
        %v3287 = vsel %vm331, %v3224, 0.0
        %v3288 = vadd.f32 %v3286, %v3287
        %v3289 = vsel %vm331, %v3225, 0.0
        %v3290 = vadd.f32 %v3288, %v3289
        %v3291 = vsel %vm331, %v3226, 0.0
        %v3292 = vadd.f32 %v3290, %v3291
        %v3293 = vsel %vm331, %v3227, 0.0
        %v3294 = vadd.f32 %v3292, %v3293
        %v3295 = vrot.slane %v3294, 4
        %v3296 = vadd.f32 %v3294, %v3295
        %v3297 = vrot.slane %v3296, 2
        %v3298 = vadd.f32 %v3296, %v3297
        %v3299 = vrot.slane %v3298, 1
        %v3300 = vadd.f32 %v3298, %v3299
        %v3301 = vrcp.pop 256.0
        %v3302 = vmul.f32 %v3300, %v3301
        %v3303 = vmul.f32 %v3302, %v3228
        %vm3304 = vcmask 254976
        %v3305 = vsel %vm3304, %v3303, 0.0
        %3306 = vadd.xlane.f32.xlu0 %v3305
        %v3307 = vpop.xlane.xlu0 %3306
        %v3308 = vadd.f32 %v3307, %v3229
        %v3309 = vmax.f32 %v3308, 0.0
        %3311 = vset.pattern.permute.xlu0 0
        %3312 = vperm.xlu0 %3311, %v3309
        %v3313 = vpop.permute.xlu0 %3312
        %v3315 = vmul.f32 %v3313, %v3230
        %v3316 = vsel %vm3304, %v3315, 0.0
        %v3317 = vrot.slane %v3316, 4
        %v3318 = vadd.f32 %v3316, %v3317
        %v3319 = vrot.slane %v3318, 2
        %v3320 = vadd.f32 %v3318, %v3319
        %v3321 = vrot.slane %v3320, 1
        %v3322 = vadd.f32 %v3320, %v3321
        %v3323 = vadd.f32 %v3322, %v3231
        %v3324 = vxor.u32 %v3323, 2147483648
        %v3325 = vmul.f32 %v3324, 1.442695
        %v3326 = vpow.pop %v3325
        %v3327 = vadd.f32 %v3326, 1.0
        %v3328 = vrcp.pop %v3327
        %v3329 = vmul.f32 1.0, %v3328
        %v3330 = vlaneseq
        %v3331 = vshrl.u32 %v3330, 7
        %v3332 = vsub.s32 0, %v3331
        %v3333 = vrot.slane %v3329, %v3332
        %v3334 = vmul.f32 %v3196, %v3333
        %v3335 = vmul.f32 %v3197, %v3333
        %v3336 = vmul.f32 %v3198, %v3333
        %v3337 = vmul.f32 %v3199, %v3333
        %v3338 = vmul.f32 %v3200, %v3333
        %v3339 = vmul.f32 %v3201, %v3333
        %v3340 = vmul.f32 %v3202, %v3333
        %v3341 = vmul.f32 %v3203, %v3333
        %v3342 = vmul.f32 %v3204, %v3333
        %v3343 = vmul.f32 %v3205, %v3333
        %v3344 = vmul.f32 %v3206, %v3333
        %v3345 = vmul.f32 %v3207, %v3333
        %v3346 = vmul.f32 %v3208, %v3333
        %v3347 = vmul.f32 %v3209, %v3333
        %v3348 = vmul.f32 %v3210, %v3333
        %v3349 = vmul.f32 %v3211, %v3333
        %v3350 = vmul.f32 %v3212, %v3333
        %v3351 = vmul.f32 %v3213, %v3333
        %v3352 = vmul.f32 %v3214, %v3333
        %v3353 = vmul.f32 %v3215, %v3333
        %v3354 = vmul.f32 %v3216, %v3333
        %v3355 = vmul.f32 %v3217, %v3333
        %v3356 = vmul.f32 %v3218, %v3333
        %v3357 = vmul.f32 %v3219, %v3333
        %v3358 = vmul.f32 %v3220, %v3333
        %v3359 = vmul.f32 %v3221, %v3333
        %v3360 = vmul.f32 %v3222, %v3333
        %v3361 = vmul.f32 %v3223, %v3333
        %v3362 = vmul.f32 %v3224, %v3333
        %v3363 = vmul.f32 %v3225, %v3333
        %v3364 = vmul.f32 %v3226, %v3333
        %v3365 = vmul.f32 %v3227, %v3333
        %v3366 = vadd.f32 %v3334, %v377
        %v3367 = vadd.f32 %v3335, %v378
        %v3368 = vadd.f32 %v3336, %v379
        %v3369 = vadd.f32 %v3337, %v380
        %v3370 = vadd.f32 %v3338, %v381
        %v3371 = vadd.f32 %v3339, %v382
        %v3372 = vadd.f32 %v3340, %v383
        %v3373 = vadd.f32 %v3341, %v384
        %v3374 = vadd.f32 %v3342, %v385
        %v3375 = vadd.f32 %v3343, %v386
        %v3376 = vadd.f32 %v3344, %v387
        %v3377 = vadd.f32 %v3345, %v388
        %v3378 = vadd.f32 %v3346, %v389
        %v3379 = vadd.f32 %v3347, %v390
        %v3380 = vadd.f32 %v3348, %v391
        %v3381 = vadd.f32 %v3349, %v392
        %v3382 = vadd.f32 %v3350, %v393
        %v3383 = vadd.f32 %v3351, %v394
        %v3384 = vadd.f32 %v3352, %v395
        %v3385 = vadd.f32 %v3353, %v396
        %v3386 = vadd.f32 %v3354, %v397
        %v3387 = vadd.f32 %v3355, %v398
        %v3388 = vadd.f32 %v3356, %v399
        %v3389 = vadd.f32 %v3357, %v400
        %v3390 = vadd.f32 %v3358, %v401
        %v3391 = vadd.f32 %v3359, %v402
        %v3392 = vadd.f32 %v3360, %v403
        %v3393 = vadd.f32 %v3361, %v404
        %v3394 = vadd.f32 %v3362, %v405
        %v3395 = vadd.f32 %v3363, %v406
        %v3396 = vadd.f32 %v3364, %v407
        %v3397 = vadd.f32 %v3365, %v408
        %3398 = vst.msk [vmem:[%s325] sm:$0xff] %vm331, %v3366
        %3399 = vst.msk [vmem:[%s325 + $0x8] sm:$0xff] %vm331, %v3367
        %3400 = vst.msk [vmem:[%s325 + $0x10] sm:$0xff] %vm331, %v3368
        %3401 = vst.msk [vmem:[%s325 + $0x18] sm:$0xff] %vm331, %v3369
        %3402 = vst.msk [vmem:[%s325 + $0x20] sm:$0xff] %vm331, %v3370
        %3403 = vst.msk [vmem:[%s325 + $0x28] sm:$0xff] %vm331, %v3371
        %3404 = vst.msk [vmem:[%s325 + $0x30] sm:$0xff] %vm331, %v3372
        %3405 = vst.msk [vmem:[%s325 + $0x38] sm:$0xff] %vm331, %v3373
        %3406 = vst.msk [vmem:[%s325 + $0x40] sm:$0xff] %vm331, %v3374
        %3407 = vst.msk [vmem:[%s325 + $0x48] sm:$0xff] %vm331, %v3375
        %3408 = vst.msk [vmem:[%s325 + $0x50] sm:$0xff] %vm331, %v3376
        %3409 = vst.msk [vmem:[%s325 + $0x58] sm:$0xff] %vm331, %v3377
        %3410 = vst.msk [vmem:[%s325 + $0x60] sm:$0xff] %vm331, %v3378
        %3411 = vst.msk [vmem:[%s325 + $0x68] sm:$0xff] %vm331, %v3379
        %3412 = vst.msk [vmem:[%s325 + $0x70] sm:$0xff] %vm331, %v3380
        %3413 = vst.msk [vmem:[%s325 + $0x78] sm:$0xff] %vm331, %v3381
        %3414 = vst.msk [vmem:[%s325 + $0x80] sm:$0xff] %vm331, %v3382
        %3415 = vst.msk [vmem:[%s325 + $0x88] sm:$0xff] %vm331, %v3383
        %3416 = vst.msk [vmem:[%s325 + $0x90] sm:$0xff] %vm331, %v3384
        %3417 = vst.msk [vmem:[%s325 + $0x98] sm:$0xff] %vm331, %v3385
        %3418 = vst.msk [vmem:[%s325 + $0xa0] sm:$0xff] %vm331, %v3386
        %3419 = vst.msk [vmem:[%s325 + $0xa8] sm:$0xff] %vm331, %v3387
        %3420 = vst.msk [vmem:[%s325 + $0xb0] sm:$0xff] %vm331, %v3388
        %3421 = vst.msk [vmem:[%s325 + $0xb8] sm:$0xff] %vm331, %v3389
        %3422 = vst.msk [vmem:[%s325 + $0xc0] sm:$0xff] %vm331, %v3390
        %3423 = vst.msk [vmem:[%s325 + $0xc8] sm:$0xff] %vm331, %v3391
        %3424 = vst.msk [vmem:[%s325 + $0xd0] sm:$0xff] %vm331, %v3392
        %3425 = vst.msk [vmem:[%s325 + $0xd8] sm:$0xff] %vm331, %v3393
        %3426 = vst.msk [vmem:[%s325 + $0xe0] sm:$0xff] %vm331, %v3394
        %3427 = vst.msk [vmem:[%s325 + $0xe8] sm:$0xff] %vm331, %v3395
        %3428 = vst.msk [vmem:[%s325 + $0xf0] sm:$0xff] %vm331, %v3396
        %3429 = vst.msk [vmem:[%s325 + $0xf8] sm:$0xff] %vm331, %v3397
        %s3430 = sand.u32 %s225, 1
        %s3431 = scalar_lea.sflag [#allocation4], %s3430
        %s3432 = sand.u32 %s225, 1
        %s3433 = smul.addr %s3432, 256
        %s3434 = scalar_lea.vmem [#allocation3], %s3433
        // Predicated region
        $region57: #{tpu_custom_call.1} parent=55 // pred_check
          %p3435 = pneg %p235
        $region58: #{tpu_custom_call.1} parent=55 // pred_check_branch
          %3437 = sbr.rel (%p3435) target = $region60
        $region59: #{tpu_custom_call.1} parent=55 // pred_region
          %s3439 = ssub.s32 4096, 4096
          %3440 = vsyncadd %s3431, %s3439
          %s3441 = smul.addr %s23, 32
          %s3442 = smul.addr %s3441, 128
          %s3443 = scalar_lea.hbm %s9, %s3442
          %s3444 = sshll.u32 %s3434, 4
          %s3445 = int_to_ptr.vmem [resolvable:$true] %s3444
          %3450 = dma.vmem_to_hbm [thread:$0]  %s3445, 4096, %s3443, %s3431, 128, 128, 8
        $region60: #{tpu_custom_call.1} parent=55 // pred_fallthru
          _
      $region56: #{tpu_custom_call.1} parent=5 // pred_fallthru
        _
      %p3451 = scmp.le.s32.totalorder 2, %s18
      // Predicated region
      $region61: #{tpu_custom_call.1} parent=5 // pred_check
        %p3452 = pneg %p3451
      $region62: #{tpu_custom_call.1} parent=5 // pred_check_branch
        %3454 = sbr.rel (%p3452) target = $region64
      $region63: #{tpu_custom_call.1} parent=5 // pred_region
        %s3455 = ssub.s32 %s18, 2
        // Predicated region
        $region65: #{tpu_custom_call.1} parent=63 // pred_check
          %p3456 = pneg %p241
        $region66: #{tpu_custom_call.1} parent=63 // pred_check_branch
          %3458 = sbr.rel (%p3456) target = $region68
        $region67: #{tpu_custom_call.1} parent=63 // pred_region
          %s3459 = sand.u32 %s226, 1
          %s3460 = scalar_lea.sflag [#allocation4], %s3459
          %s3461 = sand.u32 %s226, 1
          %s3462 = smul.addr %s3461, 256
          %s3463 = scalar_lea.vmem [#allocation3], %s3462
          %3464 = dma.done %s3460, 4096
        $region68: #{tpu_custom_call.1} parent=63 // pred_fallthru
          _
      $region64: #{tpu_custom_call.1} parent=5 // pred_fallthru
        _
    $region6: #{tpu_custom_call.1} parent=1 // loop_footer
      %s22 = sadd.s32 1, %s18
    $region7: #{tpu_custom_call.1} parent=1 // loop_footer_branch
      %17 = sbr.rel target = $region3
    $region8: #{tpu_custom_call.1} parent=1 // loop_exit
      _
    %3465 = vsyncpa [#allocation4], 1
    %s3466 = scalar_lea.sflag [#allocation4], 1
    %3467 = vsyncpa %s3466, 1

</llo_original>
